<compile_context>
chip_gen: v5e
topology: v5e:2x2
jax: 0.10.0
libtpu: 0.0.40
codegen_flags: <defaults>
</compile_context>

<pallas_src>
import math

import jax
import jax.numpy as jnp
import numpy as np
from jax.experimental import pallas as pl
from jax.experimental.pallas import tpu as pltpu

BN_EPS = 1e-5


# --------------------------------------------------------------------------
# Fused FFN kernel
# --------------------------------------------------------------------------

def _ffn_kernel(x_ref, w1_ref, sh1_ref, w2_ref, sh2_ref, o_ref):
    """One M-tile of: out = x + bn2(conv2(relu(bn1(conv1(x))))).

    BN scale + conv bias are pre-folded into bf16 weight columns / f32 shifts,
    so the epilogue is only '+shift' (+relu / +residual).  Both matmuls happen
    in the same grid step, so the hidden activation never touches HBM.  x is
    re-read from the (VMEM-resident) input tile in the epilogue instead of
    being held live across both MXU passes.
    """
    h = jnp.dot(x_ref[...], w1_ref[...],
                preferred_element_type=jnp.float32)            # bf16 MXU, f32 acc
    h = jnp.maximum(h + sh1_ref[...], 0.0)                     # fc1 bias/BN + relu
    y = jnp.dot(h.astype(jnp.bfloat16), w2_ref[...],
                preferred_element_type=jnp.float32)
    o_ref[...] = x_ref[...].astype(jnp.float32) + y + sh2_ref[...]


# --------------------------------------------------------------------------
# Tile / VMEM budgeting
# --------------------------------------------------------------------------

def _round_up(x, m):
    return (x + m - 1) // m * m


def _cdiv(a, b):
    return -(-a // b)


def _vmem_bytes(tm, c, hid):
    weights = 2 * (c * hid) * 2          # w1 + w2, bf16, single-buffered
    shifts = 2 * (hid + c) * 4           # shift1 + shift2 (allow 2 buffers)
    x_in = 3 * tm * c * 2                # bf16 x tiles, up to 3-deep
    out = 2 * tm * c * 4                 # f32 out tiles, double-buffered
    hidden = tm * hid * 4                # f32 result of the first matmul
    staging = tm * hid * 2               # bf16 staging copy for the 2nd MXU op
    return weights + shifts + x_in + out + hidden + staging


def _vmem_budget():
    try:
        phys = pltpu.get_tpu_info().vmem_capacity_bytes
    except Exception:
        phys = 64 * 2**20                # conservative (v7x per-TC) default
    return max(16 * 2**20, int(0.5 * phys))


def _choose_block_m(m, c, hid, budget):
    m8 = _round_up(max(m, 8), 8)
    tm = 8
    for cand in (4096, 2048, 1024, 512, 256, 128, 64, 32, 16, 8):
        if cand <= m8 and _vmem_bytes(cand, c, hid) <= budget:
            tm = cand
            break
    # Rebalance small grids: v7x shards the parallel M axis across 2 TCs, so a
    # tiny tail tile (or an odd tile count) leaves one core idle.  Split M into
    # an even number of near-equal tiles instead.
    n = _cdiv(m, tm)
    if 1 < n <= 4:
        n_even = n + (n & 1)
        bal = _round_up(_cdiv(m, n_even), 8)
        if bal >= 8 and _vmem_bytes(bal, c, hid) <= budget:
            tm = bal
    return tm


# --------------------------------------------------------------------------
# pallas_call builder + wrappers
# --------------------------------------------------------------------------

def _build_call(m, c, hid, tm, vmem_limit, use_buffered):
    n_steps = _cdiv(m, tm)

    def spec(shape, imap, nbuf):
        if use_buffered and nbuf is not None:
            return pl.BlockSpec(shape, imap, pipeline_mode=pl.Buffered(nbuf))
        return pl.BlockSpec(shape, imap)

    x_nbuf = 3 if n_steps >= 3 else 2
    return pl.pallas_call(
        _ffn_kernel,
        out_shape=jax.ShapeDtypeStruct((m, c), jnp.float32),
        grid=(n_steps,),                                        # no host-side padding
        in_specs=[
            spec((tm, c), lambda i: (i, 0), x_nbuf),            # x tile (streamed, bf16)
            spec((c, hid), lambda i: (0, 0), 1),                # w1: VMEM-resident
            spec((1, hid), lambda i: (0, 0), 1),                # shift1: resident
            spec((hid, c), lambda i: (0, 0), 1),                # w2: VMEM-resident
            spec((1, c), lambda i: (0, 0), 1),                  # shift2: resident
        ],
        out_specs=pl.BlockSpec((tm, c), lambda i: (i, 0)),
        compiler_params=pltpu.CompilerParams(
            dimension_semantics=("parallel",),
            vmem_limit_bytes=vmem_limit),
    )


def ffn_forward_2d(x2d, folded, *, block_m=None):
    """Primary entry point: x2d is (M, C) channels-last (f32 or bf16)."""
    m, c = x2d.shape
    hid = folded["w1"].shape[1]
    assert folded["w1"].shape[0] == c and folded["w2"].shape == (hid, c)

    budget = _vmem_budget()
    tm = block_m or _choose_block_m(m, c, hid, budget)
    vmem_limit = int(min(budget, max(int(1.25 * _vmem_bytes(tm, c, hid)),
                                     16 * 2**20)))

    args = (x2d.astype(jnp.bfloat16), folded["w1"], folded["sh1"],
            folded["w2"], folded["sh2"])
    try:
        return _build_call(m, c, hid, tm, vmem_limit, True)(*args)
    except Exception:
        # pipeline_mode hints are an optimization only; fall back if rejected.
        return _build_call(m, c, hid, tm, vmem_limit, False)(*args)


def ffn_forward(x_nchw, folded, *, block_m=None):
    """Convenience wrapper for PyTorch-style NCHW input/output."""
    b, c, h, w = x_nchw.shape
    m = b * h * w
    # The layout change is unavoidable for NCHW callers; cast to bf16 in the
    # same op so the bytes written during the transpose are halved, and the
    # kernel's input stream is already bf16.
    x2d = jnp.transpose(x_nchw, (0, 2, 3, 1)).reshape(m, c).astype(jnp.bfloat16)
    out2d = ffn_forward_2d(x2d, folded, block_m=block_m)
    return jnp.transpose(out2d.reshape(b, h, w, c), (0, 3, 1, 2))


# --------------------------------------------------------------------------
# Parameters (PyTorch-style raw params + BN/bias folding)
# --------------------------------------------------------------------------

def init_ffn_params(key, in_features, hidden_features=None, out_features=None):
    out_features = out_features or in_features
    hidden_features = hidden_features or in_features
    assert out_features == in_features, "residual add requires out == in"
    ks = jax.random.split(key, 6)

    def conv1x1(kw, kb, cin, cout):
        bound = 1.0 / math.sqrt(cin)          # PyTorch Conv2d default init range
        wgt = jax.random.uniform(kw, (cin, cout), jnp.float32, -bound, bound)
        bias = jax.random.uniform(kb, (cout,), jnp.float32, -bound, bound)
        return wgt, bias

    def bn(k, n):                              # eval-mode running stats (perturbed)
        k1, k2, k3, k4 = jax.random.split(k, 4)
        return dict(
            gamma=1.0 + 0.1 * jax.random.normal(k1, (n,), jnp.float32),
            beta=0.1 * jax.random.normal(k2, (n,), jnp.float32),
            mean=0.1 * jax.random.normal(k3, (n,), jnp.float32),
            var=1.0 + 0.1 * jax.random.uniform(k4, (n,), jnp.float32),
        )

    w1, b1 = conv1x1(ks[0], ks[1], in_features, hidden_features)
    w2, b2 = conv1x1(ks[2], ks[3], hidden_features, out_features)
    return dict(w1=w1, b1=b1, bn1=bn(ks[4], hidden_features),
                w2=w2, b2=b2, bn2=bn(ks[5], out_features))


def fold_ffn_params(raw):
    """Fold conv bias + BN(running stats) into bf16 weights and f32 shifts."""
    def fold(wgt, bias, bnp):
        scale = bnp["gamma"] / jnp.sqrt(bnp["var"] + BN_EPS)
        w_f = (wgt * scale[None, :]).astype(jnp.bfloat16)     # scale folded into W
        shift = bnp["beta"] + (bias - bnp["mean"]) * scale
        return w_f, shift.reshape(1, -1).astype(jnp.float32)

    w1, sh1 = fold(raw["w1"], raw["b1"], raw["bn1"])
    w2, sh2 = fold(raw["w2"], raw["b2"], raw["bn2"])
    return dict(w1=w1, sh1=sh1, w2=w2, sh2=sh2)


# --------------------------------------------------------------------------
# References (pure JAX) for correctness checks
# --------------------------------------------------------------------------

def ffn_reference_f32(x_nchw, raw):
    """Unfused full-f32 reference matching the PyTorch eval-mode forward."""
    b, c, h, w = x_nchw.shape
    x = jnp.transpose(x_nchw, (0, 2, 3, 1)).reshape(-1, c)

    def bn(y, p):
        return (y - p["mean"]) * (p["gamma"] / jnp.sqrt(p["var"] + BN_EPS)) + p["beta"]

    hdn = jnp.maximum(bn(x @ raw["w1"] + raw["b1"], raw["bn1"]), 0.0)
    y = bn(hdn @ raw["w2"] + raw["b2"], raw["bn2"])
    out = y + x                                               # drop_path(0) == identity
    return jnp.transpose(out.reshape(b, h, w, c), (0, 3, 1, 2))


def ffn_reference_folded(x_nchw, folded):
    """Plain-jnp replica of the exact kernel math (bf16 x/weights, f32 accum)."""
    b, c, h, w = x_nchw.shape
    x = jnp.transpose(x_nchw, (0, 2, 3, 1)).reshape(-1, c).astype(jnp.bfloat16)
    hdn = jnp.maximum(
        jnp.dot(x, folded["w1"], preferred_element_type=jnp.float32)
        + folded["sh1"], 0.0)
    y = jnp.dot(hdn.astype(jnp.bfloat16), folded["w2"],
                preferred_element_type=jnp.float32) + folded["sh2"]
    out = x.astype(jnp.float32) + y
    return jnp.transpose(out.reshape(b, h, w, c), (0, 3, 1, 2))


# --------------------------------------------------------------------------

if __name__ == "__main__":
    # Small shapes consistent with the module: 14x14 feature map, hidden = 4*C.
    # M = 784 -> rebalanced into 2 equal 392-row tiles (one per TC on v7x).
    B, C, HID, H, W = 4, 128, 512, 14, 14
    # TODO(synk): act_layer variants other than 'relu' and DropPath(drop_path>0)
    # (stochastic depth) are not implemented; module defaults (relu, 0.0) are used.
    # BatchNorm uses eval-mode running statistics (inference semantics).

    key = jax.random.PRNGKey(0)
    kp, kx = jax.random.split(key)
    raw = init_ffn_params(kp, C, HID)
    folded = fold_ffn_params(raw)
    x = jax.random.normal(kx, (B, C, H, W), jnp.float32)      # NCHW, like PyTorch

    out = jax.block_until_ready(ffn_forward(x, folded))
    assert out.shape == (B, C, H, W), out.shape
    assert bool(jnp.all(jnp.isfinite(out)))

    # Check against the same (folded, bf16-activation) math done in plain jnp.
    ref_exact = jax.block_until_ready(ffn_reference_folded(x, folded))
    np.testing.assert_allclose(np.asarray(out), np.asarray(ref_exact),
                               rtol=1e-2, atol=1e-2)
    # Loose check against the unfused full-f32 PyTorch-style forward.
    ref_f32 = jax.block_until_ready(ffn_reference_f32(x, raw))
    np.testing.assert_allclose(np.asarray(out), np.asarray(ref_f32),
                               rtol=6e-2, atol=6e-2)

    print("KERNEL_OK")
</pallas_src>

<mosaic_0001>
module attributes {stable_mosaic.version = 11 : i64} {
  func.func @_ffn_kernel(%arg0: i32, %arg1: memref<392x128xbf16, #tpu.memory_space<vmem>>, %arg2: memref<128x512xbf16, #tpu.memory_space<vmem>>, %arg3: memref<1x512xf32, #tpu.memory_space<vmem>>, %arg4: memref<512x128xbf16, #tpu.memory_space<vmem>>, %arg5: memref<1x128xf32, #tpu.memory_space<vmem>>, %arg6: memref<392x128xf32, #tpu.memory_space<vmem>>) attributes {dimension_semantics = [#tpu.dimension_semantics<parallel>], iteration_bounds = array<i64: 2>, scalar_prefetch = 0 : i64, scratch_operands = 0 : i64, tpu.core_type = #tpu.core_type<tc>, window_params = [{pipeline_mode = #tpu.pipeline_mode<double_buffered>, transform_indices = @transform_0, window_bounds = array<i64: 392, 128>}, {pipeline_mode = #tpu.pipeline_mode<synchronous>, transform_indices = @transform_1, window_bounds = array<i64: 128, 512>}, {pipeline_mode = #tpu.pipeline_mode<synchronous>, transform_indices = @transform_2, window_bounds = array<i64: 1, 512>}, {pipeline_mode = #tpu.pipeline_mode<synchronous>, transform_indices = @transform_3, window_bounds = array<i64: 512, 128>}, {pipeline_mode = #tpu.pipeline_mode<synchronous>, transform_indices = @transform_4, window_bounds = array<i64: 1, 128>}, {transform_indices = @transform_5, window_bounds = array<i64: 392, 128>}]} {
    %c0 = arith.constant 0 : index
    %c0_0 = arith.constant 0 : index
    %0 = vector.load %arg1[%c0, %c0_0] : memref<392x128xbf16, #tpu.memory_space<vmem>>, vector<392x128xbf16>
    %c0_1 = arith.constant 0 : index
    %c0_2 = arith.constant 0 : index
    %1 = vector.load %arg2[%c0_1, %c0_2] : memref<128x512xbf16, #tpu.memory_space<vmem>>, vector<128x512xbf16>
    %cst = arith.constant dense<0.000000e+00> : vector<392x512xf32>
    %2 = tpu.matmul %0, %1, %cst {dimension_numbers = #tpu.dot_dimension_numbers<[1], [0], [0], [1], [0, 0, 1, 1], [], []>} : vector<392x128xbf16>, vector<128x512xbf16>, vector<392x512xf32> -> vector<392x512xf32>
    %c0_3 = arith.constant 0 : index
    %c0_4 = arith.constant 0 : index
    %3 = vector.load %arg3[%c0_3, %c0_4] : memref<1x512xf32, #tpu.memory_space<vmem>>, vector<1x512xf32>
    %4 = vector.broadcast %3 : vector<1x512xf32> to vector<392x512xf32>
    %5 = arith.addf %2, %4 : vector<392x512xf32>
    %cst_5 = arith.constant 0.000000e+00 : f32
    %6 = vector.broadcast %cst_5 : f32 to vector<392x512xf32>
    %7 = arith.maximumf %5, %6 : vector<392x512xf32>
    %8 = arith.truncf %7 : vector<392x512xf32> to vector<392x512xbf16>
    %c0_6 = arith.constant 0 : index
    %c0_7 = arith.constant 0 : index
    %9 = vector.load %arg4[%c0_6, %c0_7] : memref<512x128xbf16, #tpu.memory_space<vmem>>, vector<512x128xbf16>
    %cst_8 = arith.constant dense<0.000000e+00> : vector<392x128xf32>
    %10 = tpu.matmul %8, %9, %cst_8 {dimension_numbers = #tpu.dot_dimension_numbers<[1], [0], [0], [1], [0, 0, 1, 1], [], []>} : vector<392x512xbf16>, vector<512x128xbf16>, vector<392x128xf32> -> vector<392x128xf32>
    %c0_9 = arith.constant 0 : index
    %c0_10 = arith.constant 0 : index
    %11 = vector.load %arg1[%c0_9, %c0_10] : memref<392x128xbf16, #tpu.memory_space<vmem>>, vector<392x128xbf16>
    %12 = arith.extf %11 : vector<392x128xbf16> to vector<392x128xf32>
    %13 = arith.addf %12, %10 : vector<392x128xf32>
    %c0_11 = arith.constant 0 : index
    %c0_12 = arith.constant 0 : index
    %14 = vector.load %arg5[%c0_11, %c0_12] : memref<1x128xf32, #tpu.memory_space<vmem>>, vector<1x128xf32>
    %15 = vector.broadcast %14 : vector<1x128xf32> to vector<392x128xf32>
    %16 = arith.addf %13, %15 : vector<392x128xf32>
    %c0_13 = arith.constant 0 : index
    %c0_14 = arith.constant 0 : index
    %17 = vector.load %arg6[%c0_13, %c0_14] : memref<392x128xf32, #tpu.memory_space<vmem>>, vector<392x128xf32>
    tpu.vector_store %arg6[%c0_13, %c0_14], %16 {strides = array<i32>} : memref<392x128xf32, #tpu.memory_space<vmem>>, vector<392x128xf32>,
    return
  }
  func.func @transform_0(%arg0: i32) -> (i32, i32) {
    %c0_i32 = arith.constant 0 : i32
    %c0_i32_0 = arith.constant 0 : i32
    return %arg0, %c0_i32 : i32, i32
  }
  func.func @transform_1(%arg0: i32) -> (i32, i32) {
    %c0_i32 = arith.constant 0 : i32
    %c0_i32_0 = arith.constant 0 : i32
    %c0_i32_1 = arith.constant 0 : i32
    return %c0_i32, %c0_i32_0 : i32, i32
  }
  func.func @transform_2(%arg0: i32) -> (i32, i32) {
    %c0_i32 = arith.constant 0 : i32
    %c0_i32_0 = arith.constant 0 : i32
    %c0_i32_1 = arith.constant 0 : i32
    return %c0_i32, %c0_i32_0 : i32, i32
  }
  func.func @transform_3(%arg0: i32) -> (i32, i32) {
    %c0_i32 = arith.constant 0 : i32
    %c0_i32_0 = arith.constant 0 : i32
    %c0_i32_1 = arith.constant 0 : i32
    return %c0_i32, %c0_i32_0 : i32, i32
  }
  func.func @transform_4(%arg0: i32) -> (i32, i32) {
    %c0_i32 = arith.constant 0 : i32
    %c0_i32_0 = arith.constant 0 : i32
    %c0_i32_1 = arith.constant 0 : i32
    return %c0_i32, %c0_i32_0 : i32, i32
  }
  func.func @transform_5(%arg0: i32) -> (i32, i32) {
    %c0_i32 = arith.constant 0 : i32
    %c0_i32_0 = arith.constant 0 : i32
    return %arg0, %c0_i32 : i32, i32
  }
}

module attributes {stable_mosaic.version = 11 : i64} {
  func.func @_ffn_kernel(%arg0: i32, %arg1: memref<392x128xbf16, #tpu.memory_space<vmem>>, %arg2: memref<128x512xbf16, #tpu.memory_space<vmem>>, %arg3: memref<1x512xf32, #tpu.memory_space<vmem>>, %arg4: memref<512x128xbf16, #tpu.memory_space<vmem>>, %arg5: memref<1x128xf32, #tpu.memory_space<vmem>>, %arg6: memref<392x128xf32, #tpu.memory_space<vmem>>) attributes {dimension_semantics = [#tpu.dimension_semantics<parallel>], iteration_bounds = array<i64: 2>, scalar_prefetch = 0 : i64, scratch_operands = 0 : i64, tpu.core_type = #tpu.core_type<tc>, window_params = [{transform_indices = @transform_0, window_bounds = array<i64: 392, 128>}, {pipeline_mode = #tpu.pipeline_mode<synchronous>, transform_indices = @transform_1, window_bounds = array<i64: 128, 512>}, {pipeline_mode = #tpu.pipeline_mode<synchronous>, transform_indices = @transform_2, window_bounds = array<i64: 1, 512>}, {pipeline_mode = #tpu.pipeline_mode<synchronous>, transform_indices = @transform_3, window_bounds = array<i64: 512, 128>}, {pipeline_mode = #tpu.pipeline_mode<synchronous>, transform_indices = @transform_4, window_bounds = array<i64: 1, 128>}, {transform_indices = @transform_5, window_bounds = array<i64: 392, 128>}]} {
    %c0 = arith.constant 0 : index
    %c0_0 = arith.constant 0 : index
    %0 = vector.load %arg1[%c0, %c0_0] : memref<392x128xbf16, #tpu.memory_space<vmem>>, vector<392x128xbf16>
    %c0_1 = arith.constant 0 : index
    %c0_2 = arith.constant 0 : index
    %1 = vector.load %arg2[%c0_1, %c0_2] : memref<128x512xbf16, #tpu.memory_space<vmem>>, vector<128x512xbf16>
    %cst = arith.constant dense<0.000000e+00> : vector<392x512xf32>
    %2 = tpu.matmul %0, %1, %cst {dimension_numbers = #tpu.dot_dimension_numbers<[1], [0], [0], [1], [0, 0, 1, 1], [], []>} : vector<392x128xbf16>, vector<128x512xbf16>, vector<392x512xf32> -> vector<392x512xf32>
    %c0_3 = arith.constant 0 : index
    %c0_4 = arith.constant 0 : index
    %3 = vector.load %arg3[%c0_3, %c0_4] : memref<1x512xf32, #tpu.memory_space<vmem>>, vector<1x512xf32>
    %4 = vector.broadcast %3 : vector<1x512xf32> to vector<392x512xf32>
    %5 = arith.addf %2, %4 : vector<392x512xf32>
    %cst_5 = arith.constant 0.000000e+00 : f32
    %6 = vector.broadcast %cst_5 : f32 to vector<392x512xf32>
    %7 = arith.maximumf %5, %6 : vector<392x512xf32>
    %8 = arith.truncf %7 : vector<392x512xf32> to vector<392x512xbf16>
    %c0_6 = arith.constant 0 : index
    %c0_7 = arith.constant 0 : index
    %9 = vector.load %arg4[%c0_6, %c0_7] : memref<512x128xbf16, #tpu.memory_space<vmem>>, vector<512x128xbf16>
    %cst_8 = arith.constant dense<0.000000e+00> : vector<392x128xf32>
    %10 = tpu.matmul %8, %9, %cst_8 {dimension_numbers = #tpu.dot_dimension_numbers<[1], [0], [0], [1], [0, 0, 1, 1], [], []>} : vector<392x512xbf16>, vector<512x128xbf16>, vector<392x128xf32> -> vector<392x128xf32>
    %c0_9 = arith.constant 0 : index
    %c0_10 = arith.constant 0 : index
    %11 = vector.load %arg1[%c0_9, %c0_10] : memref<392x128xbf16, #tpu.memory_space<vmem>>, vector<392x128xbf16>
    %12 = arith.extf %11 : vector<392x128xbf16> to vector<392x128xf32>
    %13 = arith.addf %12, %10 : vector<392x128xf32>
    %c0_11 = arith.constant 0 : index
    %c0_12 = arith.constant 0 : index
    %14 = vector.load %arg5[%c0_11, %c0_12] : memref<1x128xf32, #tpu.memory_space<vmem>>, vector<1x128xf32>
    %15 = vector.broadcast %14 : vector<1x128xf32> to vector<392x128xf32>
    %16 = arith.addf %13, %15 : vector<392x128xf32>
    %c0_13 = arith.constant 0 : index
    %c0_14 = arith.constant 0 : index
    %17 = vector.load %arg6[%c0_13, %c0_14] : memref<392x128xf32, #tpu.memory_space<vmem>>, vector<392x128xf32>
    tpu.vector_store %arg6[%c0_13, %c0_14], %16 {strides = array<i32>} : memref<392x128xf32, #tpu.memory_space<vmem>>, vector<392x128xf32>,
    return
  }
  func.func @transform_0(%arg0: i32) -> (i32, i32) {
    %c0_i32 = arith.constant 0 : i32
    %c0_i32_0 = arith.constant 0 : i32
    return %arg0, %c0_i32 : i32, i32
  }
  func.func @transform_1(%arg0: i32) -> (i32, i32) {
    %c0_i32 = arith.constant 0 : i32
    %c0_i32_0 = arith.constant 0 : i32
    %c0_i32_1 = arith.constant 0 : i32
    return %c0_i32, %c0_i32_0 : i32, i32
  }
  func.func @transform_2(%arg0: i32) -> (i32, i32) {
    %c0_i32 = arith.constant 0 : i32
    %c0_i32_0 = arith.constant 0 : i32
    %c0_i32_1 = arith.constant 0 : i32
    return %c0_i32, %c0_i32_0 : i32, i32
  }
  func.func @transform_3(%arg0: i32) -> (i32, i32) {
    %c0_i32 = arith.constant 0 : i32
    %c0_i32_0 = arith.constant 0 : i32
    %c0_i32_1 = arith.constant 0 : i32
    return %c0_i32, %c0_i32_0 : i32, i32
  }
  func.func @transform_4(%arg0: i32) -> (i32, i32) {
    %c0_i32 = arith.constant 0 : i32
    %c0_i32_0 = arith.constant 0 : i32
    %c0_i32_1 = arith.constant 0 : i32
    return %c0_i32, %c0_i32_0 : i32, i32
  }
  func.func @transform_5(%arg0: i32) -> (i32, i32) {
    %c0_i32 = arith.constant 0 : i32
    %c0_i32_0 = arith.constant 0 : i32
    return %arg0, %c0_i32 : i32, i32
  }
}

</mosaic_0001>

<llo_original>
// kernel: tpu_custom_call.1
$region0: #{tpu_custom_call.1}
  #allocation0 [shape = 'u32[]', space=smem, size = 0x4, offset = 0x4, fixed_abs, tag = 'smem constant byte address 0x4 - core index']
  #allocation1 [shape = 'u32[72,128]{1,0:T(1,128)}', space=vmem, size = 0x9000, scoped, tag = 'internal scratch']
  %s0 = inlined_call_operand.hbm [shape: bf16[784,128], index: 0, kind: input, shape index: {}]
  %s1 = inlined_call_operand.hbm [shape: bf16[128,512], index: 1, kind: input, shape index: {}]
  %s2 = inlined_call_operand.hbm [shape: f32[1,512], index: 2, kind: input, shape index: {}]
  %s3 = inlined_call_operand.hbm [shape: bf16[512,128], index: 3, kind: input, shape index: {}]
  %s4 = inlined_call_operand.vmem [shape: f32[1,128], index: 4, kind: input, shape index: {}]
  %s5 = inlined_call_operand.hbm [shape: f32[784,128], index: 5, kind: output, shape index: {}]
  %s6 = sld [smem:[#allocation0]]
  $region69: #{tpu_custom_call.1} parent=0
    _
  %s8 = ssub.s32 1, %s6
  %s9 = scalar_select 0, %s8, %s6
  $region1: #{tpu_custom_call.1} parent=0
    #allocation2 [shape = 'u8[200704]{0}', space=vmem, size = 0x31000, scoped, tag = 'input window, operand 0']
    #allocation3 [shape = 's32[2]{0}', space=sflag, size = 0x8, scoped, tag = 'scoped memory for tpu_custom_call.1']
    #allocation4 [shape = 's32[2]{0}', space=sflag, size = 0x8, scoped, tag = 'scoped memory for tpu_custom_call.1']
    #allocation5 [shape = 'u8[131072]{0}', space=vmem, size = 0x20000, scoped, tag = 'input window, operand 1, single buffered']
    #allocation6 [shape = 's32[1]{0}', space=sflag, size = 0x4, scoped, tag = 'scoped memory for tpu_custom_call.1']
    #allocation7 [shape = 'u8[2048]{0}', space=vmem, size = 0x800, scoped, tag = 'input window, operand 2, single buffered']
    #allocation8 [shape = 'u8[131072]{0}', space=vmem, size = 0x20000, scoped, tag = 'input window, operand 3, single buffered']
    #allocation9 [shape = 's32[1]{0}', space=sflag, size = 0x4, scoped, tag = 'scoped memory for tpu_custom_call.1']
    #allocation10 [shape = 'u8[401408]{0}', space=vmem, size = 0x62000, scoped, tag = 'output window, operand 0']
    %10 = vsyncpa [#allocation3], 0
    %s11 = scalar_lea.sflag [#allocation3], 1
    %12 = vsyncpa %s11, 0
    %13 = vsyncpa [#allocation6], 0
    %14 = vsyncpa [#allocation9], 0
    %15 = vsyncpa [#allocation4], 0
    %s16 = scalar_lea.sflag [#allocation4], 1
    %17 = vsyncpa %s16, 0
    loop: start=0, step=1, limit=4
    $region2: #{tpu_custom_call.1} parent=1 // loop_pre_header
      _
    $region3: #{tpu_custom_call.1} parent=1 // loop_header
      %s19 = sphi 0, %s23
      %p20 = scmp.ge.s32.totalorder %s19, 4
      %s29 = sphi 0, %s31
      %s32 = sphi 0, %s29
      %s33 = sphi 0, %s32
      %s49 = sphi 0, %s33
      %s53 = sphi 0, %s53
      %s55 = sphi 0, %s53
      %s56 = sphi 0, %s55
      %s70 = sphi 0, %s56
      %s74 = sphi 0, %s74
      %s76 = sphi 0, %s74
      %s77 = sphi 0, %s76
      %s91 = sphi 0, %s77
      %s95 = sphi 0, %s95
      %s97 = sphi 0, %s95
      %s98 = sphi 0, %s97
      %s112 = sphi 0, %s98
      %s116 = sphi 0, %s116
      %s118 = sphi 0, %s116
      %s119 = sphi 0, %s118
      %s133 = sphi 0, %s119
      %s139 = sphi 0, %s141
      %s142 = sphi 0, %s139
      %s143 = sphi 0, %s142
      %s159 = sphi 0, %s143
    $region4: #{tpu_custom_call.1} parent=1 // loop_header_branch
      %22 = sbr.rel (%p20) target = $region8
    $region5: #{tpu_custom_call.1} parent=1 // loop_body
      %s24 = ssub.s32 %s19, 1
      %s25 = ssub.s32 %s19, 2
      %s26 = sadd.s32 %s19, 1
      %s27 = ssub.s32 %s19, %s26
      %p28 = scmp.eq.s32.totalorder %s27, 0
      %s30 = sadd.s32 %s29, 1
      %s31 = scalar_select %p28, %s29, %s30
      %p34 = pneg %p28
      %p35 = scmp.eq.s32.totalorder %s19, 1
      %p36 = por %p34, %p35
      %p37 = scmp.ne.s32.totalorder %s29, %s32
      %p38 = scmp.eq.s32.totalorder %s19, 0
      %p39 = por %p37, %p38
      %p40 = scmp.ne.s32.totalorder %s29, %s32
      %p41 = scmp.eq.s32.totalorder %s24, 1
      %p42 = por %p40, %p41
      %p43 = scmp.ne.s32.totalorder %s32, %s33
      %p44 = scmp.eq.s32.totalorder %s24, 0
      %p45 = por %p43, %p44
      %p46 = scmp.ne.s32.totalorder %s32, %s33
      %p47 = scmp.eq.s32.totalorder %s25, 1
      %p48 = por %p46, %p47
      %p50 = scmp.ne.s32.totalorder %s33, %s49
      %p51 = scmp.eq.s32.totalorder %s25, 0
      %p52 = por %p50, %p51
      %s54 = sadd.s32 %s53, 1
      %p57 = scmp.eq.s32.totalorder %s19, 1
      %p58 = scmp.ne.s32.totalorder %s53, %s55
      %p59 = scmp.eq.s32.totalorder %s19, 0
      %p60 = por %p58, %p59
      %p61 = scmp.ne.s32.totalorder %s53, %s55
      %p62 = scmp.eq.s32.totalorder %s24, 1
      %p63 = por %p61, %p62
      %p64 = scmp.ne.s32.totalorder %s55, %s56
      %p65 = scmp.eq.s32.totalorder %s24, 0
      %p66 = por %p64, %p65
      %p67 = scmp.ne.s32.totalorder %s55, %s56
      %p68 = scmp.eq.s32.totalorder %s25, 1
      %p69 = por %p67, %p68
      %p71 = scmp.ne.s32.totalorder %s56, %s70
      %p72 = scmp.eq.s32.totalorder %s25, 0
      %p73 = por %p71, %p72
      %s75 = sadd.s32 %s74, 1
      %p78 = scmp.eq.s32.totalorder %s19, 1
      %p79 = scmp.ne.s32.totalorder %s74, %s76
      %p80 = scmp.eq.s32.totalorder %s19, 0
      %p81 = por %p79, %p80
      %p82 = scmp.ne.s32.totalorder %s74, %s76
      %p83 = scmp.eq.s32.totalorder %s24, 1
      %p84 = por %p82, %p83
      %p85 = scmp.ne.s32.totalorder %s76, %s77
      %p86 = scmp.eq.s32.totalorder %s24, 0
      %p87 = por %p85, %p86
      %p88 = scmp.ne.s32.totalorder %s76, %s77
      %p89 = scmp.eq.s32.totalorder %s25, 1
      %p90 = por %p88, %p89
      %p92 = scmp.ne.s32.totalorder %s77, %s91
      %p93 = scmp.eq.s32.totalorder %s25, 0
      %p94 = por %p92, %p93
      %s96 = sadd.s32 %s95, 1
      %p99 = scmp.eq.s32.totalorder %s19, 1
      %p100 = scmp.ne.s32.totalorder %s95, %s97
      %p101 = scmp.eq.s32.totalorder %s19, 0
      %p102 = por %p100, %p101
      %p103 = scmp.ne.s32.totalorder %s95, %s97
      %p104 = scmp.eq.s32.totalorder %s24, 1
      %p105 = por %p103, %p104
      %p106 = scmp.ne.s32.totalorder %s97, %s98
      %p107 = scmp.eq.s32.totalorder %s24, 0
      %p108 = por %p106, %p107
      %p109 = scmp.ne.s32.totalorder %s97, %s98
      %p110 = scmp.eq.s32.totalorder %s25, 1
      %p111 = por %p109, %p110
      %p113 = scmp.ne.s32.totalorder %s98, %s112
      %p114 = scmp.eq.s32.totalorder %s25, 0
      %p115 = por %p113, %p114
      %s117 = sadd.s32 %s116, 1
      %p120 = scmp.eq.s32.totalorder %s19, 1
      %p121 = scmp.ne.s32.totalorder %s116, %s118
      %p122 = scmp.eq.s32.totalorder %s19, 0
      %p123 = por %p121, %p122
      %p124 = scmp.ne.s32.totalorder %s116, %s118
      %p125 = scmp.eq.s32.totalorder %s24, 1
      %p126 = por %p124, %p125
      %p127 = scmp.ne.s32.totalorder %s118, %s119
      %p128 = scmp.eq.s32.totalorder %s24, 0
      %p129 = por %p127, %p128
      %p130 = scmp.ne.s32.totalorder %s118, %s119
      %p131 = scmp.eq.s32.totalorder %s25, 1
      %p132 = por %p130, %p131
      %p134 = scmp.ne.s32.totalorder %s119, %s133
      %p135 = scmp.eq.s32.totalorder %s25, 0
      %p136 = por %p134, %p135
      %s137 = ssub.s32 %s19, %s26
      %p138 = scmp.eq.s32.totalorder %s137, 0
      %s140 = sadd.s32 %s139, 1
      %s141 = scalar_select %p138, %s139, %s140
      %p144 = pneg %p138
      %p145 = scmp.eq.s32.totalorder %s19, 1
      %p146 = por %p144, %p145
      %p147 = scmp.ne.s32.totalorder %s139, %s142
      %p148 = scmp.eq.s32.totalorder %s19, 0
      %p149 = por %p147, %p148
      %p150 = scmp.ne.s32.totalorder %s139, %s142
      %p151 = scmp.eq.s32.totalorder %s24, 1
      %p152 = por %p150, %p151
      %p153 = scmp.ne.s32.totalorder %s142, %s143
      %p154 = scmp.eq.s32.totalorder %s24, 0
      %p155 = por %p153, %p154
      %p156 = scmp.ne.s32.totalorder %s142, %s143
      %p157 = scmp.eq.s32.totalorder %s25, 1
      %p158 = por %p156, %p157
      %p160 = scmp.ne.s32.totalorder %s143, %s159
      %p161 = scmp.eq.s32.totalorder %s25, 0
      %p162 = por %p160, %p161
      %p163 = scmp.le.s32.totalorder 1, %s19
      %p164 = scmp.lt.s32.totalorder %s19, 3
      %p165 = pnand %p163, %p164
      %p166 = pneg %p165
      // Predicated region
      $region9: #{tpu_custom_call.1} parent=5 // pred_check
        _
      $region10: #{tpu_custom_call.1} parent=5 // pred_check_branch
        %168 = sbr.rel (%p165) target = $region12
      $region11: #{tpu_custom_call.1} parent=5 // pred_region
        %s169 = ssub.s32 %s19, 1
        // Predicated region
        $region13: #{tpu_custom_call.1} parent=11 // pred_check
          %p170 = pneg %p66
        $region14: #{tpu_custom_call.1} parent=11 // pred_check_branch
          %172 = sbr.rel (%p170) target = $region16
        $region15: #{tpu_custom_call.1} parent=11 // pred_region
          %174 = vsyncadd [#allocation6], 0
          %s175 = sshll.u32 %s1, 4
          %s176 = int_to_ptr.hbm [resolvable:$true] %s175
          %s177 = sshll.u32 [#allocation5], 4
          %s178 = int_to_ptr.vmem [resolvable:$true] %s177
          %183 = dma.hbm_to_vmem [thread:$0]  %s176, 4096, %s178, [#allocation6], 256, 256, 16
        $region16: #{tpu_custom_call.1} parent=11 // pred_fallthru
          _
        // Predicated region
        $region17: #{tpu_custom_call.1} parent=11 // pred_check
          %p184 = pneg %p87
        $region18: #{tpu_custom_call.1} parent=11 // pred_check_branch
          %186 = sbr.rel (%p184) target = $region20
        $region19: #{tpu_custom_call.1} parent=11 // pred_region
          %188 = vsyncadd [#allocation6], 0
          %s190 = sshll.u32 %s2, 4
          %s191 = int_to_ptr.hbm [resolvable:$true] %s190
          %s192 = sshll.u32 [#allocation7], 4
          %s193 = int_to_ptr.vmem [resolvable:$true] %s192
          %195 = dma.hbm_to_vmem [thread:$0]  %s191, 64, %s193, [#allocation6]
        $region20: #{tpu_custom_call.1} parent=11 // pred_fallthru
          _
        // Predicated region
        $region21: #{tpu_custom_call.1} parent=11 // pred_check
          %p196 = pneg %p108
        $region22: #{tpu_custom_call.1} parent=11 // pred_check_branch
          %198 = sbr.rel (%p196) target = $region24
        $region23: #{tpu_custom_call.1} parent=11 // pred_region
          %200 = vsyncadd [#allocation9], 0
          %s201 = sshll.u32 %s3, 4
          %s202 = int_to_ptr.hbm [resolvable:$true] %s201
          %s203 = sshll.u32 [#allocation8], 4
          %s204 = int_to_ptr.vmem [resolvable:$true] %s203
          %209 = dma.hbm_to_vmem [thread:$0]  %s202, 4096, %s204, [#allocation9], 64, 64, 4
        $region24: #{tpu_custom_call.1} parent=11 // pred_fallthru
          _
        // Predicated region
        $region25: #{tpu_custom_call.1} parent=11 // pred_check
          %p210 = pneg %p129
        $region26: #{tpu_custom_call.1} parent=11 // pred_check_branch
          %212 = sbr.rel (%p210) target = $region28
        $region27: #{tpu_custom_call.1} parent=11 // pred_region
          _
        $region28: #{tpu_custom_call.1} parent=11 // pred_fallthru
          _
      $region12: #{tpu_custom_call.1} parent=5 // pred_fallthru
        _
      %p213 = scmp.lt.s32.totalorder %s19, 2
      // Predicated region
      $region29: #{tpu_custom_call.1} parent=5 // pred_check
        %p214 = pneg %p213
      $region30: #{tpu_custom_call.1} parent=5 // pred_check_branch
        %216 = sbr.rel (%p214) target = $region32
      $region31: #{tpu_custom_call.1} parent=5 // pred_region
        // Predicated region
        $region33: #{tpu_custom_call.1} parent=31 // pred_check
          %p217 = pneg %p39
        $region34: #{tpu_custom_call.1} parent=31 // pred_check_branch
          %219 = sbr.rel (%p217) target = $region36
        $region35: #{tpu_custom_call.1} parent=31 // pred_region
          %s220 = sand.u32 %s29, 1
          %s221 = scalar_lea.sflag [#allocation3], %s220
          %s222 = sand.u32 %s29, 1
          %s223 = smul.addr %s222, 196
          %s224 = scalar_lea.vmem [#allocation2], %s223
          %s225 = smul.u32 49, %s19
          %227 = vsyncadd %s221, 0
          %s228 = smul.addr %s225, 4
          %s229 = scalar_lea.hbm %s0, %s228
          %s230 = sshll.u32 %s229, 4
          %s231 = int_to_ptr.hbm [resolvable:$true] %s230
          %s232 = sshll.u32 %s224, 4
          %s233 = int_to_ptr.vmem [resolvable:$true] %s232
          %238 = dma.hbm_to_vmem [thread:$0]  %s231, 3136, %s233, %s221, 64, 64, 4
        $region36: #{tpu_custom_call.1} parent=31 // pred_fallthru
          _
      $region32: #{tpu_custom_call.1} parent=5 // pred_fallthru
        _
      %p239 = scmp.le.s32.totalorder 1, %s19
      %p240 = scmp.lt.s32.totalorder %s19, 3
      %p241 = pnand %p239, %p240
      %p242 = pneg %p241
      // Predicated region
      $region37: #{tpu_custom_call.1} parent=5 // pred_check
        _
      $region38: #{tpu_custom_call.1} parent=5 // pred_check_branch
        %244 = sbr.rel (%p241) target = $region40
      $region39: #{tpu_custom_call.1} parent=5 // pred_region
        %s245 = ssub.s32 %s19, 1
        %s246 = sand.u32 %s32, 1
        %s247 = scalar_lea.sflag [#allocation3], %s246
        %s248 = sand.u32 %s32, 1
        %s249 = smul.addr %s248, 196
        %s250 = scalar_lea.vmem [#allocation2], %s249
        // Predicated region
        $region41: #{tpu_custom_call.1} parent=39 // pred_check
          %p251 = pneg %p45
        $region42: #{tpu_custom_call.1} parent=39 // pred_check_branch
          %253 = sbr.rel (%p251) target = $region44
        $region43: #{tpu_custom_call.1} parent=39 // pred_region
          %255 = dma.done %s247, 3136
        $region44: #{tpu_custom_call.1} parent=39 // pred_fallthru
          _
        // Predicated region
        $region45: #{tpu_custom_call.1} parent=39 // pred_check
          %p256 = pneg %p66
        $region46: #{tpu_custom_call.1} parent=39 // pred_check_branch
          %258 = sbr.rel (%p256) target = $region48
        $region47: #{tpu_custom_call.1} parent=39 // pred_region
          %260 = dma.done [#allocation6], 4096
        $region48: #{tpu_custom_call.1} parent=39 // pred_fallthru
          _
        // Predicated region
        $region49: #{tpu_custom_call.1} parent=39 // pred_check
          %p261 = pneg %p87
        $region50: #{tpu_custom_call.1} parent=39 // pred_check_branch
          %263 = sbr.rel (%p261) target = $region52
        $region51: #{tpu_custom_call.1} parent=39 // pred_region
          %265 = dma.done [#allocation6], 64
        $region52: #{tpu_custom_call.1} parent=39 // pred_fallthru
          _
        // Predicated region
        $region53: #{tpu_custom_call.1} parent=39 // pred_check
          %p266 = pneg %p108
        $region54: #{tpu_custom_call.1} parent=39 // pred_check_branch
          %268 = sbr.rel (%p266) target = $region56
        $region55: #{tpu_custom_call.1} parent=39 // pred_region
          %270 = dma.done [#allocation9], 4096
        $region56: #{tpu_custom_call.1} parent=39 // pred_fallthru
          _
        %s271 = sand.u32 %s32, 1
        %s272 = scalar_lea.sflag [#allocation3], %s271
        %s273 = sand.u32 %s32, 1
        %s274 = smul.addr %s273, 196
        %s275 = scalar_lea.vmem [#allocation2], %s274
        %p276 = pneg %p45
        %p277 = pneg %p42
        %p278 = pneg %p66
        %p279 = pneg %p63
        %p280 = pneg %p87
        %p281 = pneg %p84
        %p282 = pneg %p108
        %p283 = pneg %p105
        %p284 = pneg %p129
        %p285 = pneg %p126
        %p286 = pneg %p155
        %p287 = pneg %p152
        %s288 = sand.u32 %s142, 1
        %s289 = scalar_lea.sflag [#allocation4], %s288
        %s290 = sand.u32 %s142, 1
        %s291 = smul.addr %s290, 392
        %s292 = scalar_lea.vmem [#allocation10], %s291
        %s293 = smul.u32 49, %s24
        %s294 = smul.u32 49, %s24
        %v295 = vld [vmem:[%s250] sm:$0xf]
        %v296 = vld [vmem:[%s250 + $0x4] sm:$0xf]
        %v297 = vld [vmem:[%s250 + $0x8] sm:$0xf]
        %v298 = vld [vmem:[%s250 + $0xc] sm:$0xf]
        %v299 = vld [vmem:[%s250 + $0x10] sm:$0xf]
        %v300 = vld [vmem:[%s250 + $0x14] sm:$0xf]
        %v301 = vld [vmem:[%s250 + $0x18] sm:$0xf]
        %v302 = vld [vmem:[%s250 + $0x1c] sm:$0xf]
        %v303 = vld [vmem:[%s250 + $0x20] sm:$0xf]
        %v304 = vld [vmem:[%s250 + $0x24] sm:$0xf]
        %v305 = vld [vmem:[%s250 + $0x28] sm:$0xf]
        %v306 = vld [vmem:[%s250 + $0x2c] sm:$0xf]
        %v307 = vld [vmem:[%s250 + $0x30] sm:$0xf]
        %v308 = vld [vmem:[%s250 + $0x34] sm:$0xf]
        %v309 = vld [vmem:[%s250 + $0x38] sm:$0xf]
        %v310 = vld [vmem:[%s250 + $0x3c] sm:$0xf]
        %v311 = vld [vmem:[%s250 + $0x40] sm:$0xf]
        %v312 = vld [vmem:[%s250 + $0x44] sm:$0xf]
        %v313 = vld [vmem:[%s250 + $0x48] sm:$0xf]
        %v314 = vld [vmem:[%s250 + $0x4c] sm:$0xf]
        %v315 = vld [vmem:[%s250 + $0x50] sm:$0xf]
        %v316 = vld [vmem:[%s250 + $0x54] sm:$0xf]
        %v317 = vld [vmem:[%s250 + $0x58] sm:$0xf]
        %v318 = vld [vmem:[%s250 + $0x5c] sm:$0xf]
        %v319 = vld [vmem:[%s250 + $0x60] sm:$0xf]
        %v320 = vld [vmem:[%s250 + $0x64] sm:$0xf]
        %v321 = vld [vmem:[%s250 + $0x68] sm:$0xf]
        %v322 = vld [vmem:[%s250 + $0x6c] sm:$0xf]
        %v323 = vld [vmem:[%s250 + $0x70] sm:$0xf]
        %v324 = vld [vmem:[%s250 + $0x74] sm:$0xf]
        %v325 = vld [vmem:[%s250 + $0x78] sm:$0xf]
        %v326 = vld [vmem:[%s250 + $0x7c] sm:$0xf]
        %v327 = vld [vmem:[%s250 + $0x80] sm:$0xf]
        %v328 = vld [vmem:[%s250 + $0x84] sm:$0xf]
        %v329 = vld [vmem:[%s250 + $0x88] sm:$0xf]
        %v330 = vld [vmem:[%s250 + $0x8c] sm:$0xf]
        %v331 = vld [vmem:[%s250 + $0x90] sm:$0xf]
        %v332 = vld [vmem:[%s250 + $0x94] sm:$0xf]
        %v333 = vld [vmem:[%s250 + $0x98] sm:$0xf]
        %v334 = vld [vmem:[%s250 + $0x9c] sm:$0xf]
        %v335 = vld [vmem:[%s250 + $0xa0] sm:$0xf]
        %v336 = vld [vmem:[%s250 + $0xa4] sm:$0xf]
        %v337 = vld [vmem:[%s250 + $0xa8] sm:$0xf]
        %v338 = vld [vmem:[%s250 + $0xac] sm:$0xf]
        %v339 = vld [vmem:[%s250 + $0xb0] sm:$0xf]
        %v340 = vld [vmem:[%s250 + $0xb4] sm:$0xf]
        %v341 = vld [vmem:[%s250 + $0xb8] sm:$0xf]
        %v342 = vld [vmem:[%s250 + $0xbc] sm:$0xf]
        %v343 = vld [vmem:[%s250 + $0xc0] sm:$0xf]
        %v344 = vld [vmem:[#allocation5] sm:$0xff]
        %v345 = vld [vmem:[#allocation5 + $0x8] sm:$0xff]
        %v346 = vld [vmem:[#allocation5 + $0x10] sm:$0xff]
        %v347 = vld [vmem:[#allocation5 + $0x18] sm:$0xff]
        %v348 = vld [vmem:[#allocation5 + $0x20] sm:$0xff]
        %v349 = vld [vmem:[#allocation5 + $0x28] sm:$0xff]
        %v350 = vld [vmem:[#allocation5 + $0x30] sm:$0xff]
        %v351 = vld [vmem:[#allocation5 + $0x38] sm:$0xff]
        %v352 = vld [vmem:[#allocation5 + $0x40] sm:$0xff]
        %v353 = vld [vmem:[#allocation5 + $0x48] sm:$0xff]
        %v354 = vld [vmem:[#allocation5 + $0x50] sm:$0xff]
        %v355 = vld [vmem:[#allocation5 + $0x58] sm:$0xff]
        %v356 = vld [vmem:[#allocation5 + $0x60] sm:$0xff]
        %v357 = vld [vmem:[#allocation5 + $0x68] sm:$0xff]
        %v358 = vld [vmem:[#allocation5 + $0x70] sm:$0xff]
        %v359 = vld [vmem:[#allocation5 + $0x78] sm:$0xff]
        %v360 = vld [vmem:[#allocation5 + $0x80] sm:$0xff]
        %v361 = vld [vmem:[#allocation5 + $0x88] sm:$0xff]
        %v362 = vld [vmem:[#allocation5 + $0x90] sm:$0xff]
        %v363 = vld [vmem:[#allocation5 + $0x98] sm:$0xff]
        %v364 = vld [vmem:[#allocation5 + $0xa0] sm:$0xff]
        %v365 = vld [vmem:[#allocation5 + $0xa8] sm:$0xff]
        %v366 = vld [vmem:[#allocation5 + $0xb0] sm:$0xff]
        %v367 = vld [vmem:[#allocation5 + $0xb8] sm:$0xff]
        %v368 = vld [vmem:[#allocation5 + $0xc0] sm:$0xff]
        %v369 = vld [vmem:[#allocation5 + $0xc8] sm:$0xff]
        %v370 = vld [vmem:[#allocation5 + $0xd0] sm:$0xff]
        %v371 = vld [vmem:[#allocation5 + $0xd8] sm:$0xff]
        %v372 = vld [vmem:[#allocation5 + $0xe0] sm:$0xff]
        %v373 = vld [vmem:[#allocation5 + $0xe8] sm:$0xff]
        %v374 = vld [vmem:[#allocation5 + $0xf0] sm:$0xff]
        %v375 = vld [vmem:[#allocation5 + $0xf8] sm:$0xff]
        %v376 = vld [vmem:[#allocation7] sm:$0xf]
        %v378 = vperm.slane %v376, 0
        %v379 = vperm.slane %v376, 1
        %v380 = vperm.slane %v376, 2
        %v381 = vperm.slane %v376, 3
        %v435 = vunpack.c.l.b16 %v295
        %v436 = vunpack.c.l.b16 %v296
        %v437 = vunpack.c.l.b16 %v297
        %v438 = vunpack.c.l.b16 %v298
        %v439 = vunpack.c.l.b16 %v299
        %v440 = vunpack.c.l.b16 %v300
        %v441 = vunpack.c.l.b16 %v301
        %v442 = vunpack.c.l.b16 %v302
        %v443 = vunpack.c.l.b16 %v303
        %v444 = vunpack.c.l.b16 %v304
        %v445 = vunpack.c.l.b16 %v305
        %v446 = vunpack.c.l.b16 %v306
        %v447 = vunpack.c.l.b16 %v307
        %v448 = vunpack.c.l.b16 %v308
        %v449 = vunpack.c.l.b16 %v309
        %v450 = vunpack.c.l.b16 %v310
        %v451 = vunpack.c.l.b16 %v311
        %v452 = vunpack.c.l.b16 %v312
        %v453 = vunpack.c.l.b16 %v313
        %v454 = vunpack.c.l.b16 %v314
        %v455 = vunpack.c.l.b16 %v315
        %v456 = vunpack.c.l.b16 %v316
        %v457 = vunpack.c.l.b16 %v317
        %v458 = vunpack.c.l.b16 %v318
        %v459 = vunpack.c.l.b16 %v319
        %v460 = vunpack.c.l.b16 %v320
        %v461 = vunpack.c.l.b16 %v321
        %v462 = vunpack.c.l.b16 %v322
        %v463 = vunpack.c.l.b16 %v323
        %v464 = vunpack.c.l.b16 %v324
        %v465 = vunpack.c.l.b16 %v325
        %v466 = vunpack.c.l.b16 %v326
        %v467 = vunpack.c.l.b16 %v327
        %v468 = vunpack.c.l.b16 %v328
        %v469 = vunpack.c.l.b16 %v329
        %v470 = vunpack.c.l.b16 %v330
        %v471 = vunpack.c.l.b16 %v331
        %v472 = vunpack.c.l.b16 %v332
        %v473 = vunpack.c.l.b16 %v333
        %v474 = vunpack.c.l.b16 %v334
        %v475 = vunpack.c.l.b16 %v335
        %v476 = vunpack.c.l.b16 %v336
        %v477 = vunpack.c.l.b16 %v337
        %v478 = vunpack.c.l.b16 %v338
        %v479 = vunpack.c.l.b16 %v339
        %v480 = vunpack.c.l.b16 %v340
        %v481 = vunpack.c.l.b16 %v341
        %v482 = vunpack.c.l.b16 %v342
        %v483 = vunpack.c.l.b16 %v343
        %v484 = vpack.c.b16 %v436, %v435
        %v485 = vpack.c.b16 %v438, %v437
        %v486 = vpack.c.b16 %v440, %v439
        %v487 = vpack.c.b16 %v442, %v441
        %v488 = vpack.c.b16 %v444, %v443
        %v489 = vpack.c.b16 %v446, %v445
        %v490 = vpack.c.b16 %v448, %v447
        %v491 = vpack.c.b16 %v450, %v449
        %v492 = vpack.c.b16 %v452, %v451
        %v493 = vpack.c.b16 %v454, %v453
        %v494 = vpack.c.b16 %v456, %v455
        %v495 = vpack.c.b16 %v458, %v457
        %v496 = vpack.c.b16 %v460, %v459
        %v497 = vpack.c.b16 %v462, %v461
        %v498 = vpack.c.b16 %v464, %v463
        %v499 = vpack.c.b16 %v466, %v465
        %v500 = vpack.c.b16 %v468, %v467
        %v501 = vpack.c.b16 %v470, %v469
        %v502 = vpack.c.b16 %v472, %v471
        %v503 = vpack.c.b16 %v474, %v473
        %v504 = vpack.c.b16 %v476, %v475
        %v505 = vpack.c.b16 %v478, %v477
        %v506 = vpack.c.b16 %v480, %v479
        %v507 = vpack.c.b16 %v482, %v481
        %v508 = vpack.c.b16 %v483, %v483
        %v566 = vunpack.c.l.b16 %v344
        %v567 = vunpack.c.h.b16 %v344
        %v568 = vunpack.c.l.b16 %v345
        %v569 = vunpack.c.h.b16 %v345
        %v570 = vunpack.c.l.b16 %v346
        %v571 = vunpack.c.h.b16 %v346
        %v572 = vunpack.c.l.b16 %v347
        %v573 = vunpack.c.h.b16 %v347
        %v574 = vunpack.c.l.b16 %v348
        %v575 = vunpack.c.h.b16 %v348
        %v576 = vunpack.c.l.b16 %v349
        %v577 = vunpack.c.h.b16 %v349
        %v578 = vunpack.c.l.b16 %v350
        %v579 = vunpack.c.h.b16 %v350
        %v580 = vunpack.c.l.b16 %v351
        %v581 = vunpack.c.h.b16 %v351
        %v582 = vunpack.c.l.b16 %v352
        %v583 = vunpack.c.h.b16 %v352
        %v584 = vunpack.c.l.b16 %v353
        %v585 = vunpack.c.h.b16 %v353
        %v586 = vunpack.c.l.b16 %v354
        %v587 = vunpack.c.h.b16 %v354
        %v588 = vunpack.c.l.b16 %v355
        %v589 = vunpack.c.h.b16 %v355
        %v590 = vunpack.c.l.b16 %v356
        %v591 = vunpack.c.h.b16 %v356
        %v592 = vunpack.c.l.b16 %v357
        %v593 = vunpack.c.h.b16 %v357
        %v594 = vunpack.c.l.b16 %v358
        %v595 = vunpack.c.h.b16 %v358
        %v596 = vunpack.c.l.b16 %v359
        %v597 = vunpack.c.h.b16 %v359
        %v598 = vunpack.c.l.b16 %v360
        %v599 = vunpack.c.h.b16 %v360
        %v600 = vunpack.c.l.b16 %v361
        %v601 = vunpack.c.h.b16 %v361
        %v602 = vunpack.c.l.b16 %v362
        %v603 = vunpack.c.h.b16 %v362
        %v604 = vunpack.c.l.b16 %v363
        %v605 = vunpack.c.h.b16 %v363
        %v606 = vunpack.c.l.b16 %v364
        %v607 = vunpack.c.h.b16 %v364
        %v608 = vunpack.c.l.b16 %v365
        %v609 = vunpack.c.h.b16 %v365
        %v610 = vunpack.c.l.b16 %v366
        %v611 = vunpack.c.h.b16 %v366
        %v612 = vunpack.c.l.b16 %v367
        %v613 = vunpack.c.h.b16 %v367
        %v614 = vunpack.c.l.b16 %v368
        %v615 = vunpack.c.h.b16 %v368
        %v616 = vunpack.c.l.b16 %v369
        %v617 = vunpack.c.h.b16 %v369
        %v618 = vunpack.c.l.b16 %v370
        %v619 = vunpack.c.h.b16 %v370
        %v620 = vunpack.c.l.b16 %v371
        %v621 = vunpack.c.h.b16 %v371
        %v622 = vunpack.c.l.b16 %v372
        %v623 = vunpack.c.h.b16 %v372
        %v624 = vunpack.c.l.b16 %v373
        %v625 = vunpack.c.h.b16 %v373
        %v626 = vunpack.c.l.b16 %v374
        %v627 = vunpack.c.h.b16 %v374
        %v628 = vunpack.c.l.b16 %v375
        %v629 = vunpack.c.h.b16 %v375
        %v630 = vpack.c.b16 %v570, %v566
        %v631 = vpack.c.b16 %v571, %v567
        %v632 = vpack.c.b16 %v572, %v568
        %v633 = vpack.c.b16 %v573, %v569
        %v634 = vpack.c.b16 %v578, %v574
        %v635 = vpack.c.b16 %v579, %v575
        %v636 = vpack.c.b16 %v580, %v576
        %v637 = vpack.c.b16 %v581, %v577
        %v638 = vpack.c.b16 %v586, %v582
        %v639 = vpack.c.b16 %v587, %v583
        %v640 = vpack.c.b16 %v588, %v584
        %v641 = vpack.c.b16 %v589, %v585
        %v642 = vpack.c.b16 %v594, %v590
        %v643 = vpack.c.b16 %v595, %v591
        %v644 = vpack.c.b16 %v596, %v592
        %v645 = vpack.c.b16 %v597, %v593
        %v646 = vpack.c.b16 %v602, %v598
        %v647 = vpack.c.b16 %v603, %v599
        %v648 = vpack.c.b16 %v604, %v600
        %v649 = vpack.c.b16 %v605, %v601
        %v650 = vpack.c.b16 %v610, %v606
        %v651 = vpack.c.b16 %v611, %v607
        %v652 = vpack.c.b16 %v612, %v608
        %v653 = vpack.c.b16 %v613, %v609
        %v654 = vpack.c.b16 %v618, %v614
        %v655 = vpack.c.b16 %v619, %v615
        %v656 = vpack.c.b16 %v620, %v616
        %v657 = vpack.c.b16 %v621, %v617
        %v658 = vpack.c.b16 %v626, %v622
        %v659 = vpack.c.b16 %v627, %v623
        %v660 = vpack.c.b16 %v628, %v624
        %v661 = vpack.c.b16 %v629, %v625
        %694 = vmatpush.bf16.msra.mxu0 %v658
        %695 = vmatpush.bf16.msra.mxu0 %v654
        %696 = vmatpush.bf16.msra.mxu0 %v650
        %697 = vmatpush.bf16.msra.mxu0 %v646
        %698 = vmatpush.bf16.msra.mxu0 %v642
        %699 = vmatpush.bf16.msra.mxu0 %v638
        %700 = vmatpush.bf16.msra.mxu0 %v634
        %701 = vmatpush.bf16.msra.mxu0 %v630
        %702 = vmatmul.bf16.gmra.mxu0 %v484
        %v703 = vpop.f32.mrf.mxu0
        %v704 = vadd.f32 %v378, %v703
        %v705 = vpop.f32.mrf.mxu0
        %v706 = vadd.f32 %v378, %v705
        %707 = vmatmul.bf16.gmra.mxu0 %v485
        %v708 = vpop.f32.mrf.mxu0
        %v709 = vadd.f32 %v378, %v708
        %v710 = vpop.f32.mrf.mxu0
        %v711 = vadd.f32 %v378, %v710
        %712 = vmatmul.bf16.gmra.mxu0 %v486
        %v713 = vpop.f32.mrf.mxu0
        %v714 = vadd.f32 %v378, %v713
        %v715 = vpop.f32.mrf.mxu0
        %v716 = vadd.f32 %v378, %v715
        %717 = vmatmul.bf16.gmra.mxu0 %v487
        %v718 = vpop.f32.mrf.mxu0
        %v719 = vadd.f32 %v378, %v718
        %v720 = vpop.f32.mrf.mxu0
        %v721 = vadd.f32 %v378, %v720
        %722 = vmatmul.bf16.gmra.mxu0 %v488
        %v723 = vpop.f32.mrf.mxu0
        %v724 = vadd.f32 %v378, %v723
        %v725 = vpop.f32.mrf.mxu0
        %v726 = vadd.f32 %v378, %v725
        %727 = vmatmul.bf16.gmra.mxu0 %v489
        %v728 = vpop.f32.mrf.mxu0
        %v729 = vadd.f32 %v378, %v728
        %v730 = vpop.f32.mrf.mxu0
        %v731 = vadd.f32 %v378, %v730
        %732 = vmatmul.bf16.gmra.mxu0 %v490
        %v733 = vpop.f32.mrf.mxu0
        %v734 = vadd.f32 %v378, %v733
        %v735 = vpop.f32.mrf.mxu0
        %v736 = vadd.f32 %v378, %v735
        %737 = vmatmul.bf16.gmra.mxu0 %v491
        %v738 = vpop.f32.mrf.mxu0
        %v739 = vadd.f32 %v378, %v738
        %v740 = vpop.f32.mrf.mxu0
        %v741 = vadd.f32 %v378, %v740
        %742 = vmatmul.bf16.gmra.mxu0 %v492
        %v743 = vpop.f32.mrf.mxu0
        %v744 = vadd.f32 %v378, %v743
        %v745 = vpop.f32.mrf.mxu0
        %v746 = vadd.f32 %v378, %v745
        %747 = vmatmul.bf16.gmra.mxu0 %v493
        %v748 = vpop.f32.mrf.mxu0
        %v749 = vadd.f32 %v378, %v748
        %v750 = vpop.f32.mrf.mxu0
        %v751 = vadd.f32 %v378, %v750
        %752 = vmatmul.bf16.gmra.mxu0 %v494
        %v753 = vpop.f32.mrf.mxu0
        %v754 = vadd.f32 %v378, %v753
        %v755 = vpop.f32.mrf.mxu0
        %v756 = vadd.f32 %v378, %v755
        %757 = vmatmul.bf16.gmra.mxu0 %v495
        %v758 = vpop.f32.mrf.mxu0
        %v759 = vadd.f32 %v378, %v758
        %v760 = vpop.f32.mrf.mxu0
        %v761 = vadd.f32 %v378, %v760
        %762 = vmatmul.bf16.gmra.mxu0 %v496
        %v763 = vpop.f32.mrf.mxu0
        %v764 = vadd.f32 %v378, %v763
        %v765 = vpop.f32.mrf.mxu0
        %v766 = vadd.f32 %v378, %v765
        %767 = vmatmul.bf16.gmra.mxu0 %v497
        %v768 = vpop.f32.mrf.mxu0
        %v769 = vadd.f32 %v378, %v768
        %v770 = vpop.f32.mrf.mxu0
        %v771 = vadd.f32 %v378, %v770
        %772 = vmatmul.bf16.gmra.mxu0 %v498
        %v773 = vpop.f32.mrf.mxu0
        %v774 = vadd.f32 %v378, %v773
        %v775 = vpop.f32.mrf.mxu0
        %v776 = vadd.f32 %v378, %v775
        %777 = vmatmul.bf16.gmra.mxu0 %v499
        %v778 = vpop.f32.mrf.mxu0
        %v779 = vadd.f32 %v378, %v778
        %v780 = vpop.f32.mrf.mxu0
        %v781 = vadd.f32 %v378, %v780
        %782 = vmatmul.bf16.gmra.mxu0 %v500
        %v783 = vpop.f32.mrf.mxu0
        %v784 = vadd.f32 %v378, %v783
        %v785 = vpop.f32.mrf.mxu0
        %v786 = vadd.f32 %v378, %v785
        %787 = vmatmul.bf16.gmra.mxu0 %v501
        %v788 = vpop.f32.mrf.mxu0
        %v789 = vadd.f32 %v378, %v788
        %v790 = vpop.f32.mrf.mxu0
        %v791 = vadd.f32 %v378, %v790
        %792 = vmatmul.bf16.gmra.mxu0 %v502
        %v793 = vpop.f32.mrf.mxu0
        %v794 = vadd.f32 %v378, %v793
        %v795 = vpop.f32.mrf.mxu0
        %v796 = vadd.f32 %v378, %v795
        %797 = vmatmul.bf16.gmra.mxu0 %v503
        %v798 = vpop.f32.mrf.mxu0
        %v799 = vadd.f32 %v378, %v798
        %v800 = vpop.f32.mrf.mxu0
        %v801 = vadd.f32 %v378, %v800
        %802 = vmatmul.bf16.gmra.mxu0 %v504
        %v803 = vpop.f32.mrf.mxu0
        %v804 = vadd.f32 %v378, %v803
        %v805 = vpop.f32.mrf.mxu0
        %v806 = vadd.f32 %v378, %v805
        %807 = vmatmul.bf16.gmra.mxu0 %v505
        %v808 = vpop.f32.mrf.mxu0
        %v809 = vadd.f32 %v378, %v808
        %v810 = vpop.f32.mrf.mxu0
        %v811 = vadd.f32 %v378, %v810
        %812 = vmatmul.bf16.gmra.mxu0 %v506
        %v813 = vpop.f32.mrf.mxu0
        %v814 = vadd.f32 %v378, %v813
        %v815 = vpop.f32.mrf.mxu0
        %v816 = vadd.f32 %v378, %v815
        %817 = vmatmul.bf16.gmra.mxu0 %v507
        %v818 = vpop.f32.mrf.mxu0
        %v819 = vadd.f32 %v378, %v818
        %v820 = vpop.f32.mrf.mxu0
        %v821 = vadd.f32 %v378, %v820
        %822 = vmatmul.bf16.gmra.mxu0 %v508
        %v823 = vpop.f32.mrf.mxu0
        %v824 = vadd.f32 %v378, %v823
        %v825 = vpop.f32.mrf.mxu0
        %826 = vdwg.mxu0
        %827 = vmatpush.bf16.msra.mxu0 %v659
        %828 = vmatpush.bf16.msra.mxu0 %v655
        %829 = vmatpush.bf16.msra.mxu0 %v651
        %830 = vmatpush.bf16.msra.mxu0 %v647
        %831 = vmatpush.bf16.msra.mxu0 %v643
        %832 = vmatpush.bf16.msra.mxu0 %v639
        %833 = vmatpush.bf16.msra.mxu0 %v635
        %834 = vmatpush.bf16.msra.mxu0 %v631
        %835 = vmatmul.bf16.gmra.mxu0 %v484
        %v836 = vpop.f32.mrf.mxu0
        %v837 = vadd.f32 %v379, %v836
        %v838 = vpop.f32.mrf.mxu0
        %v839 = vadd.f32 %v379, %v838
        %840 = vmatmul.bf16.gmra.mxu0 %v485
        %v841 = vpop.f32.mrf.mxu0
        %v842 = vadd.f32 %v379, %v841
        %v843 = vpop.f32.mrf.mxu0
        %v844 = vadd.f32 %v379, %v843
        %845 = vmatmul.bf16.gmra.mxu0 %v486
        %v846 = vpop.f32.mrf.mxu0
        %v847 = vadd.f32 %v379, %v846
        %v848 = vpop.f32.mrf.mxu0
        %v849 = vadd.f32 %v379, %v848
        %850 = vmatmul.bf16.gmra.mxu0 %v487
        %v851 = vpop.f32.mrf.mxu0
        %v852 = vadd.f32 %v379, %v851
        %v853 = vpop.f32.mrf.mxu0
        %v854 = vadd.f32 %v379, %v853
        %855 = vmatmul.bf16.gmra.mxu0 %v488
        %v856 = vpop.f32.mrf.mxu0
        %v857 = vadd.f32 %v379, %v856
        %v858 = vpop.f32.mrf.mxu0
        %v859 = vadd.f32 %v379, %v858
        %860 = vmatmul.bf16.gmra.mxu0 %v489
        %v861 = vpop.f32.mrf.mxu0
        %v862 = vadd.f32 %v379, %v861
        %v863 = vpop.f32.mrf.mxu0
        %v864 = vadd.f32 %v379, %v863
        %865 = vmatmul.bf16.gmra.mxu0 %v490
        %v866 = vpop.f32.mrf.mxu0
        %v867 = vadd.f32 %v379, %v866
        %v868 = vpop.f32.mrf.mxu0
        %v869 = vadd.f32 %v379, %v868
        %870 = vmatmul.bf16.gmra.mxu0 %v491
        %v871 = vpop.f32.mrf.mxu0
        %v872 = vadd.f32 %v379, %v871
        %v873 = vpop.f32.mrf.mxu0
        %v874 = vadd.f32 %v379, %v873
        %875 = vmatmul.bf16.gmra.mxu0 %v492
        %v876 = vpop.f32.mrf.mxu0
        %v877 = vadd.f32 %v379, %v876
        %v878 = vpop.f32.mrf.mxu0
        %v879 = vadd.f32 %v379, %v878
        %880 = vmatmul.bf16.gmra.mxu0 %v493
        %v881 = vpop.f32.mrf.mxu0
        %v882 = vadd.f32 %v379, %v881
        %v883 = vpop.f32.mrf.mxu0
        %v884 = vadd.f32 %v379, %v883
        %885 = vmatmul.bf16.gmra.mxu0 %v494
        %v886 = vpop.f32.mrf.mxu0
        %v887 = vadd.f32 %v379, %v886
        %v888 = vpop.f32.mrf.mxu0
        %v889 = vadd.f32 %v379, %v888
        %890 = vmatmul.bf16.gmra.mxu0 %v495
        %v891 = vpop.f32.mrf.mxu0
        %v892 = vadd.f32 %v379, %v891
        %v893 = vpop.f32.mrf.mxu0
        %v894 = vadd.f32 %v379, %v893
        %895 = vmatmul.bf16.gmra.mxu0 %v496
        %v896 = vpop.f32.mrf.mxu0
        %v897 = vadd.f32 %v379, %v896
        %v898 = vpop.f32.mrf.mxu0
        %v899 = vadd.f32 %v379, %v898
        %900 = vmatmul.bf16.gmra.mxu0 %v497
        %v901 = vpop.f32.mrf.mxu0
        %v902 = vadd.f32 %v379, %v901
        %v903 = vpop.f32.mrf.mxu0
        %v904 = vadd.f32 %v379, %v903
        %905 = vmatmul.bf16.gmra.mxu0 %v498
        %v906 = vpop.f32.mrf.mxu0
        %v907 = vadd.f32 %v379, %v906
        %v908 = vpop.f32.mrf.mxu0
        %v909 = vadd.f32 %v379, %v908
        %910 = vmatmul.bf16.gmra.mxu0 %v499
        %v911 = vpop.f32.mrf.mxu0
        %v912 = vadd.f32 %v379, %v911
        %v913 = vpop.f32.mrf.mxu0
        %v914 = vadd.f32 %v379, %v913
        %915 = vmatmul.bf16.gmra.mxu0 %v500
        %v916 = vpop.f32.mrf.mxu0
        %v917 = vadd.f32 %v379, %v916
        %v918 = vpop.f32.mrf.mxu0
        %v919 = vadd.f32 %v379, %v918
        %920 = vmatmul.bf16.gmra.mxu0 %v501
        %v921 = vpop.f32.mrf.mxu0
        %v922 = vadd.f32 %v379, %v921
        %v923 = vpop.f32.mrf.mxu0
        %v924 = vadd.f32 %v379, %v923
        %925 = vmatmul.bf16.gmra.mxu0 %v502
        %v926 = vpop.f32.mrf.mxu0
        %v927 = vadd.f32 %v379, %v926
        %v928 = vpop.f32.mrf.mxu0
        %v929 = vadd.f32 %v379, %v928
        %930 = vmatmul.bf16.gmra.mxu0 %v503
        %v931 = vpop.f32.mrf.mxu0
        %v932 = vadd.f32 %v379, %v931
        %v933 = vpop.f32.mrf.mxu0
        %v934 = vadd.f32 %v379, %v933
        %935 = vmatmul.bf16.gmra.mxu0 %v504
        %v936 = vpop.f32.mrf.mxu0
        %v937 = vadd.f32 %v379, %v936
        %v938 = vpop.f32.mrf.mxu0
        %v939 = vadd.f32 %v379, %v938
        %940 = vmatmul.bf16.gmra.mxu0 %v505
        %v941 = vpop.f32.mrf.mxu0
        %v942 = vadd.f32 %v379, %v941
        %v943 = vpop.f32.mrf.mxu0
        %v944 = vadd.f32 %v379, %v943
        %945 = vmatmul.bf16.gmra.mxu0 %v506
        %v946 = vpop.f32.mrf.mxu0
        %v947 = vadd.f32 %v379, %v946
        %v948 = vpop.f32.mrf.mxu0
        %v949 = vadd.f32 %v379, %v948
        %950 = vmatmul.bf16.gmra.mxu0 %v507
        %v951 = vpop.f32.mrf.mxu0
        %v952 = vadd.f32 %v379, %v951
        %v953 = vpop.f32.mrf.mxu0
        %v954 = vadd.f32 %v379, %v953
        %955 = vmatmul.bf16.gmra.mxu0 %v508
        %v956 = vpop.f32.mrf.mxu0
        %v957 = vadd.f32 %v379, %v956
        %v958 = vpop.f32.mrf.mxu0
        %959 = vdwg.mxu0
        %960 = vmatpush.bf16.msra.mxu0 %v660
        %961 = vmatpush.bf16.msra.mxu0 %v656
        %962 = vmatpush.bf16.msra.mxu0 %v652
        %963 = vmatpush.bf16.msra.mxu0 %v648
        %964 = vmatpush.bf16.msra.mxu0 %v644
        %965 = vmatpush.bf16.msra.mxu0 %v640
        %966 = vmatpush.bf16.msra.mxu0 %v636
        %967 = vmatpush.bf16.msra.mxu0 %v632
        %968 = vmatmul.bf16.gmra.mxu0 %v484
        %v969 = vpop.f32.mrf.mxu0
        %v970 = vadd.f32 %v380, %v969
        %v971 = vpop.f32.mrf.mxu0
        %v972 = vadd.f32 %v380, %v971
        %973 = vmatmul.bf16.gmra.mxu0 %v485
        %v974 = vpop.f32.mrf.mxu0
        %v975 = vadd.f32 %v380, %v974
        %v976 = vpop.f32.mrf.mxu0
        %v977 = vadd.f32 %v380, %v976
        %978 = vmatmul.bf16.gmra.mxu0 %v486
        %v979 = vpop.f32.mrf.mxu0
        %v980 = vadd.f32 %v380, %v979
        %v981 = vpop.f32.mrf.mxu0
        %v982 = vadd.f32 %v380, %v981
        %983 = vmatmul.bf16.gmra.mxu0 %v487
        %v984 = vpop.f32.mrf.mxu0
        %v985 = vadd.f32 %v380, %v984
        %v986 = vpop.f32.mrf.mxu0
        %v987 = vadd.f32 %v380, %v986
        %988 = vmatmul.bf16.gmra.mxu0 %v488
        %v989 = vpop.f32.mrf.mxu0
        %v990 = vadd.f32 %v380, %v989
        %v991 = vpop.f32.mrf.mxu0
        %v992 = vadd.f32 %v380, %v991
        %993 = vmatmul.bf16.gmra.mxu0 %v489
        %v994 = vpop.f32.mrf.mxu0
        %v995 = vadd.f32 %v380, %v994
        %v996 = vpop.f32.mrf.mxu0
        %v997 = vadd.f32 %v380, %v996
        %998 = vmatmul.bf16.gmra.mxu0 %v490
        %v999 = vpop.f32.mrf.mxu0
        %v1000 = vadd.f32 %v380, %v999
        %v1001 = vpop.f32.mrf.mxu0
        %v1002 = vadd.f32 %v380, %v1001
        %1003 = vmatmul.bf16.gmra.mxu0 %v491
        %v1004 = vpop.f32.mrf.mxu0
        %v1005 = vadd.f32 %v380, %v1004
        %v1006 = vpop.f32.mrf.mxu0
        %v1007 = vadd.f32 %v380, %v1006
        %1008 = vmatmul.bf16.gmra.mxu0 %v492
        %v1009 = vpop.f32.mrf.mxu0
        %v1010 = vadd.f32 %v380, %v1009
        %v1011 = vpop.f32.mrf.mxu0
        %v1012 = vadd.f32 %v380, %v1011
        %1013 = vmatmul.bf16.gmra.mxu0 %v493
        %v1014 = vpop.f32.mrf.mxu0
        %v1015 = vadd.f32 %v380, %v1014
        %v1016 = vpop.f32.mrf.mxu0
        %v1017 = vadd.f32 %v380, %v1016
        %1018 = vmatmul.bf16.gmra.mxu0 %v494
        %v1019 = vpop.f32.mrf.mxu0
        %v1020 = vadd.f32 %v380, %v1019
        %v1021 = vpop.f32.mrf.mxu0
        %v1022 = vadd.f32 %v380, %v1021
        %1023 = vmatmul.bf16.gmra.mxu0 %v495
        %v1024 = vpop.f32.mrf.mxu0
        %v1025 = vadd.f32 %v380, %v1024
        %v1026 = vpop.f32.mrf.mxu0
        %v1027 = vadd.f32 %v380, %v1026
        %1028 = vmatmul.bf16.gmra.mxu0 %v496
        %v1029 = vpop.f32.mrf.mxu0
        %v1030 = vadd.f32 %v380, %v1029
        %v1031 = vpop.f32.mrf.mxu0
        %v1032 = vadd.f32 %v380, %v1031
        %1033 = vmatmul.bf16.gmra.mxu0 %v497
        %v1034 = vpop.f32.mrf.mxu0
        %v1035 = vadd.f32 %v380, %v1034
        %v1036 = vpop.f32.mrf.mxu0
        %v1037 = vadd.f32 %v380, %v1036
        %1038 = vmatmul.bf16.gmra.mxu0 %v498
        %v1039 = vpop.f32.mrf.mxu0
        %v1040 = vadd.f32 %v380, %v1039
        %v1041 = vpop.f32.mrf.mxu0
        %v1042 = vadd.f32 %v380, %v1041
        %1043 = vmatmul.bf16.gmra.mxu0 %v499
        %v1044 = vpop.f32.mrf.mxu0
        %v1045 = vadd.f32 %v380, %v1044
        %v1046 = vpop.f32.mrf.mxu0
        %v1047 = vadd.f32 %v380, %v1046
        %1048 = vmatmul.bf16.gmra.mxu0 %v500
        %v1049 = vpop.f32.mrf.mxu0
        %v1050 = vadd.f32 %v380, %v1049
        %v1051 = vpop.f32.mrf.mxu0
        %v1052 = vadd.f32 %v380, %v1051
        %1053 = vmatmul.bf16.gmra.mxu0 %v501
        %v1054 = vpop.f32.mrf.mxu0
        %v1055 = vadd.f32 %v380, %v1054
        %v1056 = vpop.f32.mrf.mxu0
        %v1057 = vadd.f32 %v380, %v1056
        %1058 = vmatmul.bf16.gmra.mxu0 %v502
        %v1059 = vpop.f32.mrf.mxu0
        %v1060 = vadd.f32 %v380, %v1059
        %v1061 = vpop.f32.mrf.mxu0
        %v1062 = vadd.f32 %v380, %v1061
        %1063 = vmatmul.bf16.gmra.mxu0 %v503
        %v1064 = vpop.f32.mrf.mxu0
        %v1065 = vadd.f32 %v380, %v1064
        %v1066 = vpop.f32.mrf.mxu0
        %v1067 = vadd.f32 %v380, %v1066
        %1068 = vmatmul.bf16.gmra.mxu0 %v504
        %v1069 = vpop.f32.mrf.mxu0
        %v1070 = vadd.f32 %v380, %v1069
        %v1071 = vpop.f32.mrf.mxu0
        %v1072 = vadd.f32 %v380, %v1071
        %1073 = vmatmul.bf16.gmra.mxu0 %v505
        %v1074 = vpop.f32.mrf.mxu0
        %v1075 = vadd.f32 %v380, %v1074
        %v1076 = vpop.f32.mrf.mxu0
        %v1077 = vadd.f32 %v380, %v1076
        %1078 = vmatmul.bf16.gmra.mxu0 %v506
        %v1079 = vpop.f32.mrf.mxu0
        %v1080 = vadd.f32 %v380, %v1079
        %v1081 = vpop.f32.mrf.mxu0
        %v1082 = vadd.f32 %v380, %v1081
        %1083 = vmatmul.bf16.gmra.mxu0 %v507
        %v1084 = vpop.f32.mrf.mxu0
        %v1085 = vadd.f32 %v380, %v1084
        %v1086 = vpop.f32.mrf.mxu0
        %v1087 = vadd.f32 %v380, %v1086
        %1088 = vmatmul.bf16.gmra.mxu0 %v508
        %v1089 = vpop.f32.mrf.mxu0
        %v1090 = vadd.f32 %v380, %v1089
        %v1091 = vpop.f32.mrf.mxu0
        %1092 = vdwg.mxu0
        %1093 = vmatpush.bf16.msra.mxu0 %v661
        %1094 = vmatpush.bf16.msra.mxu0 %v657
        %1095 = vmatpush.bf16.msra.mxu0 %v653
        %1096 = vmatpush.bf16.msra.mxu0 %v649
        %1097 = vmatpush.bf16.msra.mxu0 %v645
        %1098 = vmatpush.bf16.msra.mxu0 %v641
        %1099 = vmatpush.bf16.msra.mxu0 %v637
        %1100 = vmatpush.bf16.msra.mxu0 %v633
        %1101 = vmatmul.bf16.gmra.mxu0 %v484
        %v1102 = vpop.f32.mrf.mxu0
        %v1103 = vadd.f32 %v381, %v1102
        %v1104 = vpop.f32.mrf.mxu0
        %v1105 = vadd.f32 %v381, %v1104
        %1106 = vmatmul.bf16.gmra.mxu0 %v485
        %v1107 = vpop.f32.mrf.mxu0
        %v1108 = vadd.f32 %v381, %v1107
        %v1109 = vpop.f32.mrf.mxu0
        %v1110 = vadd.f32 %v381, %v1109
        %1111 = vmatmul.bf16.gmra.mxu0 %v486
        %v1112 = vpop.f32.mrf.mxu0
        %v1113 = vadd.f32 %v381, %v1112
        %v1114 = vpop.f32.mrf.mxu0
        %v1115 = vadd.f32 %v381, %v1114
        %1116 = vmatmul.bf16.gmra.mxu0 %v487
        %v1117 = vpop.f32.mrf.mxu0
        %v1118 = vadd.f32 %v381, %v1117
        %v1119 = vpop.f32.mrf.mxu0
        %v1120 = vadd.f32 %v381, %v1119
        %1121 = vmatmul.bf16.gmra.mxu0 %v488
        %v1122 = vpop.f32.mrf.mxu0
        %v1123 = vadd.f32 %v381, %v1122
        %v1124 = vpop.f32.mrf.mxu0
        %v1125 = vadd.f32 %v381, %v1124
        %1126 = vmatmul.bf16.gmra.mxu0 %v489
        %v1127 = vpop.f32.mrf.mxu0
        %v1128 = vadd.f32 %v381, %v1127
        %v1129 = vpop.f32.mrf.mxu0
        %v1130 = vadd.f32 %v381, %v1129
        %1131 = vmatmul.bf16.gmra.mxu0 %v490
        %v1132 = vpop.f32.mrf.mxu0
        %v1133 = vadd.f32 %v381, %v1132
        %v1134 = vpop.f32.mrf.mxu0
        %v1135 = vadd.f32 %v381, %v1134
        %1136 = vmatmul.bf16.gmra.mxu0 %v491
        %v1137 = vpop.f32.mrf.mxu0
        %v1138 = vadd.f32 %v381, %v1137
        %v1139 = vpop.f32.mrf.mxu0
        %v1140 = vadd.f32 %v381, %v1139
        %1141 = vmatmul.bf16.gmra.mxu0 %v492
        %v1142 = vpop.f32.mrf.mxu0
        %v1143 = vadd.f32 %v381, %v1142
        %v1144 = vpop.f32.mrf.mxu0
        %v1145 = vadd.f32 %v381, %v1144
        %1146 = vmatmul.bf16.gmra.mxu0 %v493
        %v1147 = vpop.f32.mrf.mxu0
        %v1148 = vadd.f32 %v381, %v1147
        %v1149 = vpop.f32.mrf.mxu0
        %v1150 = vadd.f32 %v381, %v1149
        %1151 = vmatmul.bf16.gmra.mxu0 %v494
        %v1152 = vpop.f32.mrf.mxu0
        %v1153 = vadd.f32 %v381, %v1152
        %v1154 = vpop.f32.mrf.mxu0
        %v1155 = vadd.f32 %v381, %v1154
        %1156 = vmatmul.bf16.gmra.mxu0 %v495
        %v1157 = vpop.f32.mrf.mxu0
        %v1158 = vadd.f32 %v381, %v1157
        %v1159 = vpop.f32.mrf.mxu0
        %v1160 = vadd.f32 %v381, %v1159
        %1161 = vmatmul.bf16.gmra.mxu0 %v496
        %v1162 = vpop.f32.mrf.mxu0
        %v1163 = vadd.f32 %v381, %v1162
        %v1164 = vpop.f32.mrf.mxu0
        %v1165 = vadd.f32 %v381, %v1164
        %1166 = vmatmul.bf16.gmra.mxu0 %v497
        %v1167 = vpop.f32.mrf.mxu0
        %v1168 = vadd.f32 %v381, %v1167
        %v1169 = vpop.f32.mrf.mxu0
        %v1170 = vadd.f32 %v381, %v1169
        %1171 = vmatmul.bf16.gmra.mxu0 %v498
        %v1172 = vpop.f32.mrf.mxu0
        %v1173 = vadd.f32 %v381, %v1172
        %v1174 = vpop.f32.mrf.mxu0
        %v1175 = vadd.f32 %v381, %v1174
        %1176 = vmatmul.bf16.gmra.mxu0 %v499
        %v1177 = vpop.f32.mrf.mxu0
        %v1178 = vadd.f32 %v381, %v1177
        %v1179 = vpop.f32.mrf.mxu0
        %v1180 = vadd.f32 %v381, %v1179
        %1181 = vmatmul.bf16.gmra.mxu0 %v500
        %v1182 = vpop.f32.mrf.mxu0
        %v1183 = vadd.f32 %v381, %v1182
        %v1184 = vpop.f32.mrf.mxu0
        %v1185 = vadd.f32 %v381, %v1184
        %1186 = vmatmul.bf16.gmra.mxu0 %v501
        %v1187 = vpop.f32.mrf.mxu0
        %v1188 = vadd.f32 %v381, %v1187
        %v1189 = vpop.f32.mrf.mxu0
        %v1190 = vadd.f32 %v381, %v1189
        %1191 = vmatmul.bf16.gmra.mxu0 %v502
        %v1192 = vpop.f32.mrf.mxu0
        %v1193 = vadd.f32 %v381, %v1192
        %v1194 = vpop.f32.mrf.mxu0
        %v1195 = vadd.f32 %v381, %v1194
        %1196 = vmatmul.bf16.gmra.mxu0 %v503
        %v1197 = vpop.f32.mrf.mxu0
        %v1198 = vadd.f32 %v381, %v1197
        %v1199 = vpop.f32.mrf.mxu0
        %v1200 = vadd.f32 %v381, %v1199
        %1201 = vmatmul.bf16.gmra.mxu0 %v504
        %v1202 = vpop.f32.mrf.mxu0
        %v1203 = vadd.f32 %v381, %v1202
        %v1204 = vpop.f32.mrf.mxu0
        %v1205 = vadd.f32 %v381, %v1204
        %1206 = vmatmul.bf16.gmra.mxu0 %v505
        %v1207 = vpop.f32.mrf.mxu0
        %v1208 = vadd.f32 %v381, %v1207
        %v1209 = vpop.f32.mrf.mxu0
        %v1210 = vadd.f32 %v381, %v1209
        %1211 = vmatmul.bf16.gmra.mxu0 %v506
        %v1212 = vpop.f32.mrf.mxu0
        %v1213 = vadd.f32 %v381, %v1212
        %v1214 = vpop.f32.mrf.mxu0
        %v1215 = vadd.f32 %v381, %v1214
        %1216 = vmatmul.bf16.gmra.mxu0 %v507
        %v1217 = vpop.f32.mrf.mxu0
        %v1218 = vadd.f32 %v381, %v1217
        %v1219 = vpop.f32.mrf.mxu0
        %v1220 = vadd.f32 %v381, %v1219
        %1221 = vmatmul.bf16.gmra.mxu0 %v508
        %v1222 = vpop.f32.mrf.mxu0
        %v1223 = vadd.f32 %v381, %v1222
        %v1224 = vpop.f32.mrf.mxu0
        %1225 = vdwg.mxu0
        %v1226 = vmax.f32 %v704, 0.0
        %v1227 = vmax.f32 %v837, 0.0
        %v1228 = vmax.f32 %v970, 0.0
        %v1229 = vmax.f32 %v1103, 0.0
        %v1230 = vmax.f32 %v706, 0.0
        %v1231 = vmax.f32 %v839, 0.0
        %v1232 = vmax.f32 %v972, 0.0
        %v1233 = vmax.f32 %v1105, 0.0
        %v1234 = vmax.f32 %v709, 0.0
        %v1235 = vmax.f32 %v842, 0.0
        %v1236 = vmax.f32 %v975, 0.0
        %v1237 = vmax.f32 %v1108, 0.0
        %v1238 = vmax.f32 %v711, 0.0
        %v1239 = vmax.f32 %v844, 0.0
        %v1240 = vmax.f32 %v977, 0.0
        %v1241 = vmax.f32 %v1110, 0.0
        %v1242 = vmax.f32 %v714, 0.0
        %v1243 = vmax.f32 %v847, 0.0
        %v1244 = vmax.f32 %v980, 0.0
        %v1245 = vmax.f32 %v1113, 0.0
        %v1246 = vmax.f32 %v716, 0.0
        %v1247 = vmax.f32 %v849, 0.0
        %v1248 = vmax.f32 %v982, 0.0
        %v1249 = vmax.f32 %v1115, 0.0
        %v1250 = vmax.f32 %v719, 0.0
        %v1251 = vmax.f32 %v852, 0.0
        %v1252 = vmax.f32 %v985, 0.0
        %v1253 = vmax.f32 %v1118, 0.0
        %v1254 = vmax.f32 %v721, 0.0
        %v1255 = vmax.f32 %v854, 0.0
        %v1256 = vmax.f32 %v987, 0.0
        %v1257 = vmax.f32 %v1120, 0.0
        %v1258 = vmax.f32 %v724, 0.0
        %v1259 = vmax.f32 %v857, 0.0
        %v1260 = vmax.f32 %v990, 0.0
        %v1261 = vmax.f32 %v1123, 0.0
        %v1262 = vmax.f32 %v726, 0.0
        %v1263 = vmax.f32 %v859, 0.0
        %v1264 = vmax.f32 %v992, 0.0
        %v1265 = vmax.f32 %v1125, 0.0
        %v1266 = vmax.f32 %v729, 0.0
        %v1267 = vmax.f32 %v862, 0.0
        %v1268 = vmax.f32 %v995, 0.0
        %v1269 = vmax.f32 %v1128, 0.0
        %v1270 = vmax.f32 %v731, 0.0
        %v1271 = vmax.f32 %v864, 0.0
        %v1272 = vmax.f32 %v997, 0.0
        %v1273 = vmax.f32 %v1130, 0.0
        %v1274 = vmax.f32 %v734, 0.0
        %v1275 = vmax.f32 %v867, 0.0
        %v1276 = vmax.f32 %v1000, 0.0
        %v1277 = vmax.f32 %v1133, 0.0
        %v1278 = vmax.f32 %v736, 0.0
        %v1279 = vmax.f32 %v869, 0.0
        %v1280 = vmax.f32 %v1002, 0.0
        %v1281 = vmax.f32 %v1135, 0.0
        %v1282 = vmax.f32 %v739, 0.0
        %v1283 = vmax.f32 %v872, 0.0
        %v1284 = vmax.f32 %v1005, 0.0
        %v1285 = vmax.f32 %v1138, 0.0
        %v1286 = vmax.f32 %v741, 0.0
        %v1287 = vmax.f32 %v874, 0.0
        %v1288 = vmax.f32 %v1007, 0.0
        %v1289 = vmax.f32 %v1140, 0.0
        %v1290 = vmax.f32 %v744, 0.0
        %v1291 = vmax.f32 %v877, 0.0
        %v1292 = vmax.f32 %v1010, 0.0
        %v1293 = vmax.f32 %v1143, 0.0
        %v1294 = vmax.f32 %v746, 0.0
        %v1295 = vmax.f32 %v879, 0.0
        %v1296 = vmax.f32 %v1012, 0.0
        %v1297 = vmax.f32 %v1145, 0.0
        %v1298 = vmax.f32 %v749, 0.0
        %v1299 = vmax.f32 %v882, 0.0
        %v1300 = vmax.f32 %v1015, 0.0
        %v1301 = vmax.f32 %v1148, 0.0
        %v1302 = vmax.f32 %v751, 0.0
        %v1303 = vmax.f32 %v884, 0.0
        %v1304 = vmax.f32 %v1017, 0.0
        %v1305 = vmax.f32 %v1150, 0.0
        %v1306 = vmax.f32 %v754, 0.0
        %v1307 = vmax.f32 %v887, 0.0
        %v1308 = vmax.f32 %v1020, 0.0
        %v1309 = vmax.f32 %v1153, 0.0
        %v1310 = vmax.f32 %v756, 0.0
        %v1311 = vmax.f32 %v889, 0.0
        %v1312 = vmax.f32 %v1022, 0.0
        %v1313 = vmax.f32 %v1155, 0.0
        %v1314 = vmax.f32 %v759, 0.0
        %v1315 = vmax.f32 %v892, 0.0
        %v1316 = vmax.f32 %v1025, 0.0
        %v1317 = vmax.f32 %v1158, 0.0
        %v1318 = vmax.f32 %v761, 0.0
        %v1319 = vmax.f32 %v894, 0.0
        %v1320 = vmax.f32 %v1027, 0.0
        %v1321 = vmax.f32 %v1160, 0.0
        %v1322 = vmax.f32 %v764, 0.0
        %v1323 = vmax.f32 %v897, 0.0
        %v1324 = vmax.f32 %v1030, 0.0
        %v1325 = vmax.f32 %v1163, 0.0
        %v1326 = vmax.f32 %v766, 0.0
        %v1327 = vmax.f32 %v899, 0.0
        %v1328 = vmax.f32 %v1032, 0.0
        %v1329 = vmax.f32 %v1165, 0.0
        %v1330 = vmax.f32 %v769, 0.0
        %v1331 = vmax.f32 %v902, 0.0
        %v1332 = vmax.f32 %v1035, 0.0
        %v1333 = vmax.f32 %v1168, 0.0
        %v1334 = vmax.f32 %v771, 0.0
        %v1335 = vmax.f32 %v904, 0.0
        %v1336 = vmax.f32 %v1037, 0.0
        %v1337 = vmax.f32 %v1170, 0.0
        %v1338 = vmax.f32 %v774, 0.0
        %v1339 = vmax.f32 %v907, 0.0
        %v1340 = vmax.f32 %v1040, 0.0
        %v1341 = vmax.f32 %v1173, 0.0
        %v1342 = vmax.f32 %v776, 0.0
        %v1343 = vmax.f32 %v909, 0.0
        %v1344 = vmax.f32 %v1042, 0.0
        %v1345 = vmax.f32 %v1175, 0.0
        %v1346 = vmax.f32 %v779, 0.0
        %v1347 = vmax.f32 %v912, 0.0
        %v1348 = vmax.f32 %v1045, 0.0
        %v1349 = vmax.f32 %v1178, 0.0
        %v1350 = vmax.f32 %v781, 0.0
        %v1351 = vmax.f32 %v914, 0.0
        %v1352 = vmax.f32 %v1047, 0.0
        %v1353 = vmax.f32 %v1180, 0.0
        %v1354 = vmax.f32 %v784, 0.0
        %v1355 = vmax.f32 %v917, 0.0
        %v1356 = vmax.f32 %v1050, 0.0
        %v1357 = vmax.f32 %v1183, 0.0
        %v1358 = vmax.f32 %v786, 0.0
        %v1359 = vmax.f32 %v919, 0.0
        %v1360 = vmax.f32 %v1052, 0.0
        %v1361 = vmax.f32 %v1185, 0.0
        %v1362 = vmax.f32 %v789, 0.0
        %v1363 = vmax.f32 %v922, 0.0
        %v1364 = vmax.f32 %v1055, 0.0
        %v1365 = vmax.f32 %v1188, 0.0
        %v1366 = vmax.f32 %v791, 0.0
        %v1367 = vmax.f32 %v924, 0.0
        %v1368 = vmax.f32 %v1057, 0.0
        %v1369 = vmax.f32 %v1190, 0.0
        %v1370 = vmax.f32 %v794, 0.0
        %v1371 = vmax.f32 %v927, 0.0
        %v1372 = vmax.f32 %v1060, 0.0
        %v1373 = vmax.f32 %v1193, 0.0
        %v1374 = vmax.f32 %v796, 0.0
        %v1375 = vmax.f32 %v929, 0.0
        %v1376 = vmax.f32 %v1062, 0.0
        %v1377 = vmax.f32 %v1195, 0.0
        %v1378 = vmax.f32 %v799, 0.0
        %v1379 = vmax.f32 %v932, 0.0
        %v1380 = vmax.f32 %v1065, 0.0
        %v1381 = vmax.f32 %v1198, 0.0
        %v1382 = vmax.f32 %v801, 0.0
        %v1383 = vmax.f32 %v934, 0.0
        %v1384 = vmax.f32 %v1067, 0.0
        %v1385 = vmax.f32 %v1200, 0.0
        %v1386 = vmax.f32 %v804, 0.0
        %v1387 = vmax.f32 %v937, 0.0
        %v1388 = vmax.f32 %v1070, 0.0
        %v1389 = vmax.f32 %v1203, 0.0
        %v1390 = vmax.f32 %v806, 0.0
        %v1391 = vmax.f32 %v939, 0.0
        %v1392 = vmax.f32 %v1072, 0.0
        %v1393 = vmax.f32 %v1205, 0.0
        %v1394 = vmax.f32 %v809, 0.0
        %v1395 = vmax.f32 %v942, 0.0
        %v1396 = vmax.f32 %v1075, 0.0
        %v1397 = vmax.f32 %v1208, 0.0
        %v1398 = vmax.f32 %v811, 0.0
        %v1399 = vmax.f32 %v944, 0.0
        %v1400 = vmax.f32 %v1077, 0.0
        %v1401 = vmax.f32 %v1210, 0.0
        %v1402 = vmax.f32 %v814, 0.0
        %v1403 = vmax.f32 %v947, 0.0
        %v1404 = vmax.f32 %v1080, 0.0
        %v1405 = vmax.f32 %v1213, 0.0
        %v1406 = vmax.f32 %v816, 0.0
        %v1407 = vmax.f32 %v949, 0.0
        %v1408 = vmax.f32 %v1082, 0.0
        %v1409 = vmax.f32 %v1215, 0.0
        %v1410 = vmax.f32 %v819, 0.0
        %v1411 = vmax.f32 %v952, 0.0
        %v1412 = vmax.f32 %v1085, 0.0
        %v1413 = vmax.f32 %v1218, 0.0
        %v1414 = vmax.f32 %v821, 0.0
        %v1415 = vmax.f32 %v954, 0.0
        %v1416 = vmax.f32 %v1087, 0.0
        %v1417 = vmax.f32 %v1220, 0.0
        %v1418 = vmax.f32 %v824, 0.0
        %v1419 = vmax.f32 %v957, 0.0
        %v1420 = vmax.f32 %v1090, 0.0
        %v1421 = vmax.f32 %v1223, 0.0
        %v1422 = vpack.c.bf16 %v1230, %v1226
        %v1423 = vpack.c.bf16 %v1231, %v1227
        %v1424 = vpack.c.bf16 %v1232, %v1228
        %v1425 = vpack.c.bf16 %v1233, %v1229
        %v1426 = vpack.c.bf16 %v1238, %v1234
        %v1427 = vpack.c.bf16 %v1239, %v1235
        %v1428 = vpack.c.bf16 %v1240, %v1236
        %v1429 = vpack.c.bf16 %v1241, %v1237
        %v1430 = vpack.c.bf16 %v1246, %v1242
        %v1431 = vpack.c.bf16 %v1247, %v1243
        %v1432 = vpack.c.bf16 %v1248, %v1244
        %v1433 = vpack.c.bf16 %v1249, %v1245
        %v1434 = vpack.c.bf16 %v1254, %v1250
        %v1435 = vpack.c.bf16 %v1255, %v1251
        %v1436 = vpack.c.bf16 %v1256, %v1252
        %v1437 = vpack.c.bf16 %v1257, %v1253
        %v1438 = vpack.c.bf16 %v1262, %v1258
        %v1439 = vpack.c.bf16 %v1263, %v1259
        %v1440 = vpack.c.bf16 %v1264, %v1260
        %v1441 = vpack.c.bf16 %v1265, %v1261
        %v1442 = vpack.c.bf16 %v1270, %v1266
        %v1443 = vpack.c.bf16 %v1271, %v1267
        %v1444 = vpack.c.bf16 %v1272, %v1268
        %v1445 = vpack.c.bf16 %v1273, %v1269
        %v1446 = vpack.c.bf16 %v1278, %v1274
        %v1447 = vpack.c.bf16 %v1279, %v1275
        %v1448 = vpack.c.bf16 %v1280, %v1276
        %v1449 = vpack.c.bf16 %v1281, %v1277
        %v1450 = vpack.c.bf16 %v1286, %v1282
        %v1451 = vpack.c.bf16 %v1287, %v1283
        %v1452 = vpack.c.bf16 %v1288, %v1284
        %v1453 = vpack.c.bf16 %v1289, %v1285
        %v1454 = vpack.c.bf16 %v1294, %v1290
        %v1455 = vpack.c.bf16 %v1295, %v1291
        %v1456 = vpack.c.bf16 %v1296, %v1292
        %v1457 = vpack.c.bf16 %v1297, %v1293
        %v1458 = vpack.c.bf16 %v1302, %v1298
        %v1459 = vpack.c.bf16 %v1303, %v1299
        %v1460 = vpack.c.bf16 %v1304, %v1300
        %v1461 = vpack.c.bf16 %v1305, %v1301
        %v1462 = vpack.c.bf16 %v1310, %v1306
        %v1463 = vpack.c.bf16 %v1311, %v1307
        %v1464 = vpack.c.bf16 %v1312, %v1308
        %v1465 = vpack.c.bf16 %v1313, %v1309
        %v1466 = vpack.c.bf16 %v1318, %v1314
        %v1467 = vpack.c.bf16 %v1319, %v1315
        %v1468 = vpack.c.bf16 %v1320, %v1316
        %v1469 = vpack.c.bf16 %v1321, %v1317
        %v1470 = vpack.c.bf16 %v1326, %v1322
        %v1471 = vpack.c.bf16 %v1327, %v1323
        %v1472 = vpack.c.bf16 %v1328, %v1324
        %v1473 = vpack.c.bf16 %v1329, %v1325
        %v1474 = vpack.c.bf16 %v1334, %v1330
        %v1475 = vpack.c.bf16 %v1335, %v1331
        %v1476 = vpack.c.bf16 %v1336, %v1332
        %v1477 = vpack.c.bf16 %v1337, %v1333
        %v1478 = vpack.c.bf16 %v1342, %v1338
        %v1479 = vpack.c.bf16 %v1343, %v1339
        %v1480 = vpack.c.bf16 %v1344, %v1340
        %v1481 = vpack.c.bf16 %v1345, %v1341
        %v1482 = vpack.c.bf16 %v1350, %v1346
        %v1483 = vpack.c.bf16 %v1351, %v1347
        %v1484 = vpack.c.bf16 %v1352, %v1348
        %v1485 = vpack.c.bf16 %v1353, %v1349
        %v1486 = vpack.c.bf16 %v1358, %v1354
        %v1487 = vpack.c.bf16 %v1359, %v1355
        %v1488 = vpack.c.bf16 %v1360, %v1356
        %v1489 = vpack.c.bf16 %v1361, %v1357
        %v1490 = vpack.c.bf16 %v1366, %v1362
        %v1491 = vpack.c.bf16 %v1367, %v1363
        %v1492 = vpack.c.bf16 %v1368, %v1364
        %v1493 = vpack.c.bf16 %v1369, %v1365
        %v1494 = vpack.c.bf16 %v1374, %v1370
        %v1495 = vpack.c.bf16 %v1375, %v1371
        %v1496 = vpack.c.bf16 %v1376, %v1372
        %v1497 = vpack.c.bf16 %v1377, %v1373
        %v1498 = vpack.c.bf16 %v1382, %v1378
        %v1499 = vpack.c.bf16 %v1383, %v1379
        %v1500 = vpack.c.bf16 %v1384, %v1380
        %v1501 = vpack.c.bf16 %v1385, %v1381
        %v1502 = vpack.c.bf16 %v1390, %v1386
        %v1503 = vpack.c.bf16 %v1391, %v1387
        %v1504 = vpack.c.bf16 %v1392, %v1388
        %v1505 = vpack.c.bf16 %v1393, %v1389
        %v1506 = vpack.c.bf16 %v1398, %v1394
        %v1507 = vpack.c.bf16 %v1399, %v1395
        %v1508 = vpack.c.bf16 %v1400, %v1396
        %v1509 = vpack.c.bf16 %v1401, %v1397
        %v1510 = vpack.c.bf16 %v1406, %v1402
        %v1511 = vpack.c.bf16 %v1407, %v1403
        %v1512 = vpack.c.bf16 %v1408, %v1404
        %v1513 = vpack.c.bf16 %v1409, %v1405
        %v1514 = vpack.c.bf16 %v1414, %v1410
        %v1515 = vpack.c.bf16 %v1415, %v1411
        %v1516 = vpack.c.bf16 %v1416, %v1412
        %v1517 = vpack.c.bf16 %v1417, %v1413
        %v1518 = vpack.c.bf16 %v1418, %v1418
        %v1519 = vpack.c.bf16 %v1419, %v1419
        %v1520 = vpack.c.bf16 %v1420, %v1420
        %v1521 = vpack.c.bf16 %v1421, %v1421
        %v1522 = vld [vmem:[#allocation8] sm:$0xf]
        %v1523 = vld [vmem:[#allocation8 + $0x4] sm:$0xf]
        %v1524 = vld [vmem:[#allocation8 + $0x8] sm:$0xf]
        %v1525 = vld [vmem:[#allocation8 + $0xc] sm:$0xf]
        %v1526 = vld [vmem:[#allocation8 + $0x10] sm:$0xf]
        %v1527 = vld [vmem:[#allocation8 + $0x14] sm:$0xf]
        %v1528 = vld [vmem:[#allocation8 + $0x18] sm:$0xf]
        %v1529 = vld [vmem:[#allocation8 + $0x1c] sm:$0xf]
        %v1530 = vld [vmem:[#allocation8 + $0x20] sm:$0xf]
        %v1531 = vld [vmem:[#allocation8 + $0x24] sm:$0xf]
        %v1532 = vld [vmem:[#allocation8 + $0x28] sm:$0xf]
        %v1533 = vld [vmem:[#allocation8 + $0x2c] sm:$0xf]
        %v1534 = vld [vmem:[#allocation8 + $0x30] sm:$0xf]
        %v1535 = vld [vmem:[#allocation8 + $0x34] sm:$0xf]
        %v1536 = vld [vmem:[#allocation8 + $0x38] sm:$0xf]
        %v1537 = vld [vmem:[#allocation8 + $0x3c] sm:$0xf]
        %v1538 = vld [vmem:[#allocation8 + $0x40] sm:$0xf]
        %v1539 = vld [vmem:[#allocation8 + $0x44] sm:$0xf]
        %v1540 = vld [vmem:[#allocation8 + $0x48] sm:$0xf]
        %v1541 = vld [vmem:[#allocation8 + $0x4c] sm:$0xf]
        %v1542 = vld [vmem:[#allocation8 + $0x50] sm:$0xf]
        %v1543 = vld [vmem:[#allocation8 + $0x54] sm:$0xf]
        %v1544 = vld [vmem:[#allocation8 + $0x58] sm:$0xf]
        %v1545 = vld [vmem:[#allocation8 + $0x5c] sm:$0xf]
        %v1546 = vld [vmem:[#allocation8 + $0x60] sm:$0xf]
        %v1547 = vld [vmem:[#allocation8 + $0x64] sm:$0xf]
        %v1548 = vld [vmem:[#allocation8 + $0x68] sm:$0xf]
        %v1549 = vld [vmem:[#allocation8 + $0x6c] sm:$0xf]
        %v1550 = vld [vmem:[#allocation8 + $0x70] sm:$0xf]
        %v1551 = vld [vmem:[#allocation8 + $0x74] sm:$0xf]
        %v1552 = vld [vmem:[#allocation8 + $0x78] sm:$0xf]
        %v1553 = vld [vmem:[#allocation8 + $0x7c] sm:$0xf]
        %v1554 = vld [vmem:[#allocation8 + $0x80] sm:$0xf]
        %v1555 = vld [vmem:[#allocation8 + $0x84] sm:$0xf]
        %v1556 = vld [vmem:[#allocation8 + $0x88] sm:$0xf]
        %v1557 = vld [vmem:[#allocation8 + $0x8c] sm:$0xf]
        %v1558 = vld [vmem:[#allocation8 + $0x90] sm:$0xf]
        %v1559 = vld [vmem:[#allocation8 + $0x94] sm:$0xf]
        %v1560 = vld [vmem:[#allocation8 + $0x98] sm:$0xf]
        %v1561 = vld [vmem:[#allocation8 + $0x9c] sm:$0xf]
        %v1562 = vld [vmem:[#allocation8 + $0xa0] sm:$0xf]
        %v1563 = vld [vmem:[#allocation8 + $0xa4] sm:$0xf]
        %v1564 = vld [vmem:[#allocation8 + $0xa8] sm:$0xf]
        %v1565 = vld [vmem:[#allocation8 + $0xac] sm:$0xf]
        %v1566 = vld [vmem:[#allocation8 + $0xb0] sm:$0xf]
        %v1567 = vld [vmem:[#allocation8 + $0xb4] sm:$0xf]
        %v1568 = vld [vmem:[#allocation8 + $0xb8] sm:$0xf]
        %v1569 = vld [vmem:[#allocation8 + $0xbc] sm:$0xf]
        %v1570 = vld [vmem:[#allocation8 + $0xc0] sm:$0xf]
        %v1571 = vld [vmem:[#allocation8 + $0xc4] sm:$0xf]
        %v1572 = vld [vmem:[#allocation8 + $0xc8] sm:$0xf]
        %v1573 = vld [vmem:[#allocation8 + $0xcc] sm:$0xf]
        %v1574 = vld [vmem:[#allocation8 + $0xd0] sm:$0xf]
        %v1575 = vld [vmem:[#allocation8 + $0xd4] sm:$0xf]
        %v1576 = vld [vmem:[#allocation8 + $0xd8] sm:$0xf]
        %v1577 = vld [vmem:[#allocation8 + $0xdc] sm:$0xf]
        %v1578 = vld [vmem:[#allocation8 + $0xe0] sm:$0xf]
        %v1579 = vld [vmem:[#allocation8 + $0xe4] sm:$0xf]
        %v1580 = vld [vmem:[#allocation8 + $0xe8] sm:$0xf]
        %v1581 = vld [vmem:[#allocation8 + $0xec] sm:$0xf]
        %v1582 = vld [vmem:[#allocation8 + $0xf0] sm:$0xf]
        %v1583 = vld [vmem:[#allocation8 + $0xf4] sm:$0xf]
        %v1584 = vld [vmem:[#allocation8 + $0xf8] sm:$0xf]
        %v1585 = vld [vmem:[#allocation8 + $0xfc] sm:$0xf]
        %v1650 = vunpack.c.l.b16 %v1522
        %v1651 = vunpack.c.l.b16 %v1523
        %v1652 = vunpack.c.l.b16 %v1524
        %v1653 = vunpack.c.l.b16 %v1525
        %v1654 = vunpack.c.l.b16 %v1526
        %v1655 = vunpack.c.l.b16 %v1527
        %v1656 = vunpack.c.l.b16 %v1528
        %v1657 = vunpack.c.l.b16 %v1529
        %v1658 = vunpack.c.l.b16 %v1530
        %v1659 = vunpack.c.l.b16 %v1531
        %v1660 = vunpack.c.l.b16 %v1532
        %v1661 = vunpack.c.l.b16 %v1533
        %v1662 = vunpack.c.l.b16 %v1534
        %v1663 = vunpack.c.l.b16 %v1535
        %v1664 = vunpack.c.l.b16 %v1536
        %v1665 = vunpack.c.l.b16 %v1537
        %v1666 = vunpack.c.l.b16 %v1538
        %v1667 = vunpack.c.l.b16 %v1539
        %v1668 = vunpack.c.l.b16 %v1540
        %v1669 = vunpack.c.l.b16 %v1541
        %v1670 = vunpack.c.l.b16 %v1542
        %v1671 = vunpack.c.l.b16 %v1543
        %v1672 = vunpack.c.l.b16 %v1544
        %v1673 = vunpack.c.l.b16 %v1545
        %v1674 = vunpack.c.l.b16 %v1546
        %v1675 = vunpack.c.l.b16 %v1547
        %v1676 = vunpack.c.l.b16 %v1548
        %v1677 = vunpack.c.l.b16 %v1549
        %v1678 = vunpack.c.l.b16 %v1550
        %v1679 = vunpack.c.l.b16 %v1551
        %v1680 = vunpack.c.l.b16 %v1552
        %v1681 = vunpack.c.l.b16 %v1553
        %v1682 = vunpack.c.l.b16 %v1554
        %v1683 = vunpack.c.l.b16 %v1555
        %v1684 = vunpack.c.l.b16 %v1556
        %v1685 = vunpack.c.l.b16 %v1557
        %v1686 = vunpack.c.l.b16 %v1558
        %v1687 = vunpack.c.l.b16 %v1559
        %v1688 = vunpack.c.l.b16 %v1560
        %v1689 = vunpack.c.l.b16 %v1561
        %v1690 = vunpack.c.l.b16 %v1562
        %v1691 = vunpack.c.l.b16 %v1563
        %v1692 = vunpack.c.l.b16 %v1564
        %v1693 = vunpack.c.l.b16 %v1565
        %v1694 = vunpack.c.l.b16 %v1566
        %v1695 = vunpack.c.l.b16 %v1567
        %v1696 = vunpack.c.l.b16 %v1568
        %v1697 = vunpack.c.l.b16 %v1569
        %v1698 = vunpack.c.l.b16 %v1570
        %v1699 = vunpack.c.l.b16 %v1571
        %v1700 = vunpack.c.l.b16 %v1572
        %v1701 = vunpack.c.l.b16 %v1573
        %v1702 = vunpack.c.l.b16 %v1574
        %v1703 = vunpack.c.l.b16 %v1575
        %v1704 = vunpack.c.l.b16 %v1576
        %v1705 = vunpack.c.l.b16 %v1577
        %v1706 = vunpack.c.l.b16 %v1578
        %v1707 = vunpack.c.l.b16 %v1579
        %v1708 = vunpack.c.l.b16 %v1580
        %v1709 = vunpack.c.l.b16 %v1581
        %v1710 = vunpack.c.l.b16 %v1582
        %v1711 = vunpack.c.l.b16 %v1583
        %v1712 = vunpack.c.l.b16 %v1584
        %v1713 = vunpack.c.l.b16 %v1585
        %v1714 = vpack.c.b16 %v1651, %v1650
        %v1715 = vpack.c.b16 %v1653, %v1652
        %v1716 = vpack.c.b16 %v1655, %v1654
        %v1717 = vpack.c.b16 %v1657, %v1656
        %v1718 = vpack.c.b16 %v1659, %v1658
        %v1719 = vpack.c.b16 %v1661, %v1660
        %v1720 = vpack.c.b16 %v1663, %v1662
        %v1721 = vpack.c.b16 %v1665, %v1664
        %v1722 = vpack.c.b16 %v1667, %v1666
        %v1723 = vpack.c.b16 %v1669, %v1668
        %v1724 = vpack.c.b16 %v1671, %v1670
        %v1725 = vpack.c.b16 %v1673, %v1672
        %v1726 = vpack.c.b16 %v1675, %v1674
        %v1727 = vpack.c.b16 %v1677, %v1676
        %v1728 = vpack.c.b16 %v1679, %v1678
        %v1729 = vpack.c.b16 %v1681, %v1680
        %v1730 = vpack.c.b16 %v1683, %v1682
        %v1731 = vpack.c.b16 %v1685, %v1684
        %v1732 = vpack.c.b16 %v1687, %v1686
        %v1733 = vpack.c.b16 %v1689, %v1688
        %v1734 = vpack.c.b16 %v1691, %v1690
        %v1735 = vpack.c.b16 %v1693, %v1692
        %v1736 = vpack.c.b16 %v1695, %v1694
        %v1737 = vpack.c.b16 %v1697, %v1696
        %v1738 = vpack.c.b16 %v1699, %v1698
        %v1739 = vpack.c.b16 %v1701, %v1700
        %v1740 = vpack.c.b16 %v1703, %v1702
        %v1741 = vpack.c.b16 %v1705, %v1704
        %v1742 = vpack.c.b16 %v1707, %v1706
        %v1743 = vpack.c.b16 %v1709, %v1708
        %v1744 = vpack.c.b16 %v1711, %v1710
        %v1745 = vpack.c.b16 %v1713, %v1712
        %1778 = vmatpush.bf16.msra.mxu0 %v1721
        %1779 = vmatpush.bf16.msra.mxu0 %v1720
        %1780 = vmatpush.bf16.msra.mxu0 %v1719
        %1781 = vmatpush.bf16.msra.mxu0 %v1718
        %1782 = vmatpush.bf16.msra.mxu0 %v1717
        %1783 = vmatpush.bf16.msra.mxu0 %v1716
        %1784 = vmatpush.bf16.msra.mxu0 %v1715
        %1785 = vmatpush.bf16.msra.mxu0 %v1714
        %1786 = vmatmul.bf16.gmra.mxu0 %v1422
        %v1787 = vpop.f32.mrf.mxu0
        %v1788 = vadd.f32 0.0, %v1787
        %v1789 = vpop.f32.mrf.mxu0
        %v1790 = vadd.f32 0.0, %v1789
        %1791 = vmatmul.bf16.gmra.mxu0 %v1426
        %v1792 = vpop.f32.mrf.mxu0
        %v1793 = vadd.f32 0.0, %v1792
        %v1794 = vpop.f32.mrf.mxu0
        %v1795 = vadd.f32 0.0, %v1794
        %1796 = vmatmul.bf16.gmra.mxu0 %v1430
        %v1797 = vpop.f32.mrf.mxu0
        %v1798 = vadd.f32 0.0, %v1797
        %v1799 = vpop.f32.mrf.mxu0
        %v1800 = vadd.f32 0.0, %v1799
        %1801 = vmatmul.bf16.gmra.mxu0 %v1434
        %v1802 = vpop.f32.mrf.mxu0
        %v1803 = vadd.f32 0.0, %v1802
        %v1804 = vpop.f32.mrf.mxu0
        %v1805 = vadd.f32 0.0, %v1804
        %1806 = vmatmul.bf16.gmra.mxu0 %v1438
        %v1807 = vpop.f32.mrf.mxu0
        %v1808 = vadd.f32 0.0, %v1807
        %v1809 = vpop.f32.mrf.mxu0
        %v1810 = vadd.f32 0.0, %v1809
        %1811 = vmatmul.bf16.gmra.mxu0 %v1442
        %v1812 = vpop.f32.mrf.mxu0
        %v1813 = vadd.f32 0.0, %v1812
        %v1814 = vpop.f32.mrf.mxu0
        %v1815 = vadd.f32 0.0, %v1814
        %1816 = vmatmul.bf16.gmra.mxu0 %v1446
        %v1817 = vpop.f32.mrf.mxu0
        %v1818 = vadd.f32 0.0, %v1817
        %v1819 = vpop.f32.mrf.mxu0
        %v1820 = vadd.f32 0.0, %v1819
        %1821 = vmatmul.bf16.gmra.mxu0 %v1450
        %v1822 = vpop.f32.mrf.mxu0
        %v1823 = vadd.f32 0.0, %v1822
        %v1824 = vpop.f32.mrf.mxu0
        %v1825 = vadd.f32 0.0, %v1824
        %1826 = vmatmul.bf16.gmra.mxu0 %v1454
        %v1827 = vpop.f32.mrf.mxu0
        %v1828 = vadd.f32 0.0, %v1827
        %v1829 = vpop.f32.mrf.mxu0
        %v1830 = vadd.f32 0.0, %v1829
        %1831 = vmatmul.bf16.gmra.mxu0 %v1458
        %v1832 = vpop.f32.mrf.mxu0
        %v1833 = vadd.f32 0.0, %v1832
        %v1834 = vpop.f32.mrf.mxu0
        %v1835 = vadd.f32 0.0, %v1834
        %1836 = vmatmul.bf16.gmra.mxu0 %v1462
        %v1837 = vpop.f32.mrf.mxu0
        %v1838 = vadd.f32 0.0, %v1837
        %v1839 = vpop.f32.mrf.mxu0
        %v1840 = vadd.f32 0.0, %v1839
        %1841 = vmatmul.bf16.gmra.mxu0 %v1466
        %v1842 = vpop.f32.mrf.mxu0
        %v1843 = vadd.f32 0.0, %v1842
        %v1844 = vpop.f32.mrf.mxu0
        %v1845 = vadd.f32 0.0, %v1844
        %1846 = vmatmul.bf16.gmra.mxu0 %v1470
        %v1847 = vpop.f32.mrf.mxu0
        %v1848 = vadd.f32 0.0, %v1847
        %v1849 = vpop.f32.mrf.mxu0
        %v1850 = vadd.f32 0.0, %v1849
        %1851 = vmatmul.bf16.gmra.mxu0 %v1474
        %v1852 = vpop.f32.mrf.mxu0
        %v1853 = vadd.f32 0.0, %v1852
        %v1854 = vpop.f32.mrf.mxu0
        %v1855 = vadd.f32 0.0, %v1854
        %1856 = vmatmul.bf16.gmra.mxu0 %v1478
        %v1857 = vpop.f32.mrf.mxu0
        %v1858 = vadd.f32 0.0, %v1857
        %v1859 = vpop.f32.mrf.mxu0
        %v1860 = vadd.f32 0.0, %v1859
        %1861 = vmatmul.bf16.gmra.mxu0 %v1482
        %v1862 = vpop.f32.mrf.mxu0
        %v1863 = vadd.f32 0.0, %v1862
        %v1864 = vpop.f32.mrf.mxu0
        %v1865 = vadd.f32 0.0, %v1864
        %1866 = vmatmul.bf16.gmra.mxu0 %v1486
        %v1867 = vpop.f32.mrf.mxu0
        %v1868 = vadd.f32 0.0, %v1867
        %v1869 = vpop.f32.mrf.mxu0
        %v1870 = vadd.f32 0.0, %v1869
        %1871 = vmatmul.bf16.gmra.mxu0 %v1490
        %v1872 = vpop.f32.mrf.mxu0
        %v1873 = vadd.f32 0.0, %v1872
        %v1874 = vpop.f32.mrf.mxu0
        %v1875 = vadd.f32 0.0, %v1874
        %1876 = vmatmul.bf16.gmra.mxu0 %v1494
        %v1877 = vpop.f32.mrf.mxu0
        %v1878 = vadd.f32 0.0, %v1877
        %v1879 = vpop.f32.mrf.mxu0
        %v1880 = vadd.f32 0.0, %v1879
        %1881 = vmatmul.bf16.gmra.mxu0 %v1498
        %v1882 = vpop.f32.mrf.mxu0
        %v1883 = vadd.f32 0.0, %v1882
        %v1884 = vpop.f32.mrf.mxu0
        %v1885 = vadd.f32 0.0, %v1884
        %1886 = vmatmul.bf16.gmra.mxu0 %v1502
        %v1887 = vpop.f32.mrf.mxu0
        %v1888 = vadd.f32 0.0, %v1887
        %v1889 = vpop.f32.mrf.mxu0
        %v1890 = vadd.f32 0.0, %v1889
        %1891 = vmatmul.bf16.gmra.mxu0 %v1506
        %v1892 = vpop.f32.mrf.mxu0
        %v1893 = vadd.f32 0.0, %v1892
        %v1894 = vpop.f32.mrf.mxu0
        %v1895 = vadd.f32 0.0, %v1894
        %1896 = vmatmul.bf16.gmra.mxu0 %v1510
        %v1897 = vpop.f32.mrf.mxu0
        %v1898 = vadd.f32 0.0, %v1897
        %v1899 = vpop.f32.mrf.mxu0
        %v1900 = vadd.f32 0.0, %v1899
        %1901 = vmatmul.bf16.gmra.mxu0 %v1514
        %v1902 = vpop.f32.mrf.mxu0
        %v1903 = vadd.f32 0.0, %v1902
        %v1904 = vpop.f32.mrf.mxu0
        %v1905 = vadd.f32 0.0, %v1904
        %1906 = vmatmul.bf16.gmra.mxu0 %v1518
        %v1907 = vpop.f32.mrf.mxu0
        %v1908 = vadd.f32 0.0, %v1907
        %v1909 = vpop.f32.mrf.mxu0
        %1910 = vdwg.mxu0
        %1911 = vmatpush.bf16.msra.mxu0 %v1729
        %1912 = vmatpush.bf16.msra.mxu0 %v1728
        %1913 = vmatpush.bf16.msra.mxu0 %v1727
        %1914 = vmatpush.bf16.msra.mxu0 %v1726
        %1915 = vmatpush.bf16.msra.mxu0 %v1725
        %1916 = vmatpush.bf16.msra.mxu0 %v1724
        %1917 = vmatpush.bf16.msra.mxu0 %v1723
        %1918 = vmatpush.bf16.msra.mxu0 %v1722
        %1919 = vmatmul.bf16.gmra.mxu0 %v1423
        %v1920 = vpop.f32.mrf.mxu0
        %v1921 = vadd.f32 %v1788, %v1920
        %v1922 = vpop.f32.mrf.mxu0
        %v1923 = vadd.f32 %v1790, %v1922
        %1924 = vmatmul.bf16.gmra.mxu0 %v1427
        %v1925 = vpop.f32.mrf.mxu0
        %v1926 = vadd.f32 %v1793, %v1925
        %v1927 = vpop.f32.mrf.mxu0
        %v1928 = vadd.f32 %v1795, %v1927
        %1929 = vmatmul.bf16.gmra.mxu0 %v1431
        %v1930 = vpop.f32.mrf.mxu0
        %v1931 = vadd.f32 %v1798, %v1930
        %v1932 = vpop.f32.mrf.mxu0
        %v1933 = vadd.f32 %v1800, %v1932
        %1934 = vmatmul.bf16.gmra.mxu0 %v1435
        %v1935 = vpop.f32.mrf.mxu0
        %v1936 = vadd.f32 %v1803, %v1935
        %v1937 = vpop.f32.mrf.mxu0
        %v1938 = vadd.f32 %v1805, %v1937
        %1939 = vmatmul.bf16.gmra.mxu0 %v1439
        %v1940 = vpop.f32.mrf.mxu0
        %v1941 = vadd.f32 %v1808, %v1940
        %v1942 = vpop.f32.mrf.mxu0
        %v1943 = vadd.f32 %v1810, %v1942
        %1944 = vmatmul.bf16.gmra.mxu0 %v1443
        %v1945 = vpop.f32.mrf.mxu0
        %v1946 = vadd.f32 %v1813, %v1945
        %v1947 = vpop.f32.mrf.mxu0
        %v1948 = vadd.f32 %v1815, %v1947
        %1949 = vmatmul.bf16.gmra.mxu0 %v1447
        %v1950 = vpop.f32.mrf.mxu0
        %v1951 = vadd.f32 %v1818, %v1950
        %v1952 = vpop.f32.mrf.mxu0
        %v1953 = vadd.f32 %v1820, %v1952
        %1954 = vmatmul.bf16.gmra.mxu0 %v1451
        %v1955 = vpop.f32.mrf.mxu0
        %v1956 = vadd.f32 %v1823, %v1955
        %v1957 = vpop.f32.mrf.mxu0
        %v1958 = vadd.f32 %v1825, %v1957
        %1959 = vmatmul.bf16.gmra.mxu0 %v1455
        %v1960 = vpop.f32.mrf.mxu0
        %v1961 = vadd.f32 %v1828, %v1960
        %v1962 = vpop.f32.mrf.mxu0
        %v1963 = vadd.f32 %v1830, %v1962
        %1964 = vmatmul.bf16.gmra.mxu0 %v1459
        %v1965 = vpop.f32.mrf.mxu0
        %v1966 = vadd.f32 %v1833, %v1965
        %v1967 = vpop.f32.mrf.mxu0
        %v1968 = vadd.f32 %v1835, %v1967
        %1969 = vmatmul.bf16.gmra.mxu0 %v1463
        %v1970 = vpop.f32.mrf.mxu0
        %v1971 = vadd.f32 %v1838, %v1970
        %v1972 = vpop.f32.mrf.mxu0
        %v1973 = vadd.f32 %v1840, %v1972
        %1974 = vmatmul.bf16.gmra.mxu0 %v1467
        %v1975 = vpop.f32.mrf.mxu0
        %v1976 = vadd.f32 %v1843, %v1975
        %v1977 = vpop.f32.mrf.mxu0
        %v1978 = vadd.f32 %v1845, %v1977
        %1979 = vmatmul.bf16.gmra.mxu0 %v1471
        %v1980 = vpop.f32.mrf.mxu0
        %v1981 = vadd.f32 %v1848, %v1980
        %v1982 = vpop.f32.mrf.mxu0
        %v1983 = vadd.f32 %v1850, %v1982
        %1984 = vmatmul.bf16.gmra.mxu0 %v1475
        %v1985 = vpop.f32.mrf.mxu0
        %v1986 = vadd.f32 %v1853, %v1985
        %v1987 = vpop.f32.mrf.mxu0
        %v1988 = vadd.f32 %v1855, %v1987
        %1989 = vmatmul.bf16.gmra.mxu0 %v1479
        %v1990 = vpop.f32.mrf.mxu0
        %v1991 = vadd.f32 %v1858, %v1990
        %v1992 = vpop.f32.mrf.mxu0
        %v1993 = vadd.f32 %v1860, %v1992
        %1994 = vmatmul.bf16.gmra.mxu0 %v1483
        %v1995 = vpop.f32.mrf.mxu0
        %v1996 = vadd.f32 %v1863, %v1995
        %v1997 = vpop.f32.mrf.mxu0
        %v1998 = vadd.f32 %v1865, %v1997
        %1999 = vmatmul.bf16.gmra.mxu0 %v1487
        %v2000 = vpop.f32.mrf.mxu0
        %v2001 = vadd.f32 %v1868, %v2000
        %v2002 = vpop.f32.mrf.mxu0
        %v2003 = vadd.f32 %v1870, %v2002
        %2004 = vmatmul.bf16.gmra.mxu0 %v1491
        %v2005 = vpop.f32.mrf.mxu0
        %v2006 = vadd.f32 %v1873, %v2005
        %v2007 = vpop.f32.mrf.mxu0
        %v2008 = vadd.f32 %v1875, %v2007
        %2009 = vmatmul.bf16.gmra.mxu0 %v1495
        %v2010 = vpop.f32.mrf.mxu0
        %v2011 = vadd.f32 %v1878, %v2010
        %v2012 = vpop.f32.mrf.mxu0
        %v2013 = vadd.f32 %v1880, %v2012
        %2014 = vmatmul.bf16.gmra.mxu0 %v1499
        %v2015 = vpop.f32.mrf.mxu0
        %v2016 = vadd.f32 %v1883, %v2015
        %v2017 = vpop.f32.mrf.mxu0
        %v2018 = vadd.f32 %v1885, %v2017
        %2019 = vmatmul.bf16.gmra.mxu0 %v1503
        %v2020 = vpop.f32.mrf.mxu0
        %v2021 = vadd.f32 %v1888, %v2020
        %v2022 = vpop.f32.mrf.mxu0
        %v2023 = vadd.f32 %v1890, %v2022
        %2024 = vmatmul.bf16.gmra.mxu0 %v1507
        %v2025 = vpop.f32.mrf.mxu0
        %v2026 = vadd.f32 %v1893, %v2025
        %v2027 = vpop.f32.mrf.mxu0
        %v2028 = vadd.f32 %v1895, %v2027
        %2029 = vmatmul.bf16.gmra.mxu0 %v1511
        %v2030 = vpop.f32.mrf.mxu0
        %v2031 = vadd.f32 %v1898, %v2030
        %v2032 = vpop.f32.mrf.mxu0
        %v2033 = vadd.f32 %v1900, %v2032
        %2034 = vmatmul.bf16.gmra.mxu0 %v1515
        %v2035 = vpop.f32.mrf.mxu0
        %v2036 = vadd.f32 %v1903, %v2035
        %v2037 = vpop.f32.mrf.mxu0
        %v2038 = vadd.f32 %v1905, %v2037
        %2039 = vmatmul.bf16.gmra.mxu0 %v1519
        %v2040 = vpop.f32.mrf.mxu0
        %v2041 = vadd.f32 %v1908, %v2040
        %v2042 = vpop.f32.mrf.mxu0
        %2043 = vdwg.mxu0
        %2044 = vmatpush.bf16.msra.mxu0 %v1737
        %2045 = vmatpush.bf16.msra.mxu0 %v1736
        %2046 = vmatpush.bf16.msra.mxu0 %v1735
        %2047 = vmatpush.bf16.msra.mxu0 %v1734
        %2048 = vmatpush.bf16.msra.mxu0 %v1733
        %2049 = vmatpush.bf16.msra.mxu0 %v1732
        %2050 = vmatpush.bf16.msra.mxu0 %v1731
        %2051 = vmatpush.bf16.msra.mxu0 %v1730
        %2052 = vmatmul.bf16.gmra.mxu0 %v1424
        %v2053 = vpop.f32.mrf.mxu0
        %v2054 = vadd.f32 %v1921, %v2053
        %v2055 = vpop.f32.mrf.mxu0
        %v2056 = vadd.f32 %v1923, %v2055
        %2057 = vmatmul.bf16.gmra.mxu0 %v1428
        %v2058 = vpop.f32.mrf.mxu0
        %v2059 = vadd.f32 %v1926, %v2058
        %v2060 = vpop.f32.mrf.mxu0
        %v2061 = vadd.f32 %v1928, %v2060
        %2062 = vmatmul.bf16.gmra.mxu0 %v1432
        %v2063 = vpop.f32.mrf.mxu0
        %v2064 = vadd.f32 %v1931, %v2063
        %v2065 = vpop.f32.mrf.mxu0
        %v2066 = vadd.f32 %v1933, %v2065
        %2067 = vmatmul.bf16.gmra.mxu0 %v1436
        %v2068 = vpop.f32.mrf.mxu0
        %v2069 = vadd.f32 %v1936, %v2068
        %v2070 = vpop.f32.mrf.mxu0
        %v2071 = vadd.f32 %v1938, %v2070
        %2072 = vmatmul.bf16.gmra.mxu0 %v1440
        %v2073 = vpop.f32.mrf.mxu0
        %v2074 = vadd.f32 %v1941, %v2073
        %v2075 = vpop.f32.mrf.mxu0
        %v2076 = vadd.f32 %v1943, %v2075
        %2077 = vmatmul.bf16.gmra.mxu0 %v1444
        %v2078 = vpop.f32.mrf.mxu0
        %v2079 = vadd.f32 %v1946, %v2078
        %v2080 = vpop.f32.mrf.mxu0
        %v2081 = vadd.f32 %v1948, %v2080
        %2082 = vmatmul.bf16.gmra.mxu0 %v1448
        %v2083 = vpop.f32.mrf.mxu0
        %v2084 = vadd.f32 %v1951, %v2083
        %v2085 = vpop.f32.mrf.mxu0
        %v2086 = vadd.f32 %v1953, %v2085
        %2087 = vmatmul.bf16.gmra.mxu0 %v1452
        %v2088 = vpop.f32.mrf.mxu0
        %v2089 = vadd.f32 %v1956, %v2088
        %v2090 = vpop.f32.mrf.mxu0
        %v2091 = vadd.f32 %v1958, %v2090
        %2092 = vmatmul.bf16.gmra.mxu0 %v1456
        %v2093 = vpop.f32.mrf.mxu0
        %v2094 = vadd.f32 %v1961, %v2093
        %v2095 = vpop.f32.mrf.mxu0
        %v2096 = vadd.f32 %v1963, %v2095
        %2097 = vmatmul.bf16.gmra.mxu0 %v1460
        %v2098 = vpop.f32.mrf.mxu0
        %v2099 = vadd.f32 %v1966, %v2098
        %v2100 = vpop.f32.mrf.mxu0
        %v2101 = vadd.f32 %v1968, %v2100
        %2102 = vmatmul.bf16.gmra.mxu0 %v1464
        %v2103 = vpop.f32.mrf.mxu0
        %v2104 = vadd.f32 %v1971, %v2103
        %v2105 = vpop.f32.mrf.mxu0
        %v2106 = vadd.f32 %v1973, %v2105
        %2107 = vmatmul.bf16.gmra.mxu0 %v1468
        %v2108 = vpop.f32.mrf.mxu0
        %v2109 = vadd.f32 %v1976, %v2108
        %v2110 = vpop.f32.mrf.mxu0
        %v2111 = vadd.f32 %v1978, %v2110
        %2112 = vmatmul.bf16.gmra.mxu0 %v1472
        %v2113 = vpop.f32.mrf.mxu0
        %v2114 = vadd.f32 %v1981, %v2113
        %v2115 = vpop.f32.mrf.mxu0
        %v2116 = vadd.f32 %v1983, %v2115
        %2117 = vmatmul.bf16.gmra.mxu0 %v1476
        %v2118 = vpop.f32.mrf.mxu0
        %v2119 = vadd.f32 %v1986, %v2118
        %v2120 = vpop.f32.mrf.mxu0
        %v2121 = vadd.f32 %v1988, %v2120
        %2122 = vmatmul.bf16.gmra.mxu0 %v1480
        %v2123 = vpop.f32.mrf.mxu0
        %v2124 = vadd.f32 %v1991, %v2123
        %v2125 = vpop.f32.mrf.mxu0
        %v2126 = vadd.f32 %v1993, %v2125
        %2127 = vmatmul.bf16.gmra.mxu0 %v1484
        %v2128 = vpop.f32.mrf.mxu0
        %v2129 = vadd.f32 %v1996, %v2128
        %v2130 = vpop.f32.mrf.mxu0
        %v2131 = vadd.f32 %v1998, %v2130
        %2132 = vmatmul.bf16.gmra.mxu0 %v1488
        %v2133 = vpop.f32.mrf.mxu0
        %v2134 = vadd.f32 %v2001, %v2133
        %v2135 = vpop.f32.mrf.mxu0
        %v2136 = vadd.f32 %v2003, %v2135
        %2137 = vmatmul.bf16.gmra.mxu0 %v1492
        %v2138 = vpop.f32.mrf.mxu0
        %v2139 = vadd.f32 %v2006, %v2138
        %v2140 = vpop.f32.mrf.mxu0
        %v2141 = vadd.f32 %v2008, %v2140
        %2142 = vmatmul.bf16.gmra.mxu0 %v1496
        %v2143 = vpop.f32.mrf.mxu0
        %v2144 = vadd.f32 %v2011, %v2143
        %v2145 = vpop.f32.mrf.mxu0
        %v2146 = vadd.f32 %v2013, %v2145
        %2147 = vmatmul.bf16.gmra.mxu0 %v1500
        %v2148 = vpop.f32.mrf.mxu0
        %v2149 = vadd.f32 %v2016, %v2148
        %v2150 = vpop.f32.mrf.mxu0
        %v2151 = vadd.f32 %v2018, %v2150
        %2152 = vmatmul.bf16.gmra.mxu0 %v1504
        %v2153 = vpop.f32.mrf.mxu0
        %v2154 = vadd.f32 %v2021, %v2153
        %v2155 = vpop.f32.mrf.mxu0
        %v2156 = vadd.f32 %v2023, %v2155
        %2157 = vmatmul.bf16.gmra.mxu0 %v1508
        %v2158 = vpop.f32.mrf.mxu0
        %v2159 = vadd.f32 %v2026, %v2158
        %v2160 = vpop.f32.mrf.mxu0
        %v2161 = vadd.f32 %v2028, %v2160
        %2162 = vmatmul.bf16.gmra.mxu0 %v1512
        %v2163 = vpop.f32.mrf.mxu0
        %v2164 = vadd.f32 %v2031, %v2163
        %v2165 = vpop.f32.mrf.mxu0
        %v2166 = vadd.f32 %v2033, %v2165
        %2167 = vmatmul.bf16.gmra.mxu0 %v1516
        %v2168 = vpop.f32.mrf.mxu0
        %v2169 = vadd.f32 %v2036, %v2168
        %v2170 = vpop.f32.mrf.mxu0
        %v2171 = vadd.f32 %v2038, %v2170
        %2172 = vmatmul.bf16.gmra.mxu0 %v1520
        %v2173 = vpop.f32.mrf.mxu0
        %v2174 = vadd.f32 %v2041, %v2173
        %v2175 = vpop.f32.mrf.mxu0
        %2176 = vdwg.mxu0
        %2177 = vmatpush.bf16.msra.mxu0 %v1745
        %2178 = vmatpush.bf16.msra.mxu0 %v1744
        %2179 = vmatpush.bf16.msra.mxu0 %v1743
        %2180 = vmatpush.bf16.msra.mxu0 %v1742
        %2181 = vmatpush.bf16.msra.mxu0 %v1741
        %2182 = vmatpush.bf16.msra.mxu0 %v1740
        %2183 = vmatpush.bf16.msra.mxu0 %v1739
        %2184 = vmatpush.bf16.msra.mxu0 %v1738
        %2185 = vmatmul.bf16.gmra.mxu0 %v1425
        %v2186 = vpop.f32.mrf.mxu0
        %v2187 = vadd.f32 %v2054, %v2186
        %v2188 = vpop.f32.mrf.mxu0
        %v2189 = vadd.f32 %v2056, %v2188
        %2190 = vmatmul.bf16.gmra.mxu0 %v1429
        %v2191 = vpop.f32.mrf.mxu0
        %v2192 = vadd.f32 %v2059, %v2191
        %v2193 = vpop.f32.mrf.mxu0
        %v2194 = vadd.f32 %v2061, %v2193
        %2195 = vmatmul.bf16.gmra.mxu0 %v1433
        %v2196 = vpop.f32.mrf.mxu0
        %v2197 = vadd.f32 %v2064, %v2196
        %v2198 = vpop.f32.mrf.mxu0
        %v2199 = vadd.f32 %v2066, %v2198
        %2200 = vmatmul.bf16.gmra.mxu0 %v1437
        %v2201 = vpop.f32.mrf.mxu0
        %v2202 = vadd.f32 %v2069, %v2201
        %v2203 = vpop.f32.mrf.mxu0
        %v2204 = vadd.f32 %v2071, %v2203
        %2205 = vmatmul.bf16.gmra.mxu0 %v1441
        %v2206 = vpop.f32.mrf.mxu0
        %v2207 = vadd.f32 %v2074, %v2206
        %v2208 = vpop.f32.mrf.mxu0
        %v2209 = vadd.f32 %v2076, %v2208
        %2210 = vmatmul.bf16.gmra.mxu0 %v1445
        %v2211 = vpop.f32.mrf.mxu0
        %v2212 = vadd.f32 %v2079, %v2211
        %v2213 = vpop.f32.mrf.mxu0
        %v2214 = vadd.f32 %v2081, %v2213
        %2215 = vmatmul.bf16.gmra.mxu0 %v1449
        %v2216 = vpop.f32.mrf.mxu0
        %v2217 = vadd.f32 %v2084, %v2216
        %v2218 = vpop.f32.mrf.mxu0
        %v2219 = vadd.f32 %v2086, %v2218
        %2220 = vmatmul.bf16.gmra.mxu0 %v1453
        %v2221 = vpop.f32.mrf.mxu0
        %v2222 = vadd.f32 %v2089, %v2221
        %v2223 = vpop.f32.mrf.mxu0
        %v2224 = vadd.f32 %v2091, %v2223
        %2225 = vmatmul.bf16.gmra.mxu0 %v1457
        %v2226 = vpop.f32.mrf.mxu0
        %v2227 = vadd.f32 %v2094, %v2226
        %v2228 = vpop.f32.mrf.mxu0
        %v2229 = vadd.f32 %v2096, %v2228
        %2230 = vmatmul.bf16.gmra.mxu0 %v1461
        %v2231 = vpop.f32.mrf.mxu0
        %v2232 = vadd.f32 %v2099, %v2231
        %v2233 = vpop.f32.mrf.mxu0
        %v2234 = vadd.f32 %v2101, %v2233
        %2235 = vmatmul.bf16.gmra.mxu0 %v1465
        %v2236 = vpop.f32.mrf.mxu0
        %v2237 = vadd.f32 %v2104, %v2236
        %v2238 = vpop.f32.mrf.mxu0
        %v2239 = vadd.f32 %v2106, %v2238
        %2240 = vmatmul.bf16.gmra.mxu0 %v1469
        %v2241 = vpop.f32.mrf.mxu0
        %v2242 = vadd.f32 %v2109, %v2241
        %v2243 = vpop.f32.mrf.mxu0
        %v2244 = vadd.f32 %v2111, %v2243
        %2245 = vmatmul.bf16.gmra.mxu0 %v1473
        %v2246 = vpop.f32.mrf.mxu0
        %v2247 = vadd.f32 %v2114, %v2246
        %v2248 = vpop.f32.mrf.mxu0
        %v2249 = vadd.f32 %v2116, %v2248
        %2250 = vmatmul.bf16.gmra.mxu0 %v1477
        %v2251 = vpop.f32.mrf.mxu0
        %v2252 = vadd.f32 %v2119, %v2251
        %v2253 = vpop.f32.mrf.mxu0
        %v2254 = vadd.f32 %v2121, %v2253
        %2255 = vmatmul.bf16.gmra.mxu0 %v1481
        %v2256 = vpop.f32.mrf.mxu0
        %v2257 = vadd.f32 %v2124, %v2256
        %v2258 = vpop.f32.mrf.mxu0
        %v2259 = vadd.f32 %v2126, %v2258
        %2260 = vmatmul.bf16.gmra.mxu0 %v1485
        %v2261 = vpop.f32.mrf.mxu0
        %v2262 = vadd.f32 %v2129, %v2261
        %v2263 = vpop.f32.mrf.mxu0
        %v2264 = vadd.f32 %v2131, %v2263
        %2265 = vmatmul.bf16.gmra.mxu0 %v1489
        %v2266 = vpop.f32.mrf.mxu0
        %v2267 = vadd.f32 %v2134, %v2266
        %v2268 = vpop.f32.mrf.mxu0
        %v2269 = vadd.f32 %v2136, %v2268
        %2270 = vmatmul.bf16.gmra.mxu0 %v1493
        %v2271 = vpop.f32.mrf.mxu0
        %v2272 = vadd.f32 %v2139, %v2271
        %v2273 = vpop.f32.mrf.mxu0
        %v2274 = vadd.f32 %v2141, %v2273
        %2275 = vmatmul.bf16.gmra.mxu0 %v1497
        %v2276 = vpop.f32.mrf.mxu0
        %v2277 = vadd.f32 %v2144, %v2276
        %v2278 = vpop.f32.mrf.mxu0
        %v2279 = vadd.f32 %v2146, %v2278
        %2280 = vmatmul.bf16.gmra.mxu0 %v1501
        %v2281 = vpop.f32.mrf.mxu0
        %v2282 = vadd.f32 %v2149, %v2281
        %v2283 = vpop.f32.mrf.mxu0
        %v2284 = vadd.f32 %v2151, %v2283
        %2285 = vmatmul.bf16.gmra.mxu0 %v1505
        %v2286 = vpop.f32.mrf.mxu0
        %v2287 = vadd.f32 %v2154, %v2286
        %v2288 = vpop.f32.mrf.mxu0
        %v2289 = vadd.f32 %v2156, %v2288
        %2290 = vmatmul.bf16.gmra.mxu0 %v1509
        %v2291 = vpop.f32.mrf.mxu0
        %v2292 = vadd.f32 %v2159, %v2291
        %v2293 = vpop.f32.mrf.mxu0
        %v2294 = vadd.f32 %v2161, %v2293
        %2295 = vmatmul.bf16.gmra.mxu0 %v1513
        %v2296 = vpop.f32.mrf.mxu0
        %v2297 = vadd.f32 %v2164, %v2296
        %v2298 = vpop.f32.mrf.mxu0
        %v2299 = vadd.f32 %v2166, %v2298
        %2300 = vmatmul.bf16.gmra.mxu0 %v1517
        %v2301 = vpop.f32.mrf.mxu0
        %v2302 = vadd.f32 %v2169, %v2301
        %v2303 = vpop.f32.mrf.mxu0
        %v2304 = vadd.f32 %v2171, %v2303
        %2305 = vmatmul.bf16.gmra.mxu0 %v1521
        %v2306 = vpop.f32.mrf.mxu0
        %v2307 = vadd.f32 %v2174, %v2306
        %v2308 = vpop.f32.mrf.mxu0
        %2309 = vdwg.mxu0
        %v2310 = vunpack.c.l.bf16 %v295
        %v2311 = vunpack.c.l.bf16 %v296
        %v2312 = vunpack.c.l.bf16 %v297
        %v2313 = vunpack.c.l.bf16 %v298
        %v2314 = vunpack.c.l.bf16 %v299
        %v2315 = vunpack.c.l.bf16 %v300
        %v2316 = vunpack.c.l.bf16 %v301
        %v2317 = vunpack.c.l.bf16 %v302
        %v2318 = vunpack.c.l.bf16 %v303
        %v2319 = vunpack.c.l.bf16 %v304
        %v2320 = vunpack.c.l.bf16 %v305
        %v2321 = vunpack.c.l.bf16 %v306
        %v2322 = vunpack.c.l.bf16 %v307
        %v2323 = vunpack.c.l.bf16 %v308
        %v2324 = vunpack.c.l.bf16 %v309
        %v2325 = vunpack.c.l.bf16 %v310
        %v2326 = vunpack.c.l.bf16 %v311
        %v2327 = vunpack.c.l.bf16 %v312
        %v2328 = vunpack.c.l.bf16 %v313
        %v2329 = vunpack.c.l.bf16 %v314
        %v2330 = vunpack.c.l.bf16 %v315
        %v2331 = vunpack.c.l.bf16 %v316
        %v2332 = vunpack.c.l.bf16 %v317
        %v2333 = vunpack.c.l.bf16 %v318
        %v2334 = vunpack.c.l.bf16 %v319
        %v2335 = vunpack.c.l.bf16 %v320
        %v2336 = vunpack.c.l.bf16 %v321
        %v2337 = vunpack.c.l.bf16 %v322
        %v2338 = vunpack.c.l.bf16 %v323
        %v2339 = vunpack.c.l.bf16 %v324
        %v2340 = vunpack.c.l.bf16 %v325
        %v2341 = vunpack.c.l.bf16 %v326
        %v2342 = vunpack.c.l.bf16 %v327
        %v2343 = vunpack.c.l.bf16 %v328
        %v2344 = vunpack.c.l.bf16 %v329
        %v2345 = vunpack.c.l.bf16 %v330
        %v2346 = vunpack.c.l.bf16 %v331
        %v2347 = vunpack.c.l.bf16 %v332
        %v2348 = vunpack.c.l.bf16 %v333
        %v2349 = vunpack.c.l.bf16 %v334
        %v2350 = vunpack.c.l.bf16 %v335
        %v2351 = vunpack.c.l.bf16 %v336
        %v2352 = vunpack.c.l.bf16 %v337
        %v2353 = vunpack.c.l.bf16 %v338
        %v2354 = vunpack.c.l.bf16 %v339
        %v2355 = vunpack.c.l.bf16 %v340
        %v2356 = vunpack.c.l.bf16 %v341
        %v2357 = vunpack.c.l.bf16 %v342
        %v2358 = vunpack.c.l.bf16 %v343
        %v2359 = vadd.f32 %v2310, %v2187
        %v2360 = vadd.f32 %v2311, %v2189
        %v2361 = vadd.f32 %v2312, %v2192
        %v2362 = vadd.f32 %v2313, %v2194
        %v2363 = vadd.f32 %v2314, %v2197
        %v2364 = vadd.f32 %v2315, %v2199
        %v2365 = vadd.f32 %v2316, %v2202
        %v2366 = vadd.f32 %v2317, %v2204
        %v2367 = vadd.f32 %v2318, %v2207
        %v2368 = vadd.f32 %v2319, %v2209
        %v2369 = vadd.f32 %v2320, %v2212
        %v2370 = vadd.f32 %v2321, %v2214
        %v2371 = vadd.f32 %v2322, %v2217
        %v2372 = vadd.f32 %v2323, %v2219
        %v2373 = vadd.f32 %v2324, %v2222
        %v2374 = vadd.f32 %v2325, %v2224
        %v2375 = vadd.f32 %v2326, %v2227
        %v2376 = vadd.f32 %v2327, %v2229
        %v2377 = vadd.f32 %v2328, %v2232
        %v2378 = vadd.f32 %v2329, %v2234
        %v2379 = vadd.f32 %v2330, %v2237
        %v2380 = vadd.f32 %v2331, %v2239
        %v2381 = vadd.f32 %v2332, %v2242
        %v2382 = vadd.f32 %v2333, %v2244
        %v2383 = vadd.f32 %v2334, %v2247
        %v2384 = vadd.f32 %v2335, %v2249
        %v2385 = vadd.f32 %v2336, %v2252
        %v2386 = vadd.f32 %v2337, %v2254
        %v2387 = vadd.f32 %v2338, %v2257
        %v2388 = vadd.f32 %v2339, %v2259
        %v2389 = vadd.f32 %v2340, %v2262
        %v2390 = vadd.f32 %v2341, %v2264
        %v2391 = vadd.f32 %v2342, %v2267
        %v2392 = vadd.f32 %v2343, %v2269
        %v2393 = vadd.f32 %v2344, %v2272
        %v2394 = vadd.f32 %v2345, %v2274
        %v2395 = vadd.f32 %v2346, %v2277
        %v2396 = vadd.f32 %v2347, %v2279
        %v2397 = vadd.f32 %v2348, %v2282
        %v2398 = vadd.f32 %v2349, %v2284
        %v2399 = vadd.f32 %v2350, %v2287
        %v2400 = vadd.f32 %v2351, %v2289
        %v2401 = vadd.f32 %v2352, %v2292
        %v2402 = vadd.f32 %v2353, %v2294
        %v2403 = vadd.f32 %v2354, %v2297
        %v2404 = vadd.f32 %v2355, %v2299
        %v2405 = vadd.f32 %v2356, %v2302
        %v2406 = vadd.f32 %v2357, %v2304
        %v2407 = vadd.f32 %v2358, %v2307
        %v2408 = vld [vmem:[%s4] sm:$0x1]
        %v2410 = vperm.slane %v2408, 0
        %v2412 = vadd.f32 %v2359, %v2410
        %v2413 = vadd.f32 %v2360, %v2410
        %v2414 = vadd.f32 %v2361, %v2410
        %v2415 = vadd.f32 %v2362, %v2410
        %v2416 = vadd.f32 %v2363, %v2410
        %v2417 = vadd.f32 %v2364, %v2410
        %v2418 = vadd.f32 %v2365, %v2410
        %v2419 = vadd.f32 %v2366, %v2410
        %v2420 = vadd.f32 %v2367, %v2410
        %v2421 = vadd.f32 %v2368, %v2410
        %v2422 = vadd.f32 %v2369, %v2410
        %v2423 = vadd.f32 %v2370, %v2410
        %v2424 = vadd.f32 %v2371, %v2410
        %v2425 = vadd.f32 %v2372, %v2410
        %v2426 = vadd.f32 %v2373, %v2410
        %v2427 = vadd.f32 %v2374, %v2410
        %v2428 = vadd.f32 %v2375, %v2410
        %v2429 = vadd.f32 %v2376, %v2410
        %v2430 = vadd.f32 %v2377, %v2410
        %v2431 = vadd.f32 %v2378, %v2410
        %v2432 = vadd.f32 %v2379, %v2410
        %v2433 = vadd.f32 %v2380, %v2410
        %v2434 = vadd.f32 %v2381, %v2410
        %v2435 = vadd.f32 %v2382, %v2410
        %v2436 = vadd.f32 %v2383, %v2410
        %v2437 = vadd.f32 %v2384, %v2410
        %v2438 = vadd.f32 %v2385, %v2410
        %v2439 = vadd.f32 %v2386, %v2410
        %v2440 = vadd.f32 %v2387, %v2410
        %v2441 = vadd.f32 %v2388, %v2410
        %v2442 = vadd.f32 %v2389, %v2410
        %v2443 = vadd.f32 %v2390, %v2410
        %v2444 = vadd.f32 %v2391, %v2410
        %v2445 = vadd.f32 %v2392, %v2410
        %v2446 = vadd.f32 %v2393, %v2410
        %v2447 = vadd.f32 %v2394, %v2410
        %v2448 = vadd.f32 %v2395, %v2410
        %v2449 = vadd.f32 %v2396, %v2410
        %v2450 = vadd.f32 %v2397, %v2410
        %v2451 = vadd.f32 %v2398, %v2410
        %v2452 = vadd.f32 %v2399, %v2410
        %v2453 = vadd.f32 %v2400, %v2410
        %v2454 = vadd.f32 %v2401, %v2410
        %v2455 = vadd.f32 %v2402, %v2410
        %v2456 = vadd.f32 %v2403, %v2410
        %v2457 = vadd.f32 %v2404, %v2410
        %v2458 = vadd.f32 %v2405, %v2410
        %v2459 = vadd.f32 %v2406, %v2410
        %v2460 = vadd.f32 %v2407, %v2410
        %2461 = vst [vmem:[%s292] sm:$0xff] %v2412
        %2462 = vst [vmem:[%s292 + $0x8] sm:$0xff] %v2413
        %2463 = vst [vmem:[%s292 + $0x10] sm:$0xff] %v2414
        %2464 = vst [vmem:[%s292 + $0x18] sm:$0xff] %v2415
        %2465 = vst [vmem:[%s292 + $0x20] sm:$0xff] %v2416
        %2466 = vst [vmem:[%s292 + $0x28] sm:$0xff] %v2417
        %2467 = vst [vmem:[%s292 + $0x30] sm:$0xff] %v2418
        %2468 = vst [vmem:[%s292 + $0x38] sm:$0xff] %v2419
        %2469 = vst [vmem:[%s292 + $0x40] sm:$0xff] %v2420
        %2470 = vst [vmem:[%s292 + $0x48] sm:$0xff] %v2421
        %2471 = vst [vmem:[%s292 + $0x50] sm:$0xff] %v2422
        %2472 = vst [vmem:[%s292 + $0x58] sm:$0xff] %v2423
        %2473 = vst [vmem:[%s292 + $0x60] sm:$0xff] %v2424
        %2474 = vst [vmem:[%s292 + $0x68] sm:$0xff] %v2425
        %2475 = vst [vmem:[%s292 + $0x70] sm:$0xff] %v2426
        %2476 = vst [vmem:[%s292 + $0x78] sm:$0xff] %v2427
        %2477 = vst [vmem:[%s292 + $0x80] sm:$0xff] %v2428
        %2478 = vst [vmem:[%s292 + $0x88] sm:$0xff] %v2429
        %2479 = vst [vmem:[%s292 + $0x90] sm:$0xff] %v2430
        %2480 = vst [vmem:[%s292 + $0x98] sm:$0xff] %v2431
        %2481 = vst [vmem:[%s292 + $0xa0] sm:$0xff] %v2432
        %2482 = vst [vmem:[%s292 + $0xa8] sm:$0xff] %v2433
        %2483 = vst [vmem:[%s292 + $0xb0] sm:$0xff] %v2434
        %2484 = vst [vmem:[%s292 + $0xb8] sm:$0xff] %v2435
        %2485 = vst [vmem:[%s292 + $0xc0] sm:$0xff] %v2436
        %2486 = vst [vmem:[%s292 + $0xc8] sm:$0xff] %v2437
        %2487 = vst [vmem:[%s292 + $0xd0] sm:$0xff] %v2438
        %2488 = vst [vmem:[%s292 + $0xd8] sm:$0xff] %v2439
        %2489 = vst [vmem:[%s292 + $0xe0] sm:$0xff] %v2440
        %2490 = vst [vmem:[%s292 + $0xe8] sm:$0xff] %v2441
        %2491 = vst [vmem:[%s292 + $0xf0] sm:$0xff] %v2442
        %2492 = vst [vmem:[%s292 + $0xf8] sm:$0xff] %v2443
        %2493 = vst [vmem:[%s292 + $0x100] sm:$0xff] %v2444
        %2494 = vst [vmem:[%s292 + $0x108] sm:$0xff] %v2445
        %2495 = vst [vmem:[%s292 + $0x110] sm:$0xff] %v2446
        %2496 = vst [vmem:[%s292 + $0x118] sm:$0xff] %v2447
        %2497 = vst [vmem:[%s292 + $0x120] sm:$0xff] %v2448
        %2498 = vst [vmem:[%s292 + $0x128] sm:$0xff] %v2449
        %2499 = vst [vmem:[%s292 + $0x130] sm:$0xff] %v2450
        %2500 = vst [vmem:[%s292 + $0x138] sm:$0xff] %v2451
        %2501 = vst [vmem:[%s292 + $0x140] sm:$0xff] %v2452
        %2502 = vst [vmem:[%s292 + $0x148] sm:$0xff] %v2453
        %2503 = vst [vmem:[%s292 + $0x150] sm:$0xff] %v2454
        %2504 = vst [vmem:[%s292 + $0x158] sm:$0xff] %v2455
        %2505 = vst [vmem:[%s292 + $0x160] sm:$0xff] %v2456
        %2506 = vst [vmem:[%s292 + $0x168] sm:$0xff] %v2457
        %2507 = vst [vmem:[%s292 + $0x170] sm:$0xff] %v2458
        %2508 = vst [vmem:[%s292 + $0x178] sm:$0xff] %v2459
        %2509 = vst [vmem:[%s292 + $0x180] sm:$0xff] %v2460
        %s2510 = sand.u32 %s142, 1
        %s2511 = scalar_lea.sflag [#allocation4], %s2510
        %s2512 = sand.u32 %s142, 1
        %s2513 = smul.addr %s2512, 392
        %s2514 = scalar_lea.vmem [#allocation10], %s2513
        // Predicated region
        $region57: #{tpu_custom_call.1} parent=39 // pred_check
          %p2515 = pneg %p152
        $region58: #{tpu_custom_call.1} parent=39 // pred_check_branch
          %2517 = sbr.rel (%p2515) target = $region60
        $region59: #{tpu_custom_call.1} parent=39 // pred_region
          %s2518 = smul.u32 49, %s24
          %2520 = vsyncadd %s2511, 0
          %s2521 = smul.addr %s2518, 8
          %s2522 = scalar_lea.hbm %s5, %s2521
          %s2523 = sshll.u32 %s2514, 4
          %s2524 = int_to_ptr.vmem [resolvable:$true] %s2523
          %s2525 = sshll.u32 %s2522, 4
          %s2526 = int_to_ptr.hbm [resolvable:$true] %s2525
          %2531 = dma.vmem_to_hbm [thread:$0]  %s2524, 6272, %s2526, %s2511, 128, 128, 8
        $region60: #{tpu_custom_call.1} parent=39 // pred_fallthru
          _
      $region40: #{tpu_custom_call.1} parent=5 // pred_fallthru
        _
      %p2532 = scmp.le.s32.totalorder 2, %s19
      // Predicated region
      $region61: #{tpu_custom_call.1} parent=5 // pred_check
        %p2533 = pneg %p2532
      $region62: #{tpu_custom_call.1} parent=5 // pred_check_branch
        %2535 = sbr.rel (%p2533) target = $region64
      $region63: #{tpu_custom_call.1} parent=5 // pred_region
        %s2536 = ssub.s32 %s19, 2
        // Predicated region
        $region65: #{tpu_custom_call.1} parent=63 // pred_check
          %p2537 = pneg %p158
        $region66: #{tpu_custom_call.1} parent=63 // pred_check_branch
          %2539 = sbr.rel (%p2537) target = $region68
        $region67: #{tpu_custom_call.1} parent=63 // pred_region
          %s2540 = sand.u32 %s143, 1
          %s2541 = scalar_lea.sflag [#allocation4], %s2540
          %s2542 = sand.u32 %s143, 1
          %s2543 = smul.addr %s2542, 392
          %s2544 = scalar_lea.vmem [#allocation10], %s2543
          %2546 = dma.done %s2541, 6272
        $region68: #{tpu_custom_call.1} parent=63 // pred_fallthru
          _
      $region64: #{tpu_custom_call.1} parent=5 // pred_fallthru
        _
    $region6: #{tpu_custom_call.1} parent=1 // loop_footer
      %s23 = sadd.s32 1, %s19
    $region7: #{tpu_custom_call.1} parent=1 // loop_footer_branch
      %18 = sbr.rel target = $region3
    $region8: #{tpu_custom_call.1} parent=1 // loop_exit
      _
    %2547 = vsyncpa [#allocation3], 1
    %s2548 = scalar_lea.sflag [#allocation3], 1
    %2549 = vsyncpa %s2548, 1
    %2550 = vsyncpa [#allocation6], 1
    %2551 = vsyncpa [#allocation9], 1
    %2552 = vsyncpa [#allocation4], 1
    %s2553 = scalar_lea.sflag [#allocation4], 1
    %2554 = vsyncpa %s2553, 1

// kernel: tpu_custom_call.1
$region0: #{tpu_custom_call.1}
  #allocation0 [shape = 'u32[]', space=smem, size = 0x4, offset = 0x4, fixed_abs, tag = 'smem constant byte address 0x4 - core index']
  #allocation1 [shape = 'u32[72,128]{1,0:T(1,128)}', space=vmem, size = 0x9000, scoped, tag = 'internal scratch']
  %s0 = inlined_call_operand.hbm [shape: bf16[784,128], index: 0, kind: input, shape index: {}]
  %s1 = inlined_call_operand.hbm [shape: bf16[128,512], index: 1, kind: input, shape index: {}]
  %s2 = inlined_call_operand.hbm [shape: f32[1,512], index: 2, kind: input, shape index: {}]
  %s3 = inlined_call_operand.hbm [shape: bf16[512,128], index: 3, kind: input, shape index: {}]
  %s4 = inlined_call_operand.vmem [shape: f32[1,128], index: 4, kind: input, shape index: {}]
  %s5 = inlined_call_operand.hbm [shape: f32[784,128], index: 5, kind: output, shape index: {}]
  %s6 = sld [smem:[#allocation0]]
  $region69: #{tpu_custom_call.1} parent=0
    _
  %s8 = ssub.s32 1, %s6
  %s9 = scalar_select 0, %s8, %s6
  $region1: #{tpu_custom_call.1} parent=0
    #allocation2 [shape = 'u8[200704]{0}', space=vmem, size = 0x31000, scoped, tag = 'input window, operand 0']
    #allocation3 [shape = 's32[2]{0}', space=sflag, size = 0x8, scoped, tag = 'scoped memory for tpu_custom_call.1']
    #allocation4 [shape = 's32[2]{0}', space=sflag, size = 0x8, scoped, tag = 'scoped memory for tpu_custom_call.1']
    #allocation5 [shape = 'u8[131072]{0}', space=vmem, size = 0x20000, scoped, tag = 'input window, operand 1, single buffered']
    #allocation6 [shape = 's32[1]{0}', space=sflag, size = 0x4, scoped, tag = 'scoped memory for tpu_custom_call.1']
    #allocation7 [shape = 'u8[2048]{0}', space=vmem, size = 0x800, scoped, tag = 'input window, operand 2, single buffered']
    #allocation8 [shape = 'u8[131072]{0}', space=vmem, size = 0x20000, scoped, tag = 'input window, operand 3, single buffered']
    #allocation9 [shape = 's32[1]{0}', space=sflag, size = 0x4, scoped, tag = 'scoped memory for tpu_custom_call.1']
    #allocation10 [shape = 'u8[401408]{0}', space=vmem, size = 0x62000, scoped, tag = 'output window, operand 0']
    %10 = vsyncpa [#allocation3], 0
    %s11 = scalar_lea.sflag [#allocation3], 1
    %12 = vsyncpa %s11, 0
    %13 = vsyncpa [#allocation6], 0
    %14 = vsyncpa [#allocation9], 0
    %15 = vsyncpa [#allocation4], 0
    %s16 = scalar_lea.sflag [#allocation4], 1
    %17 = vsyncpa %s16, 0
    loop: start=0, step=1, limit=4
    $region2: #{tpu_custom_call.1} parent=1 // loop_pre_header
      _
    $region3: #{tpu_custom_call.1} parent=1 // loop_header
      %s19 = sphi 0, %s23
      %p20 = scmp.ge.s32.totalorder %s19, 4
      %s29 = sphi 0, %s31
      %s32 = sphi 0, %s29
      %s33 = sphi 0, %s32
      %s49 = sphi 0, %s33
      %s53 = sphi 0, %s53
      %s55 = sphi 0, %s53
      %s56 = sphi 0, %s55
      %s70 = sphi 0, %s56
      %s74 = sphi 0, %s74
      %s76 = sphi 0, %s74
      %s77 = sphi 0, %s76
      %s91 = sphi 0, %s77
      %s95 = sphi 0, %s95
      %s97 = sphi 0, %s95
      %s98 = sphi 0, %s97
      %s112 = sphi 0, %s98
      %s116 = sphi 0, %s116
      %s118 = sphi 0, %s116
      %s119 = sphi 0, %s118
      %s133 = sphi 0, %s119
      %s139 = sphi 0, %s141
      %s142 = sphi 0, %s139
      %s143 = sphi 0, %s142
      %s159 = sphi 0, %s143
    $region4: #{tpu_custom_call.1} parent=1 // loop_header_branch
      %22 = sbr.rel (%p20) target = $region8
    $region5: #{tpu_custom_call.1} parent=1 // loop_body
      %s24 = ssub.s32 %s19, 1
      %s25 = ssub.s32 %s19, 2
      %s26 = sadd.s32 %s19, 1
      %s27 = ssub.s32 %s19, %s26
      %p28 = scmp.eq.s32.totalorder %s27, 0
      %s30 = sadd.s32 %s29, 1
      %s31 = scalar_select %p28, %s29, %s30
      %p34 = pneg %p28
      %p35 = scmp.eq.s32.totalorder %s19, 1
      %p36 = por %p34, %p35
      %p37 = scmp.ne.s32.totalorder %s29, %s32
      %p38 = scmp.eq.s32.totalorder %s19, 0
      %p39 = por %p37, %p38
      %p40 = scmp.ne.s32.totalorder %s29, %s32
      %p41 = scmp.eq.s32.totalorder %s24, 1
      %p42 = por %p40, %p41
      %p43 = scmp.ne.s32.totalorder %s32, %s33
      %p44 = scmp.eq.s32.totalorder %s24, 0
      %p45 = por %p43, %p44
      %p46 = scmp.ne.s32.totalorder %s32, %s33
      %p47 = scmp.eq.s32.totalorder %s25, 1
      %p48 = por %p46, %p47
      %p50 = scmp.ne.s32.totalorder %s33, %s49
      %p51 = scmp.eq.s32.totalorder %s25, 0
      %p52 = por %p50, %p51
      %s54 = sadd.s32 %s53, 1
      %p57 = scmp.eq.s32.totalorder %s19, 1
      %p58 = scmp.ne.s32.totalorder %s53, %s55
      %p59 = scmp.eq.s32.totalorder %s19, 0
      %p60 = por %p58, %p59
      %p61 = scmp.ne.s32.totalorder %s53, %s55
      %p62 = scmp.eq.s32.totalorder %s24, 1
      %p63 = por %p61, %p62
      %p64 = scmp.ne.s32.totalorder %s55, %s56
      %p65 = scmp.eq.s32.totalorder %s24, 0
      %p66 = por %p64, %p65
      %p67 = scmp.ne.s32.totalorder %s55, %s56
      %p68 = scmp.eq.s32.totalorder %s25, 1
      %p69 = por %p67, %p68
      %p71 = scmp.ne.s32.totalorder %s56, %s70
      %p72 = scmp.eq.s32.totalorder %s25, 0
      %p73 = por %p71, %p72
      %s75 = sadd.s32 %s74, 1
      %p78 = scmp.eq.s32.totalorder %s19, 1
      %p79 = scmp.ne.s32.totalorder %s74, %s76
      %p80 = scmp.eq.s32.totalorder %s19, 0
      %p81 = por %p79, %p80
      %p82 = scmp.ne.s32.totalorder %s74, %s76
      %p83 = scmp.eq.s32.totalorder %s24, 1
      %p84 = por %p82, %p83
      %p85 = scmp.ne.s32.totalorder %s76, %s77
      %p86 = scmp.eq.s32.totalorder %s24, 0
      %p87 = por %p85, %p86
      %p88 = scmp.ne.s32.totalorder %s76, %s77
      %p89 = scmp.eq.s32.totalorder %s25, 1
      %p90 = por %p88, %p89
      %p92 = scmp.ne.s32.totalorder %s77, %s91
      %p93 = scmp.eq.s32.totalorder %s25, 0
      %p94 = por %p92, %p93
      %s96 = sadd.s32 %s95, 1
      %p99 = scmp.eq.s32.totalorder %s19, 1
      %p100 = scmp.ne.s32.totalorder %s95, %s97
      %p101 = scmp.eq.s32.totalorder %s19, 0
      %p102 = por %p100, %p101
      %p103 = scmp.ne.s32.totalorder %s95, %s97
      %p104 = scmp.eq.s32.totalorder %s24, 1
      %p105 = por %p103, %p104
      %p106 = scmp.ne.s32.totalorder %s97, %s98
      %p107 = scmp.eq.s32.totalorder %s24, 0
      %p108 = por %p106, %p107
      %p109 = scmp.ne.s32.totalorder %s97, %s98
      %p110 = scmp.eq.s32.totalorder %s25, 1
      %p111 = por %p109, %p110
      %p113 = scmp.ne.s32.totalorder %s98, %s112
      %p114 = scmp.eq.s32.totalorder %s25, 0
      %p115 = por %p113, %p114
      %s117 = sadd.s32 %s116, 1
      %p120 = scmp.eq.s32.totalorder %s19, 1
      %p121 = scmp.ne.s32.totalorder %s116, %s118
      %p122 = scmp.eq.s32.totalorder %s19, 0
      %p123 = por %p121, %p122
      %p124 = scmp.ne.s32.totalorder %s116, %s118
      %p125 = scmp.eq.s32.totalorder %s24, 1
      %p126 = por %p124, %p125
      %p127 = scmp.ne.s32.totalorder %s118, %s119
      %p128 = scmp.eq.s32.totalorder %s24, 0
      %p129 = por %p127, %p128
      %p130 = scmp.ne.s32.totalorder %s118, %s119
      %p131 = scmp.eq.s32.totalorder %s25, 1
      %p132 = por %p130, %p131
      %p134 = scmp.ne.s32.totalorder %s119, %s133
      %p135 = scmp.eq.s32.totalorder %s25, 0
      %p136 = por %p134, %p135
      %s137 = ssub.s32 %s19, %s26
      %p138 = scmp.eq.s32.totalorder %s137, 0
      %s140 = sadd.s32 %s139, 1
      %s141 = scalar_select %p138, %s139, %s140
      %p144 = pneg %p138
      %p145 = scmp.eq.s32.totalorder %s19, 1
      %p146 = por %p144, %p145
      %p147 = scmp.ne.s32.totalorder %s139, %s142
      %p148 = scmp.eq.s32.totalorder %s19, 0
      %p149 = por %p147, %p148
      %p150 = scmp.ne.s32.totalorder %s139, %s142
      %p151 = scmp.eq.s32.totalorder %s24, 1
      %p152 = por %p150, %p151
      %p153 = scmp.ne.s32.totalorder %s142, %s143
      %p154 = scmp.eq.s32.totalorder %s24, 0
      %p155 = por %p153, %p154
      %p156 = scmp.ne.s32.totalorder %s142, %s143
      %p157 = scmp.eq.s32.totalorder %s25, 1
      %p158 = por %p156, %p157
      %p160 = scmp.ne.s32.totalorder %s143, %s159
      %p161 = scmp.eq.s32.totalorder %s25, 0
      %p162 = por %p160, %p161
      %p163 = scmp.le.s32.totalorder 1, %s19
      %p164 = scmp.lt.s32.totalorder %s19, 3
      %p165 = pnand %p163, %p164
      %p166 = pneg %p165
      // Predicated region
      $region9: #{tpu_custom_call.1} parent=5 // pred_check
        _
      $region10: #{tpu_custom_call.1} parent=5 // pred_check_branch
        %168 = sbr.rel (%p165) target = $region12
      $region11: #{tpu_custom_call.1} parent=5 // pred_region
        %s169 = ssub.s32 %s19, 1
        // Predicated region
        $region13: #{tpu_custom_call.1} parent=11 // pred_check
          %p170 = pneg %p66
        $region14: #{tpu_custom_call.1} parent=11 // pred_check_branch
          %172 = sbr.rel (%p170) target = $region16
        $region15: #{tpu_custom_call.1} parent=11 // pred_region
          %174 = vsyncadd [#allocation6], 0
          %s175 = sshll.u32 %s1, 4
          %s176 = int_to_ptr.hbm [resolvable:$true] %s175
          %s177 = sshll.u32 [#allocation5], 4
          %s178 = int_to_ptr.vmem [resolvable:$true] %s177
          %183 = dma.hbm_to_vmem [thread:$0]  %s176, 4096, %s178, [#allocation6], 256, 256, 16
        $region16: #{tpu_custom_call.1} parent=11 // pred_fallthru
          _
        // Predicated region
        $region17: #{tpu_custom_call.1} parent=11 // pred_check
          %p184 = pneg %p87
        $region18: #{tpu_custom_call.1} parent=11 // pred_check_branch
          %186 = sbr.rel (%p184) target = $region20
        $region19: #{tpu_custom_call.1} parent=11 // pred_region
          %188 = vsyncadd [#allocation6], 0
          %s190 = sshll.u32 %s2, 4
          %s191 = int_to_ptr.hbm [resolvable:$true] %s190
          %s192 = sshll.u32 [#allocation7], 4
          %s193 = int_to_ptr.vmem [resolvable:$true] %s192
          %195 = dma.hbm_to_vmem [thread:$0]  %s191, 64, %s193, [#allocation6]
        $region20: #{tpu_custom_call.1} parent=11 // pred_fallthru
          _
        // Predicated region
        $region21: #{tpu_custom_call.1} parent=11 // pred_check
          %p196 = pneg %p108
        $region22: #{tpu_custom_call.1} parent=11 // pred_check_branch
          %198 = sbr.rel (%p196) target = $region24
        $region23: #{tpu_custom_call.1} parent=11 // pred_region
          %200 = vsyncadd [#allocation9], 0
          %s201 = sshll.u32 %s3, 4
          %s202 = int_to_ptr.hbm [resolvable:$true] %s201
          %s203 = sshll.u32 [#allocation8], 4
          %s204 = int_to_ptr.vmem [resolvable:$true] %s203
          %209 = dma.hbm_to_vmem [thread:$0]  %s202, 4096, %s204, [#allocation9], 64, 64, 4
        $region24: #{tpu_custom_call.1} parent=11 // pred_fallthru
          _
        // Predicated region
        $region25: #{tpu_custom_call.1} parent=11 // pred_check
          %p210 = pneg %p129
        $region26: #{tpu_custom_call.1} parent=11 // pred_check_branch
          %212 = sbr.rel (%p210) target = $region28
        $region27: #{tpu_custom_call.1} parent=11 // pred_region
          _
        $region28: #{tpu_custom_call.1} parent=11 // pred_fallthru
          _
      $region12: #{tpu_custom_call.1} parent=5 // pred_fallthru
        _
      %p213 = scmp.lt.s32.totalorder %s19, 2
      // Predicated region
      $region29: #{tpu_custom_call.1} parent=5 // pred_check
        %p214 = pneg %p213
      $region30: #{tpu_custom_call.1} parent=5 // pred_check_branch
        %216 = sbr.rel (%p214) target = $region32
      $region31: #{tpu_custom_call.1} parent=5 // pred_region
        // Predicated region
        $region33: #{tpu_custom_call.1} parent=31 // pred_check
          %p217 = pneg %p39
        $region34: #{tpu_custom_call.1} parent=31 // pred_check_branch
          %219 = sbr.rel (%p217) target = $region36
        $region35: #{tpu_custom_call.1} parent=31 // pred_region
          %s220 = sand.u32 %s29, 1
          %s221 = scalar_lea.sflag [#allocation3], %s220
          %s222 = sand.u32 %s29, 1
          %s223 = smul.addr %s222, 196
          %s224 = scalar_lea.vmem [#allocation2], %s223
          %s225 = smul.u32 49, %s19
          %227 = vsyncadd %s221, 0
          %s228 = smul.addr %s225, 4
          %s229 = scalar_lea.hbm %s0, %s228
          %s230 = sshll.u32 %s229, 4
          %s231 = int_to_ptr.hbm [resolvable:$true] %s230
          %s232 = sshll.u32 %s224, 4
          %s233 = int_to_ptr.vmem [resolvable:$true] %s232
          %238 = dma.hbm_to_vmem [thread:$0]  %s231, 3136, %s233, %s221, 64, 64, 4
        $region36: #{tpu_custom_call.1} parent=31 // pred_fallthru
          _
      $region32: #{tpu_custom_call.1} parent=5 // pred_fallthru
        _
      %p239 = scmp.le.s32.totalorder 1, %s19
      %p240 = scmp.lt.s32.totalorder %s19, 3
      %p241 = pnand %p239, %p240
      %p242 = pneg %p241
      // Predicated region
      $region37: #{tpu_custom_call.1} parent=5 // pred_check
        _
      $region38: #{tpu_custom_call.1} parent=5 // pred_check_branch
        %244 = sbr.rel (%p241) target = $region40
      $region39: #{tpu_custom_call.1} parent=5 // pred_region
        %s245 = ssub.s32 %s19, 1
        %s246 = sand.u32 %s32, 1
        %s247 = scalar_lea.sflag [#allocation3], %s246
        %s248 = sand.u32 %s32, 1
        %s249 = smul.addr %s248, 196
        %s250 = scalar_lea.vmem [#allocation2], %s249
        // Predicated region
        $region41: #{tpu_custom_call.1} parent=39 // pred_check
          %p251 = pneg %p45
        $region42: #{tpu_custom_call.1} parent=39 // pred_check_branch
          %253 = sbr.rel (%p251) target = $region44
        $region43: #{tpu_custom_call.1} parent=39 // pred_region
          %255 = dma.done %s247, 3136
        $region44: #{tpu_custom_call.1} parent=39 // pred_fallthru
          _
        // Predicated region
        $region45: #{tpu_custom_call.1} parent=39 // pred_check
          %p256 = pneg %p66
        $region46: #{tpu_custom_call.1} parent=39 // pred_check_branch
          %258 = sbr.rel (%p256) target = $region48
        $region47: #{tpu_custom_call.1} parent=39 // pred_region
          %260 = dma.done [#allocation6], 4096
        $region48: #{tpu_custom_call.1} parent=39 // pred_fallthru
          _
        // Predicated region
        $region49: #{tpu_custom_call.1} parent=39 // pred_check
          %p261 = pneg %p87
        $region50: #{tpu_custom_call.1} parent=39 // pred_check_branch
          %263 = sbr.rel (%p261) target = $region52
        $region51: #{tpu_custom_call.1} parent=39 // pred_region
          %265 = dma.done [#allocation6], 64
        $region52: #{tpu_custom_call.1} parent=39 // pred_fallthru
          _
        // Predicated region
        $region53: #{tpu_custom_call.1} parent=39 // pred_check
          %p266 = pneg %p108
        $region54: #{tpu_custom_call.1} parent=39 // pred_check_branch
          %268 = sbr.rel (%p266) target = $region56
        $region55: #{tpu_custom_call.1} parent=39 // pred_region
          %270 = dma.done [#allocation9], 4096
        $region56: #{tpu_custom_call.1} parent=39 // pred_fallthru
          _
        %s271 = sand.u32 %s32, 1
        %s272 = scalar_lea.sflag [#allocation3], %s271
        %s273 = sand.u32 %s32, 1
        %s274 = smul.addr %s273, 196
        %s275 = scalar_lea.vmem [#allocation2], %s274
        %p276 = pneg %p45
        %p277 = pneg %p42
        %p278 = pneg %p66
        %p279 = pneg %p63
        %p280 = pneg %p87
        %p281 = pneg %p84
        %p282 = pneg %p108
        %p283 = pneg %p105
        %p284 = pneg %p129
        %p285 = pneg %p126
        %p286 = pneg %p155
        %p287 = pneg %p152
        %s288 = sand.u32 %s142, 1
        %s289 = scalar_lea.sflag [#allocation4], %s288
        %s290 = sand.u32 %s142, 1
        %s291 = smul.addr %s290, 392
        %s292 = scalar_lea.vmem [#allocation10], %s291
        %s293 = smul.u32 49, %s24
        %s294 = smul.u32 49, %s24
        %v295 = vld [vmem:[%s250] sm:$0xf]
        %v296 = vld [vmem:[%s250 + $0x4] sm:$0xf]
        %v297 = vld [vmem:[%s250 + $0x8] sm:$0xf]
        %v298 = vld [vmem:[%s250 + $0xc] sm:$0xf]
        %v299 = vld [vmem:[%s250 + $0x10] sm:$0xf]
        %v300 = vld [vmem:[%s250 + $0x14] sm:$0xf]
        %v301 = vld [vmem:[%s250 + $0x18] sm:$0xf]
        %v302 = vld [vmem:[%s250 + $0x1c] sm:$0xf]
        %v303 = vld [vmem:[%s250 + $0x20] sm:$0xf]
        %v304 = vld [vmem:[%s250 + $0x24] sm:$0xf]
        %v305 = vld [vmem:[%s250 + $0x28] sm:$0xf]
        %v306 = vld [vmem:[%s250 + $0x2c] sm:$0xf]
        %v307 = vld [vmem:[%s250 + $0x30] sm:$0xf]
        %v308 = vld [vmem:[%s250 + $0x34] sm:$0xf]
        %v309 = vld [vmem:[%s250 + $0x38] sm:$0xf]
        %v310 = vld [vmem:[%s250 + $0x3c] sm:$0xf]
        %v311 = vld [vmem:[%s250 + $0x40] sm:$0xf]
        %v312 = vld [vmem:[%s250 + $0x44] sm:$0xf]
        %v313 = vld [vmem:[%s250 + $0x48] sm:$0xf]
        %v314 = vld [vmem:[%s250 + $0x4c] sm:$0xf]
        %v315 = vld [vmem:[%s250 + $0x50] sm:$0xf]
        %v316 = vld [vmem:[%s250 + $0x54] sm:$0xf]
        %v317 = vld [vmem:[%s250 + $0x58] sm:$0xf]
        %v318 = vld [vmem:[%s250 + $0x5c] sm:$0xf]
        %v319 = vld [vmem:[%s250 + $0x60] sm:$0xf]
        %v320 = vld [vmem:[%s250 + $0x64] sm:$0xf]
        %v321 = vld [vmem:[%s250 + $0x68] sm:$0xf]
        %v322 = vld [vmem:[%s250 + $0x6c] sm:$0xf]
        %v323 = vld [vmem:[%s250 + $0x70] sm:$0xf]
        %v324 = vld [vmem:[%s250 + $0x74] sm:$0xf]
        %v325 = vld [vmem:[%s250 + $0x78] sm:$0xf]
        %v326 = vld [vmem:[%s250 + $0x7c] sm:$0xf]
        %v327 = vld [vmem:[%s250 + $0x80] sm:$0xf]
        %v328 = vld [vmem:[%s250 + $0x84] sm:$0xf]
        %v329 = vld [vmem:[%s250 + $0x88] sm:$0xf]
        %v330 = vld [vmem:[%s250 + $0x8c] sm:$0xf]
        %v331 = vld [vmem:[%s250 + $0x90] sm:$0xf]
        %v332 = vld [vmem:[%s250 + $0x94] sm:$0xf]
        %v333 = vld [vmem:[%s250 + $0x98] sm:$0xf]
        %v334 = vld [vmem:[%s250 + $0x9c] sm:$0xf]
        %v335 = vld [vmem:[%s250 + $0xa0] sm:$0xf]
        %v336 = vld [vmem:[%s250 + $0xa4] sm:$0xf]
        %v337 = vld [vmem:[%s250 + $0xa8] sm:$0xf]
        %v338 = vld [vmem:[%s250 + $0xac] sm:$0xf]
        %v339 = vld [vmem:[%s250 + $0xb0] sm:$0xf]
        %v340 = vld [vmem:[%s250 + $0xb4] sm:$0xf]
        %v341 = vld [vmem:[%s250 + $0xb8] sm:$0xf]
        %v342 = vld [vmem:[%s250 + $0xbc] sm:$0xf]
        %v343 = vld [vmem:[%s250 + $0xc0] sm:$0xf]
        %v344 = vld [vmem:[#allocation5] sm:$0xff]
        %v345 = vld [vmem:[#allocation5 + $0x8] sm:$0xff]
        %v346 = vld [vmem:[#allocation5 + $0x10] sm:$0xff]
        %v347 = vld [vmem:[#allocation5 + $0x18] sm:$0xff]
        %v348 = vld [vmem:[#allocation5 + $0x20] sm:$0xff]
        %v349 = vld [vmem:[#allocation5 + $0x28] sm:$0xff]
        %v350 = vld [vmem:[#allocation5 + $0x30] sm:$0xff]
        %v351 = vld [vmem:[#allocation5 + $0x38] sm:$0xff]
        %v352 = vld [vmem:[#allocation5 + $0x40] sm:$0xff]
        %v353 = vld [vmem:[#allocation5 + $0x48] sm:$0xff]
        %v354 = vld [vmem:[#allocation5 + $0x50] sm:$0xff]
        %v355 = vld [vmem:[#allocation5 + $0x58] sm:$0xff]
        %v356 = vld [vmem:[#allocation5 + $0x60] sm:$0xff]
        %v357 = vld [vmem:[#allocation5 + $0x68] sm:$0xff]
        %v358 = vld [vmem:[#allocation5 + $0x70] sm:$0xff]
        %v359 = vld [vmem:[#allocation5 + $0x78] sm:$0xff]
        %v360 = vld [vmem:[#allocation5 + $0x80] sm:$0xff]
        %v361 = vld [vmem:[#allocation5 + $0x88] sm:$0xff]
        %v362 = vld [vmem:[#allocation5 + $0x90] sm:$0xff]
        %v363 = vld [vmem:[#allocation5 + $0x98] sm:$0xff]
        %v364 = vld [vmem:[#allocation5 + $0xa0] sm:$0xff]
        %v365 = vld [vmem:[#allocation5 + $0xa8] sm:$0xff]
        %v366 = vld [vmem:[#allocation5 + $0xb0] sm:$0xff]
        %v367 = vld [vmem:[#allocation5 + $0xb8] sm:$0xff]
        %v368 = vld [vmem:[#allocation5 + $0xc0] sm:$0xff]
        %v369 = vld [vmem:[#allocation5 + $0xc8] sm:$0xff]
        %v370 = vld [vmem:[#allocation5 + $0xd0] sm:$0xff]
        %v371 = vld [vmem:[#allocation5 + $0xd8] sm:$0xff]
        %v372 = vld [vmem:[#allocation5 + $0xe0] sm:$0xff]
        %v373 = vld [vmem:[#allocation5 + $0xe8] sm:$0xff]
        %v374 = vld [vmem:[#allocation5 + $0xf0] sm:$0xff]
        %v375 = vld [vmem:[#allocation5 + $0xf8] sm:$0xff]
        %v376 = vld [vmem:[#allocation7] sm:$0xf]
        %v378 = vperm.slane %v376, 0
        %v379 = vperm.slane %v376, 1
        %v380 = vperm.slane %v376, 2
        %v381 = vperm.slane %v376, 3
        %v435 = vunpack.c.l.b16 %v295
        %v436 = vunpack.c.l.b16 %v296
        %v437 = vunpack.c.l.b16 %v297
        %v438 = vunpack.c.l.b16 %v298
        %v439 = vunpack.c.l.b16 %v299
        %v440 = vunpack.c.l.b16 %v300
        %v441 = vunpack.c.l.b16 %v301
        %v442 = vunpack.c.l.b16 %v302
        %v443 = vunpack.c.l.b16 %v303
        %v444 = vunpack.c.l.b16 %v304
        %v445 = vunpack.c.l.b16 %v305
        %v446 = vunpack.c.l.b16 %v306
        %v447 = vunpack.c.l.b16 %v307
        %v448 = vunpack.c.l.b16 %v308
        %v449 = vunpack.c.l.b16 %v309
        %v450 = vunpack.c.l.b16 %v310
        %v451 = vunpack.c.l.b16 %v311
        %v452 = vunpack.c.l.b16 %v312
        %v453 = vunpack.c.l.b16 %v313
        %v454 = vunpack.c.l.b16 %v314
        %v455 = vunpack.c.l.b16 %v315
        %v456 = vunpack.c.l.b16 %v316
        %v457 = vunpack.c.l.b16 %v317
        %v458 = vunpack.c.l.b16 %v318
        %v459 = vunpack.c.l.b16 %v319
        %v460 = vunpack.c.l.b16 %v320
        %v461 = vunpack.c.l.b16 %v321
        %v462 = vunpack.c.l.b16 %v322
        %v463 = vunpack.c.l.b16 %v323
        %v464 = vunpack.c.l.b16 %v324
        %v465 = vunpack.c.l.b16 %v325
        %v466 = vunpack.c.l.b16 %v326
        %v467 = vunpack.c.l.b16 %v327
        %v468 = vunpack.c.l.b16 %v328
        %v469 = vunpack.c.l.b16 %v329
        %v470 = vunpack.c.l.b16 %v330
        %v471 = vunpack.c.l.b16 %v331
        %v472 = vunpack.c.l.b16 %v332
        %v473 = vunpack.c.l.b16 %v333
        %v474 = vunpack.c.l.b16 %v334
        %v475 = vunpack.c.l.b16 %v335
        %v476 = vunpack.c.l.b16 %v336
        %v477 = vunpack.c.l.b16 %v337
        %v478 = vunpack.c.l.b16 %v338
        %v479 = vunpack.c.l.b16 %v339
        %v480 = vunpack.c.l.b16 %v340
        %v481 = vunpack.c.l.b16 %v341
        %v482 = vunpack.c.l.b16 %v342
        %v483 = vunpack.c.l.b16 %v343
        %v484 = vpack.c.b16 %v436, %v435
        %v485 = vpack.c.b16 %v438, %v437
        %v486 = vpack.c.b16 %v440, %v439
        %v487 = vpack.c.b16 %v442, %v441
        %v488 = vpack.c.b16 %v444, %v443
        %v489 = vpack.c.b16 %v446, %v445
        %v490 = vpack.c.b16 %v448, %v447
        %v491 = vpack.c.b16 %v450, %v449
        %v492 = vpack.c.b16 %v452, %v451
        %v493 = vpack.c.b16 %v454, %v453
        %v494 = vpack.c.b16 %v456, %v455
        %v495 = vpack.c.b16 %v458, %v457
        %v496 = vpack.c.b16 %v460, %v459
        %v497 = vpack.c.b16 %v462, %v461
        %v498 = vpack.c.b16 %v464, %v463
        %v499 = vpack.c.b16 %v466, %v465
        %v500 = vpack.c.b16 %v468, %v467
        %v501 = vpack.c.b16 %v470, %v469
        %v502 = vpack.c.b16 %v472, %v471
        %v503 = vpack.c.b16 %v474, %v473
        %v504 = vpack.c.b16 %v476, %v475
        %v505 = vpack.c.b16 %v478, %v477
        %v506 = vpack.c.b16 %v480, %v479
        %v507 = vpack.c.b16 %v482, %v481
        %v508 = vpack.c.b16 %v483, %v483
        %v566 = vunpack.c.l.b16 %v344
        %v567 = vunpack.c.h.b16 %v344
        %v568 = vunpack.c.l.b16 %v345
        %v569 = vunpack.c.h.b16 %v345
        %v570 = vunpack.c.l.b16 %v346
        %v571 = vunpack.c.h.b16 %v346
        %v572 = vunpack.c.l.b16 %v347
        %v573 = vunpack.c.h.b16 %v347
        %v574 = vunpack.c.l.b16 %v348
        %v575 = vunpack.c.h.b16 %v348
        %v576 = vunpack.c.l.b16 %v349
        %v577 = vunpack.c.h.b16 %v349
        %v578 = vunpack.c.l.b16 %v350
        %v579 = vunpack.c.h.b16 %v350
        %v580 = vunpack.c.l.b16 %v351
        %v581 = vunpack.c.h.b16 %v351
        %v582 = vunpack.c.l.b16 %v352
        %v583 = vunpack.c.h.b16 %v352
        %v584 = vunpack.c.l.b16 %v353
        %v585 = vunpack.c.h.b16 %v353
        %v586 = vunpack.c.l.b16 %v354
        %v587 = vunpack.c.h.b16 %v354
        %v588 = vunpack.c.l.b16 %v355
        %v589 = vunpack.c.h.b16 %v355
        %v590 = vunpack.c.l.b16 %v356
        %v591 = vunpack.c.h.b16 %v356
        %v592 = vunpack.c.l.b16 %v357
        %v593 = vunpack.c.h.b16 %v357
        %v594 = vunpack.c.l.b16 %v358
        %v595 = vunpack.c.h.b16 %v358
        %v596 = vunpack.c.l.b16 %v359
        %v597 = vunpack.c.h.b16 %v359
        %v598 = vunpack.c.l.b16 %v360
        %v599 = vunpack.c.h.b16 %v360
        %v600 = vunpack.c.l.b16 %v361
        %v601 = vunpack.c.h.b16 %v361
        %v602 = vunpack.c.l.b16 %v362
        %v603 = vunpack.c.h.b16 %v362
        %v604 = vunpack.c.l.b16 %v363
        %v605 = vunpack.c.h.b16 %v363
        %v606 = vunpack.c.l.b16 %v364
        %v607 = vunpack.c.h.b16 %v364
        %v608 = vunpack.c.l.b16 %v365
        %v609 = vunpack.c.h.b16 %v365
        %v610 = vunpack.c.l.b16 %v366
        %v611 = vunpack.c.h.b16 %v366
        %v612 = vunpack.c.l.b16 %v367
        %v613 = vunpack.c.h.b16 %v367
        %v614 = vunpack.c.l.b16 %v368
        %v615 = vunpack.c.h.b16 %v368
        %v616 = vunpack.c.l.b16 %v369
        %v617 = vunpack.c.h.b16 %v369
        %v618 = vunpack.c.l.b16 %v370
        %v619 = vunpack.c.h.b16 %v370
        %v620 = vunpack.c.l.b16 %v371
        %v621 = vunpack.c.h.b16 %v371
        %v622 = vunpack.c.l.b16 %v372
        %v623 = vunpack.c.h.b16 %v372
        %v624 = vunpack.c.l.b16 %v373
        %v625 = vunpack.c.h.b16 %v373
        %v626 = vunpack.c.l.b16 %v374
        %v627 = vunpack.c.h.b16 %v374
        %v628 = vunpack.c.l.b16 %v375
        %v629 = vunpack.c.h.b16 %v375
        %v630 = vpack.c.b16 %v570, %v566
        %v631 = vpack.c.b16 %v571, %v567
        %v632 = vpack.c.b16 %v572, %v568
        %v633 = vpack.c.b16 %v573, %v569
        %v634 = vpack.c.b16 %v578, %v574
        %v635 = vpack.c.b16 %v579, %v575
        %v636 = vpack.c.b16 %v580, %v576
        %v637 = vpack.c.b16 %v581, %v577
        %v638 = vpack.c.b16 %v586, %v582
        %v639 = vpack.c.b16 %v587, %v583
        %v640 = vpack.c.b16 %v588, %v584
        %v641 = vpack.c.b16 %v589, %v585
        %v642 = vpack.c.b16 %v594, %v590
        %v643 = vpack.c.b16 %v595, %v591
        %v644 = vpack.c.b16 %v596, %v592
        %v645 = vpack.c.b16 %v597, %v593
        %v646 = vpack.c.b16 %v602, %v598
        %v647 = vpack.c.b16 %v603, %v599
        %v648 = vpack.c.b16 %v604, %v600
        %v649 = vpack.c.b16 %v605, %v601
        %v650 = vpack.c.b16 %v610, %v606
        %v651 = vpack.c.b16 %v611, %v607
        %v652 = vpack.c.b16 %v612, %v608
        %v653 = vpack.c.b16 %v613, %v609
        %v654 = vpack.c.b16 %v618, %v614
        %v655 = vpack.c.b16 %v619, %v615
        %v656 = vpack.c.b16 %v620, %v616
        %v657 = vpack.c.b16 %v621, %v617
        %v658 = vpack.c.b16 %v626, %v622
        %v659 = vpack.c.b16 %v627, %v623
        %v660 = vpack.c.b16 %v628, %v624
        %v661 = vpack.c.b16 %v629, %v625
        %694 = vmatpush.bf16.msra.mxu0 %v658
        %695 = vmatpush.bf16.msra.mxu0 %v654
        %696 = vmatpush.bf16.msra.mxu0 %v650
        %697 = vmatpush.bf16.msra.mxu0 %v646
        %698 = vmatpush.bf16.msra.mxu0 %v642
        %699 = vmatpush.bf16.msra.mxu0 %v638
        %700 = vmatpush.bf16.msra.mxu0 %v634
        %701 = vmatpush.bf16.msra.mxu0 %v630
        %702 = vmatmul.bf16.gmra.mxu0 %v484
        %v703 = vpop.f32.mrf.mxu0
        %v704 = vadd.f32 %v378, %v703
        %v705 = vpop.f32.mrf.mxu0
        %v706 = vadd.f32 %v378, %v705
        %707 = vmatmul.bf16.gmra.mxu0 %v485
        %v708 = vpop.f32.mrf.mxu0
        %v709 = vadd.f32 %v378, %v708
        %v710 = vpop.f32.mrf.mxu0
        %v711 = vadd.f32 %v378, %v710
        %712 = vmatmul.bf16.gmra.mxu0 %v486
        %v713 = vpop.f32.mrf.mxu0
        %v714 = vadd.f32 %v378, %v713
        %v715 = vpop.f32.mrf.mxu0
        %v716 = vadd.f32 %v378, %v715
        %717 = vmatmul.bf16.gmra.mxu0 %v487
        %v718 = vpop.f32.mrf.mxu0
        %v719 = vadd.f32 %v378, %v718
        %v720 = vpop.f32.mrf.mxu0
        %v721 = vadd.f32 %v378, %v720
        %722 = vmatmul.bf16.gmra.mxu0 %v488
        %v723 = vpop.f32.mrf.mxu0
        %v724 = vadd.f32 %v378, %v723
        %v725 = vpop.f32.mrf.mxu0
        %v726 = vadd.f32 %v378, %v725
        %727 = vmatmul.bf16.gmra.mxu0 %v489
        %v728 = vpop.f32.mrf.mxu0
        %v729 = vadd.f32 %v378, %v728
        %v730 = vpop.f32.mrf.mxu0
        %v731 = vadd.f32 %v378, %v730
        %732 = vmatmul.bf16.gmra.mxu0 %v490
        %v733 = vpop.f32.mrf.mxu0
        %v734 = vadd.f32 %v378, %v733
        %v735 = vpop.f32.mrf.mxu0
        %v736 = vadd.f32 %v378, %v735
        %737 = vmatmul.bf16.gmra.mxu0 %v491
        %v738 = vpop.f32.mrf.mxu0
        %v739 = vadd.f32 %v378, %v738
        %v740 = vpop.f32.mrf.mxu0
        %v741 = vadd.f32 %v378, %v740
        %742 = vmatmul.bf16.gmra.mxu0 %v492
        %v743 = vpop.f32.mrf.mxu0
        %v744 = vadd.f32 %v378, %v743
        %v745 = vpop.f32.mrf.mxu0
        %v746 = vadd.f32 %v378, %v745
        %747 = vmatmul.bf16.gmra.mxu0 %v493
        %v748 = vpop.f32.mrf.mxu0
        %v749 = vadd.f32 %v378, %v748
        %v750 = vpop.f32.mrf.mxu0
        %v751 = vadd.f32 %v378, %v750
        %752 = vmatmul.bf16.gmra.mxu0 %v494
        %v753 = vpop.f32.mrf.mxu0
        %v754 = vadd.f32 %v378, %v753
        %v755 = vpop.f32.mrf.mxu0
        %v756 = vadd.f32 %v378, %v755
        %757 = vmatmul.bf16.gmra.mxu0 %v495
        %v758 = vpop.f32.mrf.mxu0
        %v759 = vadd.f32 %v378, %v758
        %v760 = vpop.f32.mrf.mxu0
        %v761 = vadd.f32 %v378, %v760
        %762 = vmatmul.bf16.gmra.mxu0 %v496
        %v763 = vpop.f32.mrf.mxu0
        %v764 = vadd.f32 %v378, %v763
        %v765 = vpop.f32.mrf.mxu0
        %v766 = vadd.f32 %v378, %v765
        %767 = vmatmul.bf16.gmra.mxu0 %v497
        %v768 = vpop.f32.mrf.mxu0
        %v769 = vadd.f32 %v378, %v768
        %v770 = vpop.f32.mrf.mxu0
        %v771 = vadd.f32 %v378, %v770
        %772 = vmatmul.bf16.gmra.mxu0 %v498
        %v773 = vpop.f32.mrf.mxu0
        %v774 = vadd.f32 %v378, %v773
        %v775 = vpop.f32.mrf.mxu0
        %v776 = vadd.f32 %v378, %v775
        %777 = vmatmul.bf16.gmra.mxu0 %v499
        %v778 = vpop.f32.mrf.mxu0
        %v779 = vadd.f32 %v378, %v778
        %v780 = vpop.f32.mrf.mxu0
        %v781 = vadd.f32 %v378, %v780
        %782 = vmatmul.bf16.gmra.mxu0 %v500
        %v783 = vpop.f32.mrf.mxu0
        %v784 = vadd.f32 %v378, %v783
        %v785 = vpop.f32.mrf.mxu0
        %v786 = vadd.f32 %v378, %v785
        %787 = vmatmul.bf16.gmra.mxu0 %v501
        %v788 = vpop.f32.mrf.mxu0
        %v789 = vadd.f32 %v378, %v788
        %v790 = vpop.f32.mrf.mxu0
        %v791 = vadd.f32 %v378, %v790
        %792 = vmatmul.bf16.gmra.mxu0 %v502
        %v793 = vpop.f32.mrf.mxu0
        %v794 = vadd.f32 %v378, %v793
        %v795 = vpop.f32.mrf.mxu0
        %v796 = vadd.f32 %v378, %v795
        %797 = vmatmul.bf16.gmra.mxu0 %v503
        %v798 = vpop.f32.mrf.mxu0
        %v799 = vadd.f32 %v378, %v798
        %v800 = vpop.f32.mrf.mxu0
        %v801 = vadd.f32 %v378, %v800
        %802 = vmatmul.bf16.gmra.mxu0 %v504
        %v803 = vpop.f32.mrf.mxu0
        %v804 = vadd.f32 %v378, %v803
        %v805 = vpop.f32.mrf.mxu0
        %v806 = vadd.f32 %v378, %v805
        %807 = vmatmul.bf16.gmra.mxu0 %v505
        %v808 = vpop.f32.mrf.mxu0
        %v809 = vadd.f32 %v378, %v808
        %v810 = vpop.f32.mrf.mxu0
        %v811 = vadd.f32 %v378, %v810
        %812 = vmatmul.bf16.gmra.mxu0 %v506
        %v813 = vpop.f32.mrf.mxu0
        %v814 = vadd.f32 %v378, %v813
        %v815 = vpop.f32.mrf.mxu0
        %v816 = vadd.f32 %v378, %v815
        %817 = vmatmul.bf16.gmra.mxu0 %v507
        %v818 = vpop.f32.mrf.mxu0
        %v819 = vadd.f32 %v378, %v818
        %v820 = vpop.f32.mrf.mxu0
        %v821 = vadd.f32 %v378, %v820
        %822 = vmatmul.bf16.gmra.mxu0 %v508
        %v823 = vpop.f32.mrf.mxu0
        %v824 = vadd.f32 %v378, %v823
        %v825 = vpop.f32.mrf.mxu0
        %826 = vdwg.mxu0
        %827 = vmatpush.bf16.msra.mxu0 %v659
        %828 = vmatpush.bf16.msra.mxu0 %v655
        %829 = vmatpush.bf16.msra.mxu0 %v651
        %830 = vmatpush.bf16.msra.mxu0 %v647
        %831 = vmatpush.bf16.msra.mxu0 %v643
        %832 = vmatpush.bf16.msra.mxu0 %v639
        %833 = vmatpush.bf16.msra.mxu0 %v635
        %834 = vmatpush.bf16.msra.mxu0 %v631
        %835 = vmatmul.bf16.gmra.mxu0 %v484
        %v836 = vpop.f32.mrf.mxu0
        %v837 = vadd.f32 %v379, %v836
        %v838 = vpop.f32.mrf.mxu0
        %v839 = vadd.f32 %v379, %v838
        %840 = vmatmul.bf16.gmra.mxu0 %v485
        %v841 = vpop.f32.mrf.mxu0
        %v842 = vadd.f32 %v379, %v841
        %v843 = vpop.f32.mrf.mxu0
        %v844 = vadd.f32 %v379, %v843
        %845 = vmatmul.bf16.gmra.mxu0 %v486
        %v846 = vpop.f32.mrf.mxu0
        %v847 = vadd.f32 %v379, %v846
        %v848 = vpop.f32.mrf.mxu0
        %v849 = vadd.f32 %v379, %v848
        %850 = vmatmul.bf16.gmra.mxu0 %v487
        %v851 = vpop.f32.mrf.mxu0
        %v852 = vadd.f32 %v379, %v851
        %v853 = vpop.f32.mrf.mxu0
        %v854 = vadd.f32 %v379, %v853
        %855 = vmatmul.bf16.gmra.mxu0 %v488
        %v856 = vpop.f32.mrf.mxu0
        %v857 = vadd.f32 %v379, %v856
        %v858 = vpop.f32.mrf.mxu0
        %v859 = vadd.f32 %v379, %v858
        %860 = vmatmul.bf16.gmra.mxu0 %v489
        %v861 = vpop.f32.mrf.mxu0
        %v862 = vadd.f32 %v379, %v861
        %v863 = vpop.f32.mrf.mxu0
        %v864 = vadd.f32 %v379, %v863
        %865 = vmatmul.bf16.gmra.mxu0 %v490
        %v866 = vpop.f32.mrf.mxu0
        %v867 = vadd.f32 %v379, %v866
        %v868 = vpop.f32.mrf.mxu0
        %v869 = vadd.f32 %v379, %v868
        %870 = vmatmul.bf16.gmra.mxu0 %v491
        %v871 = vpop.f32.mrf.mxu0
        %v872 = vadd.f32 %v379, %v871
        %v873 = vpop.f32.mrf.mxu0
        %v874 = vadd.f32 %v379, %v873
        %875 = vmatmul.bf16.gmra.mxu0 %v492
        %v876 = vpop.f32.mrf.mxu0
        %v877 = vadd.f32 %v379, %v876
        %v878 = vpop.f32.mrf.mxu0
        %v879 = vadd.f32 %v379, %v878
        %880 = vmatmul.bf16.gmra.mxu0 %v493
        %v881 = vpop.f32.mrf.mxu0
        %v882 = vadd.f32 %v379, %v881
        %v883 = vpop.f32.mrf.mxu0
        %v884 = vadd.f32 %v379, %v883
        %885 = vmatmul.bf16.gmra.mxu0 %v494
        %v886 = vpop.f32.mrf.mxu0
        %v887 = vadd.f32 %v379, %v886
        %v888 = vpop.f32.mrf.mxu0
        %v889 = vadd.f32 %v379, %v888
        %890 = vmatmul.bf16.gmra.mxu0 %v495
        %v891 = vpop.f32.mrf.mxu0
        %v892 = vadd.f32 %v379, %v891
        %v893 = vpop.f32.mrf.mxu0
        %v894 = vadd.f32 %v379, %v893
        %895 = vmatmul.bf16.gmra.mxu0 %v496
        %v896 = vpop.f32.mrf.mxu0
        %v897 = vadd.f32 %v379, %v896
        %v898 = vpop.f32.mrf.mxu0
        %v899 = vadd.f32 %v379, %v898
        %900 = vmatmul.bf16.gmra.mxu0 %v497
        %v901 = vpop.f32.mrf.mxu0
        %v902 = vadd.f32 %v379, %v901
        %v903 = vpop.f32.mrf.mxu0
        %v904 = vadd.f32 %v379, %v903
        %905 = vmatmul.bf16.gmra.mxu0 %v498
        %v906 = vpop.f32.mrf.mxu0
        %v907 = vadd.f32 %v379, %v906
        %v908 = vpop.f32.mrf.mxu0
        %v909 = vadd.f32 %v379, %v908
        %910 = vmatmul.bf16.gmra.mxu0 %v499
        %v911 = vpop.f32.mrf.mxu0
        %v912 = vadd.f32 %v379, %v911
        %v913 = vpop.f32.mrf.mxu0
        %v914 = vadd.f32 %v379, %v913
        %915 = vmatmul.bf16.gmra.mxu0 %v500
        %v916 = vpop.f32.mrf.mxu0
        %v917 = vadd.f32 %v379, %v916
        %v918 = vpop.f32.mrf.mxu0
        %v919 = vadd.f32 %v379, %v918
        %920 = vmatmul.bf16.gmra.mxu0 %v501
        %v921 = vpop.f32.mrf.mxu0
        %v922 = vadd.f32 %v379, %v921
        %v923 = vpop.f32.mrf.mxu0
        %v924 = vadd.f32 %v379, %v923
        %925 = vmatmul.bf16.gmra.mxu0 %v502
        %v926 = vpop.f32.mrf.mxu0
        %v927 = vadd.f32 %v379, %v926
        %v928 = vpop.f32.mrf.mxu0
        %v929 = vadd.f32 %v379, %v928
        %930 = vmatmul.bf16.gmra.mxu0 %v503
        %v931 = vpop.f32.mrf.mxu0
        %v932 = vadd.f32 %v379, %v931
        %v933 = vpop.f32.mrf.mxu0
        %v934 = vadd.f32 %v379, %v933
        %935 = vmatmul.bf16.gmra.mxu0 %v504
        %v936 = vpop.f32.mrf.mxu0
        %v937 = vadd.f32 %v379, %v936
        %v938 = vpop.f32.mrf.mxu0
        %v939 = vadd.f32 %v379, %v938
        %940 = vmatmul.bf16.gmra.mxu0 %v505
        %v941 = vpop.f32.mrf.mxu0
        %v942 = vadd.f32 %v379, %v941
        %v943 = vpop.f32.mrf.mxu0
        %v944 = vadd.f32 %v379, %v943
        %945 = vmatmul.bf16.gmra.mxu0 %v506
        %v946 = vpop.f32.mrf.mxu0
        %v947 = vadd.f32 %v379, %v946
        %v948 = vpop.f32.mrf.mxu0
        %v949 = vadd.f32 %v379, %v948
        %950 = vmatmul.bf16.gmra.mxu0 %v507
        %v951 = vpop.f32.mrf.mxu0
        %v952 = vadd.f32 %v379, %v951
        %v953 = vpop.f32.mrf.mxu0
        %v954 = vadd.f32 %v379, %v953
        %955 = vmatmul.bf16.gmra.mxu0 %v508
        %v956 = vpop.f32.mrf.mxu0
        %v957 = vadd.f32 %v379, %v956
        %v958 = vpop.f32.mrf.mxu0
        %959 = vdwg.mxu0
        %960 = vmatpush.bf16.msra.mxu0 %v660
        %961 = vmatpush.bf16.msra.mxu0 %v656
        %962 = vmatpush.bf16.msra.mxu0 %v652
        %963 = vmatpush.bf16.msra.mxu0 %v648
        %964 = vmatpush.bf16.msra.mxu0 %v644
        %965 = vmatpush.bf16.msra.mxu0 %v640
        %966 = vmatpush.bf16.msra.mxu0 %v636
        %967 = vmatpush.bf16.msra.mxu0 %v632
        %968 = vmatmul.bf16.gmra.mxu0 %v484
        %v969 = vpop.f32.mrf.mxu0
        %v970 = vadd.f32 %v380, %v969
        %v971 = vpop.f32.mrf.mxu0
        %v972 = vadd.f32 %v380, %v971
        %973 = vmatmul.bf16.gmra.mxu0 %v485
        %v974 = vpop.f32.mrf.mxu0
        %v975 = vadd.f32 %v380, %v974
        %v976 = vpop.f32.mrf.mxu0
        %v977 = vadd.f32 %v380, %v976
        %978 = vmatmul.bf16.gmra.mxu0 %v486
        %v979 = vpop.f32.mrf.mxu0
        %v980 = vadd.f32 %v380, %v979
        %v981 = vpop.f32.mrf.mxu0
        %v982 = vadd.f32 %v380, %v981
        %983 = vmatmul.bf16.gmra.mxu0 %v487
        %v984 = vpop.f32.mrf.mxu0
        %v985 = vadd.f32 %v380, %v984
        %v986 = vpop.f32.mrf.mxu0
        %v987 = vadd.f32 %v380, %v986
        %988 = vmatmul.bf16.gmra.mxu0 %v488
        %v989 = vpop.f32.mrf.mxu0
        %v990 = vadd.f32 %v380, %v989
        %v991 = vpop.f32.mrf.mxu0
        %v992 = vadd.f32 %v380, %v991
        %993 = vmatmul.bf16.gmra.mxu0 %v489
        %v994 = vpop.f32.mrf.mxu0
        %v995 = vadd.f32 %v380, %v994
        %v996 = vpop.f32.mrf.mxu0
        %v997 = vadd.f32 %v380, %v996
        %998 = vmatmul.bf16.gmra.mxu0 %v490
        %v999 = vpop.f32.mrf.mxu0
        %v1000 = vadd.f32 %v380, %v999
        %v1001 = vpop.f32.mrf.mxu0
        %v1002 = vadd.f32 %v380, %v1001
        %1003 = vmatmul.bf16.gmra.mxu0 %v491
        %v1004 = vpop.f32.mrf.mxu0
        %v1005 = vadd.f32 %v380, %v1004
        %v1006 = vpop.f32.mrf.mxu0
        %v1007 = vadd.f32 %v380, %v1006
        %1008 = vmatmul.bf16.gmra.mxu0 %v492
        %v1009 = vpop.f32.mrf.mxu0
        %v1010 = vadd.f32 %v380, %v1009
        %v1011 = vpop.f32.mrf.mxu0
        %v1012 = vadd.f32 %v380, %v1011
        %1013 = vmatmul.bf16.gmra.mxu0 %v493
        %v1014 = vpop.f32.mrf.mxu0
        %v1015 = vadd.f32 %v380, %v1014
        %v1016 = vpop.f32.mrf.mxu0
        %v1017 = vadd.f32 %v380, %v1016
        %1018 = vmatmul.bf16.gmra.mxu0 %v494
        %v1019 = vpop.f32.mrf.mxu0
        %v1020 = vadd.f32 %v380, %v1019
        %v1021 = vpop.f32.mrf.mxu0
        %v1022 = vadd.f32 %v380, %v1021
        %1023 = vmatmul.bf16.gmra.mxu0 %v495
        %v1024 = vpop.f32.mrf.mxu0
        %v1025 = vadd.f32 %v380, %v1024
        %v1026 = vpop.f32.mrf.mxu0
        %v1027 = vadd.f32 %v380, %v1026
        %1028 = vmatmul.bf16.gmra.mxu0 %v496
        %v1029 = vpop.f32.mrf.mxu0
        %v1030 = vadd.f32 %v380, %v1029
        %v1031 = vpop.f32.mrf.mxu0
        %v1032 = vadd.f32 %v380, %v1031
        %1033 = vmatmul.bf16.gmra.mxu0 %v497
        %v1034 = vpop.f32.mrf.mxu0
        %v1035 = vadd.f32 %v380, %v1034
        %v1036 = vpop.f32.mrf.mxu0
        %v1037 = vadd.f32 %v380, %v1036
        %1038 = vmatmul.bf16.gmra.mxu0 %v498
        %v1039 = vpop.f32.mrf.mxu0
        %v1040 = vadd.f32 %v380, %v1039
        %v1041 = vpop.f32.mrf.mxu0
        %v1042 = vadd.f32 %v380, %v1041
        %1043 = vmatmul.bf16.gmra.mxu0 %v499
        %v1044 = vpop.f32.mrf.mxu0
        %v1045 = vadd.f32 %v380, %v1044
        %v1046 = vpop.f32.mrf.mxu0
        %v1047 = vadd.f32 %v380, %v1046
        %1048 = vmatmul.bf16.gmra.mxu0 %v500
        %v1049 = vpop.f32.mrf.mxu0
        %v1050 = vadd.f32 %v380, %v1049
        %v1051 = vpop.f32.mrf.mxu0
        %v1052 = vadd.f32 %v380, %v1051
        %1053 = vmatmul.bf16.gmra.mxu0 %v501
        %v1054 = vpop.f32.mrf.mxu0
        %v1055 = vadd.f32 %v380, %v1054
        %v1056 = vpop.f32.mrf.mxu0
        %v1057 = vadd.f32 %v380, %v1056
        %1058 = vmatmul.bf16.gmra.mxu0 %v502
        %v1059 = vpop.f32.mrf.mxu0
        %v1060 = vadd.f32 %v380, %v1059
        %v1061 = vpop.f32.mrf.mxu0
        %v1062 = vadd.f32 %v380, %v1061
        %1063 = vmatmul.bf16.gmra.mxu0 %v503
        %v1064 = vpop.f32.mrf.mxu0
        %v1065 = vadd.f32 %v380, %v1064
        %v1066 = vpop.f32.mrf.mxu0
        %v1067 = vadd.f32 %v380, %v1066
        %1068 = vmatmul.bf16.gmra.mxu0 %v504
        %v1069 = vpop.f32.mrf.mxu0
        %v1070 = vadd.f32 %v380, %v1069
        %v1071 = vpop.f32.mrf.mxu0
        %v1072 = vadd.f32 %v380, %v1071
        %1073 = vmatmul.bf16.gmra.mxu0 %v505
        %v1074 = vpop.f32.mrf.mxu0
        %v1075 = vadd.f32 %v380, %v1074
        %v1076 = vpop.f32.mrf.mxu0
        %v1077 = vadd.f32 %v380, %v1076
        %1078 = vmatmul.bf16.gmra.mxu0 %v506
        %v1079 = vpop.f32.mrf.mxu0
        %v1080 = vadd.f32 %v380, %v1079
        %v1081 = vpop.f32.mrf.mxu0
        %v1082 = vadd.f32 %v380, %v1081
        %1083 = vmatmul.bf16.gmra.mxu0 %v507
        %v1084 = vpop.f32.mrf.mxu0
        %v1085 = vadd.f32 %v380, %v1084
        %v1086 = vpop.f32.mrf.mxu0
        %v1087 = vadd.f32 %v380, %v1086
        %1088 = vmatmul.bf16.gmra.mxu0 %v508
        %v1089 = vpop.f32.mrf.mxu0
        %v1090 = vadd.f32 %v380, %v1089
        %v1091 = vpop.f32.mrf.mxu0
        %1092 = vdwg.mxu0
        %1093 = vmatpush.bf16.msra.mxu0 %v661
        %1094 = vmatpush.bf16.msra.mxu0 %v657
        %1095 = vmatpush.bf16.msra.mxu0 %v653
        %1096 = vmatpush.bf16.msra.mxu0 %v649
        %1097 = vmatpush.bf16.msra.mxu0 %v645
        %1098 = vmatpush.bf16.msra.mxu0 %v641
        %1099 = vmatpush.bf16.msra.mxu0 %v637
        %1100 = vmatpush.bf16.msra.mxu0 %v633
        %1101 = vmatmul.bf16.gmra.mxu0 %v484
        %v1102 = vpop.f32.mrf.mxu0
        %v1103 = vadd.f32 %v381, %v1102
        %v1104 = vpop.f32.mrf.mxu0
        %v1105 = vadd.f32 %v381, %v1104
        %1106 = vmatmul.bf16.gmra.mxu0 %v485
        %v1107 = vpop.f32.mrf.mxu0
        %v1108 = vadd.f32 %v381, %v1107
        %v1109 = vpop.f32.mrf.mxu0
        %v1110 = vadd.f32 %v381, %v1109
        %1111 = vmatmul.bf16.gmra.mxu0 %v486
        %v1112 = vpop.f32.mrf.mxu0
        %v1113 = vadd.f32 %v381, %v1112
        %v1114 = vpop.f32.mrf.mxu0
        %v1115 = vadd.f32 %v381, %v1114
        %1116 = vmatmul.bf16.gmra.mxu0 %v487
        %v1117 = vpop.f32.mrf.mxu0
        %v1118 = vadd.f32 %v381, %v1117
        %v1119 = vpop.f32.mrf.mxu0
        %v1120 = vadd.f32 %v381, %v1119
        %1121 = vmatmul.bf16.gmra.mxu0 %v488
        %v1122 = vpop.f32.mrf.mxu0
        %v1123 = vadd.f32 %v381, %v1122
        %v1124 = vpop.f32.mrf.mxu0
        %v1125 = vadd.f32 %v381, %v1124
        %1126 = vmatmul.bf16.gmra.mxu0 %v489
        %v1127 = vpop.f32.mrf.mxu0
        %v1128 = vadd.f32 %v381, %v1127
        %v1129 = vpop.f32.mrf.mxu0
        %v1130 = vadd.f32 %v381, %v1129
        %1131 = vmatmul.bf16.gmra.mxu0 %v490
        %v1132 = vpop.f32.mrf.mxu0
        %v1133 = vadd.f32 %v381, %v1132
        %v1134 = vpop.f32.mrf.mxu0
        %v1135 = vadd.f32 %v381, %v1134
        %1136 = vmatmul.bf16.gmra.mxu0 %v491
        %v1137 = vpop.f32.mrf.mxu0
        %v1138 = vadd.f32 %v381, %v1137
        %v1139 = vpop.f32.mrf.mxu0
        %v1140 = vadd.f32 %v381, %v1139
        %1141 = vmatmul.bf16.gmra.mxu0 %v492
        %v1142 = vpop.f32.mrf.mxu0
        %v1143 = vadd.f32 %v381, %v1142
        %v1144 = vpop.f32.mrf.mxu0
        %v1145 = vadd.f32 %v381, %v1144
        %1146 = vmatmul.bf16.gmra.mxu0 %v493
        %v1147 = vpop.f32.mrf.mxu0
        %v1148 = vadd.f32 %v381, %v1147
        %v1149 = vpop.f32.mrf.mxu0
        %v1150 = vadd.f32 %v381, %v1149
        %1151 = vmatmul.bf16.gmra.mxu0 %v494
        %v1152 = vpop.f32.mrf.mxu0
        %v1153 = vadd.f32 %v381, %v1152
        %v1154 = vpop.f32.mrf.mxu0
        %v1155 = vadd.f32 %v381, %v1154
        %1156 = vmatmul.bf16.gmra.mxu0 %v495
        %v1157 = vpop.f32.mrf.mxu0
        %v1158 = vadd.f32 %v381, %v1157
        %v1159 = vpop.f32.mrf.mxu0
        %v1160 = vadd.f32 %v381, %v1159
        %1161 = vmatmul.bf16.gmra.mxu0 %v496
        %v1162 = vpop.f32.mrf.mxu0
        %v1163 = vadd.f32 %v381, %v1162
        %v1164 = vpop.f32.mrf.mxu0
        %v1165 = vadd.f32 %v381, %v1164
        %1166 = vmatmul.bf16.gmra.mxu0 %v497
        %v1167 = vpop.f32.mrf.mxu0
        %v1168 = vadd.f32 %v381, %v1167
        %v1169 = vpop.f32.mrf.mxu0
        %v1170 = vadd.f32 %v381, %v1169
        %1171 = vmatmul.bf16.gmra.mxu0 %v498
        %v1172 = vpop.f32.mrf.mxu0
        %v1173 = vadd.f32 %v381, %v1172
        %v1174 = vpop.f32.mrf.mxu0
        %v1175 = vadd.f32 %v381, %v1174
        %1176 = vmatmul.bf16.gmra.mxu0 %v499
        %v1177 = vpop.f32.mrf.mxu0
        %v1178 = vadd.f32 %v381, %v1177
        %v1179 = vpop.f32.mrf.mxu0
        %v1180 = vadd.f32 %v381, %v1179
        %1181 = vmatmul.bf16.gmra.mxu0 %v500
        %v1182 = vpop.f32.mrf.mxu0
        %v1183 = vadd.f32 %v381, %v1182
        %v1184 = vpop.f32.mrf.mxu0
        %v1185 = vadd.f32 %v381, %v1184
        %1186 = vmatmul.bf16.gmra.mxu0 %v501
        %v1187 = vpop.f32.mrf.mxu0
        %v1188 = vadd.f32 %v381, %v1187
        %v1189 = vpop.f32.mrf.mxu0
        %v1190 = vadd.f32 %v381, %v1189
        %1191 = vmatmul.bf16.gmra.mxu0 %v502
        %v1192 = vpop.f32.mrf.mxu0
        %v1193 = vadd.f32 %v381, %v1192
        %v1194 = vpop.f32.mrf.mxu0
        %v1195 = vadd.f32 %v381, %v1194
        %1196 = vmatmul.bf16.gmra.mxu0 %v503
        %v1197 = vpop.f32.mrf.mxu0
        %v1198 = vadd.f32 %v381, %v1197
        %v1199 = vpop.f32.mrf.mxu0
        %v1200 = vadd.f32 %v381, %v1199
        %1201 = vmatmul.bf16.gmra.mxu0 %v504
        %v1202 = vpop.f32.mrf.mxu0
        %v1203 = vadd.f32 %v381, %v1202
        %v1204 = vpop.f32.mrf.mxu0
        %v1205 = vadd.f32 %v381, %v1204
        %1206 = vmatmul.bf16.gmra.mxu0 %v505
        %v1207 = vpop.f32.mrf.mxu0
        %v1208 = vadd.f32 %v381, %v1207
        %v1209 = vpop.f32.mrf.mxu0
        %v1210 = vadd.f32 %v381, %v1209
        %1211 = vmatmul.bf16.gmra.mxu0 %v506
        %v1212 = vpop.f32.mrf.mxu0
        %v1213 = vadd.f32 %v381, %v1212
        %v1214 = vpop.f32.mrf.mxu0
        %v1215 = vadd.f32 %v381, %v1214
        %1216 = vmatmul.bf16.gmra.mxu0 %v507
        %v1217 = vpop.f32.mrf.mxu0
        %v1218 = vadd.f32 %v381, %v1217
        %v1219 = vpop.f32.mrf.mxu0
        %v1220 = vadd.f32 %v381, %v1219
        %1221 = vmatmul.bf16.gmra.mxu0 %v508
        %v1222 = vpop.f32.mrf.mxu0
        %v1223 = vadd.f32 %v381, %v1222
        %v1224 = vpop.f32.mrf.mxu0
        %1225 = vdwg.mxu0
        %v1226 = vmax.f32 %v704, 0.0
        %v1227 = vmax.f32 %v837, 0.0
        %v1228 = vmax.f32 %v970, 0.0
        %v1229 = vmax.f32 %v1103, 0.0
        %v1230 = vmax.f32 %v706, 0.0
        %v1231 = vmax.f32 %v839, 0.0
        %v1232 = vmax.f32 %v972, 0.0
        %v1233 = vmax.f32 %v1105, 0.0
        %v1234 = vmax.f32 %v709, 0.0
        %v1235 = vmax.f32 %v842, 0.0
        %v1236 = vmax.f32 %v975, 0.0
        %v1237 = vmax.f32 %v1108, 0.0
        %v1238 = vmax.f32 %v711, 0.0
        %v1239 = vmax.f32 %v844, 0.0
        %v1240 = vmax.f32 %v977, 0.0
        %v1241 = vmax.f32 %v1110, 0.0
        %v1242 = vmax.f32 %v714, 0.0
        %v1243 = vmax.f32 %v847, 0.0
        %v1244 = vmax.f32 %v980, 0.0
        %v1245 = vmax.f32 %v1113, 0.0
        %v1246 = vmax.f32 %v716, 0.0
        %v1247 = vmax.f32 %v849, 0.0
        %v1248 = vmax.f32 %v982, 0.0
        %v1249 = vmax.f32 %v1115, 0.0
        %v1250 = vmax.f32 %v719, 0.0
        %v1251 = vmax.f32 %v852, 0.0
        %v1252 = vmax.f32 %v985, 0.0
        %v1253 = vmax.f32 %v1118, 0.0
        %v1254 = vmax.f32 %v721, 0.0
        %v1255 = vmax.f32 %v854, 0.0
        %v1256 = vmax.f32 %v987, 0.0
        %v1257 = vmax.f32 %v1120, 0.0
        %v1258 = vmax.f32 %v724, 0.0
        %v1259 = vmax.f32 %v857, 0.0
        %v1260 = vmax.f32 %v990, 0.0
        %v1261 = vmax.f32 %v1123, 0.0
        %v1262 = vmax.f32 %v726, 0.0
        %v1263 = vmax.f32 %v859, 0.0
        %v1264 = vmax.f32 %v992, 0.0
        %v1265 = vmax.f32 %v1125, 0.0
        %v1266 = vmax.f32 %v729, 0.0
        %v1267 = vmax.f32 %v862, 0.0
        %v1268 = vmax.f32 %v995, 0.0
        %v1269 = vmax.f32 %v1128, 0.0
        %v1270 = vmax.f32 %v731, 0.0
        %v1271 = vmax.f32 %v864, 0.0
        %v1272 = vmax.f32 %v997, 0.0
        %v1273 = vmax.f32 %v1130, 0.0
        %v1274 = vmax.f32 %v734, 0.0
        %v1275 = vmax.f32 %v867, 0.0
        %v1276 = vmax.f32 %v1000, 0.0
        %v1277 = vmax.f32 %v1133, 0.0
        %v1278 = vmax.f32 %v736, 0.0
        %v1279 = vmax.f32 %v869, 0.0
        %v1280 = vmax.f32 %v1002, 0.0
        %v1281 = vmax.f32 %v1135, 0.0
        %v1282 = vmax.f32 %v739, 0.0
        %v1283 = vmax.f32 %v872, 0.0
        %v1284 = vmax.f32 %v1005, 0.0
        %v1285 = vmax.f32 %v1138, 0.0
        %v1286 = vmax.f32 %v741, 0.0
        %v1287 = vmax.f32 %v874, 0.0
        %v1288 = vmax.f32 %v1007, 0.0
        %v1289 = vmax.f32 %v1140, 0.0
        %v1290 = vmax.f32 %v744, 0.0
        %v1291 = vmax.f32 %v877, 0.0
        %v1292 = vmax.f32 %v1010, 0.0
        %v1293 = vmax.f32 %v1143, 0.0
        %v1294 = vmax.f32 %v746, 0.0
        %v1295 = vmax.f32 %v879, 0.0
        %v1296 = vmax.f32 %v1012, 0.0
        %v1297 = vmax.f32 %v1145, 0.0
        %v1298 = vmax.f32 %v749, 0.0
        %v1299 = vmax.f32 %v882, 0.0
        %v1300 = vmax.f32 %v1015, 0.0
        %v1301 = vmax.f32 %v1148, 0.0
        %v1302 = vmax.f32 %v751, 0.0
        %v1303 = vmax.f32 %v884, 0.0
        %v1304 = vmax.f32 %v1017, 0.0
        %v1305 = vmax.f32 %v1150, 0.0
        %v1306 = vmax.f32 %v754, 0.0
        %v1307 = vmax.f32 %v887, 0.0
        %v1308 = vmax.f32 %v1020, 0.0
        %v1309 = vmax.f32 %v1153, 0.0
        %v1310 = vmax.f32 %v756, 0.0
        %v1311 = vmax.f32 %v889, 0.0
        %v1312 = vmax.f32 %v1022, 0.0
        %v1313 = vmax.f32 %v1155, 0.0
        %v1314 = vmax.f32 %v759, 0.0
        %v1315 = vmax.f32 %v892, 0.0
        %v1316 = vmax.f32 %v1025, 0.0
        %v1317 = vmax.f32 %v1158, 0.0
        %v1318 = vmax.f32 %v761, 0.0
        %v1319 = vmax.f32 %v894, 0.0
        %v1320 = vmax.f32 %v1027, 0.0
        %v1321 = vmax.f32 %v1160, 0.0
        %v1322 = vmax.f32 %v764, 0.0
        %v1323 = vmax.f32 %v897, 0.0
        %v1324 = vmax.f32 %v1030, 0.0
        %v1325 = vmax.f32 %v1163, 0.0
        %v1326 = vmax.f32 %v766, 0.0
        %v1327 = vmax.f32 %v899, 0.0
        %v1328 = vmax.f32 %v1032, 0.0
        %v1329 = vmax.f32 %v1165, 0.0
        %v1330 = vmax.f32 %v769, 0.0
        %v1331 = vmax.f32 %v902, 0.0
        %v1332 = vmax.f32 %v1035, 0.0
        %v1333 = vmax.f32 %v1168, 0.0
        %v1334 = vmax.f32 %v771, 0.0
        %v1335 = vmax.f32 %v904, 0.0
        %v1336 = vmax.f32 %v1037, 0.0
        %v1337 = vmax.f32 %v1170, 0.0
        %v1338 = vmax.f32 %v774, 0.0
        %v1339 = vmax.f32 %v907, 0.0
        %v1340 = vmax.f32 %v1040, 0.0
        %v1341 = vmax.f32 %v1173, 0.0
        %v1342 = vmax.f32 %v776, 0.0
        %v1343 = vmax.f32 %v909, 0.0
        %v1344 = vmax.f32 %v1042, 0.0
        %v1345 = vmax.f32 %v1175, 0.0
        %v1346 = vmax.f32 %v779, 0.0
        %v1347 = vmax.f32 %v912, 0.0
        %v1348 = vmax.f32 %v1045, 0.0
        %v1349 = vmax.f32 %v1178, 0.0
        %v1350 = vmax.f32 %v781, 0.0
        %v1351 = vmax.f32 %v914, 0.0
        %v1352 = vmax.f32 %v1047, 0.0
        %v1353 = vmax.f32 %v1180, 0.0
        %v1354 = vmax.f32 %v784, 0.0
        %v1355 = vmax.f32 %v917, 0.0
        %v1356 = vmax.f32 %v1050, 0.0
        %v1357 = vmax.f32 %v1183, 0.0
        %v1358 = vmax.f32 %v786, 0.0
        %v1359 = vmax.f32 %v919, 0.0
        %v1360 = vmax.f32 %v1052, 0.0
        %v1361 = vmax.f32 %v1185, 0.0
        %v1362 = vmax.f32 %v789, 0.0
        %v1363 = vmax.f32 %v922, 0.0
        %v1364 = vmax.f32 %v1055, 0.0
        %v1365 = vmax.f32 %v1188, 0.0
        %v1366 = vmax.f32 %v791, 0.0
        %v1367 = vmax.f32 %v924, 0.0
        %v1368 = vmax.f32 %v1057, 0.0
        %v1369 = vmax.f32 %v1190, 0.0
        %v1370 = vmax.f32 %v794, 0.0
        %v1371 = vmax.f32 %v927, 0.0
        %v1372 = vmax.f32 %v1060, 0.0
        %v1373 = vmax.f32 %v1193, 0.0
        %v1374 = vmax.f32 %v796, 0.0
        %v1375 = vmax.f32 %v929, 0.0
        %v1376 = vmax.f32 %v1062, 0.0
        %v1377 = vmax.f32 %v1195, 0.0
        %v1378 = vmax.f32 %v799, 0.0
        %v1379 = vmax.f32 %v932, 0.0
        %v1380 = vmax.f32 %v1065, 0.0
        %v1381 = vmax.f32 %v1198, 0.0
        %v1382 = vmax.f32 %v801, 0.0
        %v1383 = vmax.f32 %v934, 0.0
        %v1384 = vmax.f32 %v1067, 0.0
        %v1385 = vmax.f32 %v1200, 0.0
        %v1386 = vmax.f32 %v804, 0.0
        %v1387 = vmax.f32 %v937, 0.0
        %v1388 = vmax.f32 %v1070, 0.0
        %v1389 = vmax.f32 %v1203, 0.0
        %v1390 = vmax.f32 %v806, 0.0
        %v1391 = vmax.f32 %v939, 0.0
        %v1392 = vmax.f32 %v1072, 0.0
        %v1393 = vmax.f32 %v1205, 0.0
        %v1394 = vmax.f32 %v809, 0.0
        %v1395 = vmax.f32 %v942, 0.0
        %v1396 = vmax.f32 %v1075, 0.0
        %v1397 = vmax.f32 %v1208, 0.0
        %v1398 = vmax.f32 %v811, 0.0
        %v1399 = vmax.f32 %v944, 0.0
        %v1400 = vmax.f32 %v1077, 0.0
        %v1401 = vmax.f32 %v1210, 0.0
        %v1402 = vmax.f32 %v814, 0.0
        %v1403 = vmax.f32 %v947, 0.0
        %v1404 = vmax.f32 %v1080, 0.0
        %v1405 = vmax.f32 %v1213, 0.0
        %v1406 = vmax.f32 %v816, 0.0
        %v1407 = vmax.f32 %v949, 0.0
        %v1408 = vmax.f32 %v1082, 0.0
        %v1409 = vmax.f32 %v1215, 0.0
        %v1410 = vmax.f32 %v819, 0.0
        %v1411 = vmax.f32 %v952, 0.0
        %v1412 = vmax.f32 %v1085, 0.0
        %v1413 = vmax.f32 %v1218, 0.0
        %v1414 = vmax.f32 %v821, 0.0
        %v1415 = vmax.f32 %v954, 0.0
        %v1416 = vmax.f32 %v1087, 0.0
        %v1417 = vmax.f32 %v1220, 0.0
        %v1418 = vmax.f32 %v824, 0.0
        %v1419 = vmax.f32 %v957, 0.0
        %v1420 = vmax.f32 %v1090, 0.0
        %v1421 = vmax.f32 %v1223, 0.0
        %v1422 = vpack.c.bf16 %v1230, %v1226
        %v1423 = vpack.c.bf16 %v1231, %v1227
        %v1424 = vpack.c.bf16 %v1232, %v1228
        %v1425 = vpack.c.bf16 %v1233, %v1229
        %v1426 = vpack.c.bf16 %v1238, %v1234
        %v1427 = vpack.c.bf16 %v1239, %v1235
        %v1428 = vpack.c.bf16 %v1240, %v1236
        %v1429 = vpack.c.bf16 %v1241, %v1237
        %v1430 = vpack.c.bf16 %v1246, %v1242
        %v1431 = vpack.c.bf16 %v1247, %v1243
        %v1432 = vpack.c.bf16 %v1248, %v1244
        %v1433 = vpack.c.bf16 %v1249, %v1245
        %v1434 = vpack.c.bf16 %v1254, %v1250
        %v1435 = vpack.c.bf16 %v1255, %v1251
        %v1436 = vpack.c.bf16 %v1256, %v1252
        %v1437 = vpack.c.bf16 %v1257, %v1253
        %v1438 = vpack.c.bf16 %v1262, %v1258
        %v1439 = vpack.c.bf16 %v1263, %v1259
        %v1440 = vpack.c.bf16 %v1264, %v1260
        %v1441 = vpack.c.bf16 %v1265, %v1261
        %v1442 = vpack.c.bf16 %v1270, %v1266
        %v1443 = vpack.c.bf16 %v1271, %v1267
        %v1444 = vpack.c.bf16 %v1272, %v1268
        %v1445 = vpack.c.bf16 %v1273, %v1269
        %v1446 = vpack.c.bf16 %v1278, %v1274
        %v1447 = vpack.c.bf16 %v1279, %v1275
        %v1448 = vpack.c.bf16 %v1280, %v1276
        %v1449 = vpack.c.bf16 %v1281, %v1277
        %v1450 = vpack.c.bf16 %v1286, %v1282
        %v1451 = vpack.c.bf16 %v1287, %v1283
        %v1452 = vpack.c.bf16 %v1288, %v1284
        %v1453 = vpack.c.bf16 %v1289, %v1285
        %v1454 = vpack.c.bf16 %v1294, %v1290
        %v1455 = vpack.c.bf16 %v1295, %v1291
        %v1456 = vpack.c.bf16 %v1296, %v1292
        %v1457 = vpack.c.bf16 %v1297, %v1293
        %v1458 = vpack.c.bf16 %v1302, %v1298
        %v1459 = vpack.c.bf16 %v1303, %v1299
        %v1460 = vpack.c.bf16 %v1304, %v1300
        %v1461 = vpack.c.bf16 %v1305, %v1301
        %v1462 = vpack.c.bf16 %v1310, %v1306
        %v1463 = vpack.c.bf16 %v1311, %v1307
        %v1464 = vpack.c.bf16 %v1312, %v1308
        %v1465 = vpack.c.bf16 %v1313, %v1309
        %v1466 = vpack.c.bf16 %v1318, %v1314
        %v1467 = vpack.c.bf16 %v1319, %v1315
        %v1468 = vpack.c.bf16 %v1320, %v1316
        %v1469 = vpack.c.bf16 %v1321, %v1317
        %v1470 = vpack.c.bf16 %v1326, %v1322
        %v1471 = vpack.c.bf16 %v1327, %v1323
        %v1472 = vpack.c.bf16 %v1328, %v1324
        %v1473 = vpack.c.bf16 %v1329, %v1325
        %v1474 = vpack.c.bf16 %v1334, %v1330
        %v1475 = vpack.c.bf16 %v1335, %v1331
        %v1476 = vpack.c.bf16 %v1336, %v1332
        %v1477 = vpack.c.bf16 %v1337, %v1333
        %v1478 = vpack.c.bf16 %v1342, %v1338
        %v1479 = vpack.c.bf16 %v1343, %v1339
        %v1480 = vpack.c.bf16 %v1344, %v1340
        %v1481 = vpack.c.bf16 %v1345, %v1341
        %v1482 = vpack.c.bf16 %v1350, %v1346
        %v1483 = vpack.c.bf16 %v1351, %v1347
        %v1484 = vpack.c.bf16 %v1352, %v1348
        %v1485 = vpack.c.bf16 %v1353, %v1349
        %v1486 = vpack.c.bf16 %v1358, %v1354
        %v1487 = vpack.c.bf16 %v1359, %v1355
        %v1488 = vpack.c.bf16 %v1360, %v1356
        %v1489 = vpack.c.bf16 %v1361, %v1357
        %v1490 = vpack.c.bf16 %v1366, %v1362
        %v1491 = vpack.c.bf16 %v1367, %v1363
        %v1492 = vpack.c.bf16 %v1368, %v1364
        %v1493 = vpack.c.bf16 %v1369, %v1365
        %v1494 = vpack.c.bf16 %v1374, %v1370
        %v1495 = vpack.c.bf16 %v1375, %v1371
        %v1496 = vpack.c.bf16 %v1376, %v1372
        %v1497 = vpack.c.bf16 %v1377, %v1373
        %v1498 = vpack.c.bf16 %v1382, %v1378
        %v1499 = vpack.c.bf16 %v1383, %v1379
        %v1500 = vpack.c.bf16 %v1384, %v1380
        %v1501 = vpack.c.bf16 %v1385, %v1381
        %v1502 = vpack.c.bf16 %v1390, %v1386
        %v1503 = vpack.c.bf16 %v1391, %v1387
        %v1504 = vpack.c.bf16 %v1392, %v1388
        %v1505 = vpack.c.bf16 %v1393, %v1389
        %v1506 = vpack.c.bf16 %v1398, %v1394
        %v1507 = vpack.c.bf16 %v1399, %v1395
        %v1508 = vpack.c.bf16 %v1400, %v1396
        %v1509 = vpack.c.bf16 %v1401, %v1397
        %v1510 = vpack.c.bf16 %v1406, %v1402
        %v1511 = vpack.c.bf16 %v1407, %v1403
        %v1512 = vpack.c.bf16 %v1408, %v1404
        %v1513 = vpack.c.bf16 %v1409, %v1405
        %v1514 = vpack.c.bf16 %v1414, %v1410
        %v1515 = vpack.c.bf16 %v1415, %v1411
        %v1516 = vpack.c.bf16 %v1416, %v1412
        %v1517 = vpack.c.bf16 %v1417, %v1413
        %v1518 = vpack.c.bf16 %v1418, %v1418
        %v1519 = vpack.c.bf16 %v1419, %v1419
        %v1520 = vpack.c.bf16 %v1420, %v1420
        %v1521 = vpack.c.bf16 %v1421, %v1421
        %v1522 = vld [vmem:[#allocation8] sm:$0xf]
        %v1523 = vld [vmem:[#allocation8 + $0x4] sm:$0xf]
        %v1524 = vld [vmem:[#allocation8 + $0x8] sm:$0xf]
        %v1525 = vld [vmem:[#allocation8 + $0xc] sm:$0xf]
        %v1526 = vld [vmem:[#allocation8 + $0x10] sm:$0xf]
        %v1527 = vld [vmem:[#allocation8 + $0x14] sm:$0xf]
        %v1528 = vld [vmem:[#allocation8 + $0x18] sm:$0xf]
        %v1529 = vld [vmem:[#allocation8 + $0x1c] sm:$0xf]
        %v1530 = vld [vmem:[#allocation8 + $0x20] sm:$0xf]
        %v1531 = vld [vmem:[#allocation8 + $0x24] sm:$0xf]
        %v1532 = vld [vmem:[#allocation8 + $0x28] sm:$0xf]
        %v1533 = vld [vmem:[#allocation8 + $0x2c] sm:$0xf]
        %v1534 = vld [vmem:[#allocation8 + $0x30] sm:$0xf]
        %v1535 = vld [vmem:[#allocation8 + $0x34] sm:$0xf]
        %v1536 = vld [vmem:[#allocation8 + $0x38] sm:$0xf]
        %v1537 = vld [vmem:[#allocation8 + $0x3c] sm:$0xf]
        %v1538 = vld [vmem:[#allocation8 + $0x40] sm:$0xf]
        %v1539 = vld [vmem:[#allocation8 + $0x44] sm:$0xf]
        %v1540 = vld [vmem:[#allocation8 + $0x48] sm:$0xf]
        %v1541 = vld [vmem:[#allocation8 + $0x4c] sm:$0xf]
        %v1542 = vld [vmem:[#allocation8 + $0x50] sm:$0xf]
        %v1543 = vld [vmem:[#allocation8 + $0x54] sm:$0xf]
        %v1544 = vld [vmem:[#allocation8 + $0x58] sm:$0xf]
        %v1545 = vld [vmem:[#allocation8 + $0x5c] sm:$0xf]
        %v1546 = vld [vmem:[#allocation8 + $0x60] sm:$0xf]
        %v1547 = vld [vmem:[#allocation8 + $0x64] sm:$0xf]
        %v1548 = vld [vmem:[#allocation8 + $0x68] sm:$0xf]
        %v1549 = vld [vmem:[#allocation8 + $0x6c] sm:$0xf]
        %v1550 = vld [vmem:[#allocation8 + $0x70] sm:$0xf]
        %v1551 = vld [vmem:[#allocation8 + $0x74] sm:$0xf]
        %v1552 = vld [vmem:[#allocation8 + $0x78] sm:$0xf]
        %v1553 = vld [vmem:[#allocation8 + $0x7c] sm:$0xf]
        %v1554 = vld [vmem:[#allocation8 + $0x80] sm:$0xf]
        %v1555 = vld [vmem:[#allocation8 + $0x84] sm:$0xf]
        %v1556 = vld [vmem:[#allocation8 + $0x88] sm:$0xf]
        %v1557 = vld [vmem:[#allocation8 + $0x8c] sm:$0xf]
        %v1558 = vld [vmem:[#allocation8 + $0x90] sm:$0xf]
        %v1559 = vld [vmem:[#allocation8 + $0x94] sm:$0xf]
        %v1560 = vld [vmem:[#allocation8 + $0x98] sm:$0xf]
        %v1561 = vld [vmem:[#allocation8 + $0x9c] sm:$0xf]
        %v1562 = vld [vmem:[#allocation8 + $0xa0] sm:$0xf]
        %v1563 = vld [vmem:[#allocation8 + $0xa4] sm:$0xf]
        %v1564 = vld [vmem:[#allocation8 + $0xa8] sm:$0xf]
        %v1565 = vld [vmem:[#allocation8 + $0xac] sm:$0xf]
        %v1566 = vld [vmem:[#allocation8 + $0xb0] sm:$0xf]
        %v1567 = vld [vmem:[#allocation8 + $0xb4] sm:$0xf]
        %v1568 = vld [vmem:[#allocation8 + $0xb8] sm:$0xf]
        %v1569 = vld [vmem:[#allocation8 + $0xbc] sm:$0xf]
        %v1570 = vld [vmem:[#allocation8 + $0xc0] sm:$0xf]
        %v1571 = vld [vmem:[#allocation8 + $0xc4] sm:$0xf]
        %v1572 = vld [vmem:[#allocation8 + $0xc8] sm:$0xf]
        %v1573 = vld [vmem:[#allocation8 + $0xcc] sm:$0xf]
        %v1574 = vld [vmem:[#allocation8 + $0xd0] sm:$0xf]
        %v1575 = vld [vmem:[#allocation8 + $0xd4] sm:$0xf]
        %v1576 = vld [vmem:[#allocation8 + $0xd8] sm:$0xf]
        %v1577 = vld [vmem:[#allocation8 + $0xdc] sm:$0xf]
        %v1578 = vld [vmem:[#allocation8 + $0xe0] sm:$0xf]
        %v1579 = vld [vmem:[#allocation8 + $0xe4] sm:$0xf]
        %v1580 = vld [vmem:[#allocation8 + $0xe8] sm:$0xf]
        %v1581 = vld [vmem:[#allocation8 + $0xec] sm:$0xf]
        %v1582 = vld [vmem:[#allocation8 + $0xf0] sm:$0xf]
        %v1583 = vld [vmem:[#allocation8 + $0xf4] sm:$0xf]
        %v1584 = vld [vmem:[#allocation8 + $0xf8] sm:$0xf]
        %v1585 = vld [vmem:[#allocation8 + $0xfc] sm:$0xf]
        %v1650 = vunpack.c.l.b16 %v1522
        %v1651 = vunpack.c.l.b16 %v1523
        %v1652 = vunpack.c.l.b16 %v1524
        %v1653 = vunpack.c.l.b16 %v1525
        %v1654 = vunpack.c.l.b16 %v1526
        %v1655 = vunpack.c.l.b16 %v1527
        %v1656 = vunpack.c.l.b16 %v1528
        %v1657 = vunpack.c.l.b16 %v1529
        %v1658 = vunpack.c.l.b16 %v1530
        %v1659 = vunpack.c.l.b16 %v1531
        %v1660 = vunpack.c.l.b16 %v1532
        %v1661 = vunpack.c.l.b16 %v1533
        %v1662 = vunpack.c.l.b16 %v1534
        %v1663 = vunpack.c.l.b16 %v1535
        %v1664 = vunpack.c.l.b16 %v1536
        %v1665 = vunpack.c.l.b16 %v1537
        %v1666 = vunpack.c.l.b16 %v1538
        %v1667 = vunpack.c.l.b16 %v1539
        %v1668 = vunpack.c.l.b16 %v1540
        %v1669 = vunpack.c.l.b16 %v1541
        %v1670 = vunpack.c.l.b16 %v1542
        %v1671 = vunpack.c.l.b16 %v1543
        %v1672 = vunpack.c.l.b16 %v1544
        %v1673 = vunpack.c.l.b16 %v1545
        %v1674 = vunpack.c.l.b16 %v1546
        %v1675 = vunpack.c.l.b16 %v1547
        %v1676 = vunpack.c.l.b16 %v1548
        %v1677 = vunpack.c.l.b16 %v1549
        %v1678 = vunpack.c.l.b16 %v1550
        %v1679 = vunpack.c.l.b16 %v1551
        %v1680 = vunpack.c.l.b16 %v1552
        %v1681 = vunpack.c.l.b16 %v1553
        %v1682 = vunpack.c.l.b16 %v1554
        %v1683 = vunpack.c.l.b16 %v1555
        %v1684 = vunpack.c.l.b16 %v1556
        %v1685 = vunpack.c.l.b16 %v1557
        %v1686 = vunpack.c.l.b16 %v1558
        %v1687 = vunpack.c.l.b16 %v1559
        %v1688 = vunpack.c.l.b16 %v1560
        %v1689 = vunpack.c.l.b16 %v1561
        %v1690 = vunpack.c.l.b16 %v1562
        %v1691 = vunpack.c.l.b16 %v1563
        %v1692 = vunpack.c.l.b16 %v1564
        %v1693 = vunpack.c.l.b16 %v1565
        %v1694 = vunpack.c.l.b16 %v1566
        %v1695 = vunpack.c.l.b16 %v1567
        %v1696 = vunpack.c.l.b16 %v1568
        %v1697 = vunpack.c.l.b16 %v1569
        %v1698 = vunpack.c.l.b16 %v1570
        %v1699 = vunpack.c.l.b16 %v1571
        %v1700 = vunpack.c.l.b16 %v1572
        %v1701 = vunpack.c.l.b16 %v1573
        %v1702 = vunpack.c.l.b16 %v1574
        %v1703 = vunpack.c.l.b16 %v1575
        %v1704 = vunpack.c.l.b16 %v1576
        %v1705 = vunpack.c.l.b16 %v1577
        %v1706 = vunpack.c.l.b16 %v1578
        %v1707 = vunpack.c.l.b16 %v1579
        %v1708 = vunpack.c.l.b16 %v1580
        %v1709 = vunpack.c.l.b16 %v1581
        %v1710 = vunpack.c.l.b16 %v1582
        %v1711 = vunpack.c.l.b16 %v1583
        %v1712 = vunpack.c.l.b16 %v1584
        %v1713 = vunpack.c.l.b16 %v1585
        %v1714 = vpack.c.b16 %v1651, %v1650
        %v1715 = vpack.c.b16 %v1653, %v1652
        %v1716 = vpack.c.b16 %v1655, %v1654
        %v1717 = vpack.c.b16 %v1657, %v1656
        %v1718 = vpack.c.b16 %v1659, %v1658
        %v1719 = vpack.c.b16 %v1661, %v1660
        %v1720 = vpack.c.b16 %v1663, %v1662
        %v1721 = vpack.c.b16 %v1665, %v1664
        %v1722 = vpack.c.b16 %v1667, %v1666
        %v1723 = vpack.c.b16 %v1669, %v1668
        %v1724 = vpack.c.b16 %v1671, %v1670
        %v1725 = vpack.c.b16 %v1673, %v1672
        %v1726 = vpack.c.b16 %v1675, %v1674
        %v1727 = vpack.c.b16 %v1677, %v1676
        %v1728 = vpack.c.b16 %v1679, %v1678
        %v1729 = vpack.c.b16 %v1681, %v1680
        %v1730 = vpack.c.b16 %v1683, %v1682
        %v1731 = vpack.c.b16 %v1685, %v1684
        %v1732 = vpack.c.b16 %v1687, %v1686
        %v1733 = vpack.c.b16 %v1689, %v1688
        %v1734 = vpack.c.b16 %v1691, %v1690
        %v1735 = vpack.c.b16 %v1693, %v1692
        %v1736 = vpack.c.b16 %v1695, %v1694
        %v1737 = vpack.c.b16 %v1697, %v1696
        %v1738 = vpack.c.b16 %v1699, %v1698
        %v1739 = vpack.c.b16 %v1701, %v1700
        %v1740 = vpack.c.b16 %v1703, %v1702
        %v1741 = vpack.c.b16 %v1705, %v1704
        %v1742 = vpack.c.b16 %v1707, %v1706
        %v1743 = vpack.c.b16 %v1709, %v1708
        %v1744 = vpack.c.b16 %v1711, %v1710
        %v1745 = vpack.c.b16 %v1713, %v1712
        %1778 = vmatpush.bf16.msra.mxu0 %v1721
        %1779 = vmatpush.bf16.msra.mxu0 %v1720
        %1780 = vmatpush.bf16.msra.mxu0 %v1719
        %1781 = vmatpush.bf16.msra.mxu0 %v1718
        %1782 = vmatpush.bf16.msra.mxu0 %v1717
        %1783 = vmatpush.bf16.msra.mxu0 %v1716
        %1784 = vmatpush.bf16.msra.mxu0 %v1715
        %1785 = vmatpush.bf16.msra.mxu0 %v1714
        %1786 = vmatmul.bf16.gmra.mxu0 %v1422
        %v1787 = vpop.f32.mrf.mxu0
        %v1788 = vadd.f32 0.0, %v1787
        %v1789 = vpop.f32.mrf.mxu0
        %v1790 = vadd.f32 0.0, %v1789
        %1791 = vmatmul.bf16.gmra.mxu0 %v1426
        %v1792 = vpop.f32.mrf.mxu0
        %v1793 = vadd.f32 0.0, %v1792
        %v1794 = vpop.f32.mrf.mxu0
        %v1795 = vadd.f32 0.0, %v1794
        %1796 = vmatmul.bf16.gmra.mxu0 %v1430
        %v1797 = vpop.f32.mrf.mxu0
        %v1798 = vadd.f32 0.0, %v1797
        %v1799 = vpop.f32.mrf.mxu0
        %v1800 = vadd.f32 0.0, %v1799
        %1801 = vmatmul.bf16.gmra.mxu0 %v1434
        %v1802 = vpop.f32.mrf.mxu0
        %v1803 = vadd.f32 0.0, %v1802
        %v1804 = vpop.f32.mrf.mxu0
        %v1805 = vadd.f32 0.0, %v1804
        %1806 = vmatmul.bf16.gmra.mxu0 %v1438
        %v1807 = vpop.f32.mrf.mxu0
        %v1808 = vadd.f32 0.0, %v1807
        %v1809 = vpop.f32.mrf.mxu0
        %v1810 = vadd.f32 0.0, %v1809
        %1811 = vmatmul.bf16.gmra.mxu0 %v1442
        %v1812 = vpop.f32.mrf.mxu0
        %v1813 = vadd.f32 0.0, %v1812
        %v1814 = vpop.f32.mrf.mxu0
        %v1815 = vadd.f32 0.0, %v1814
        %1816 = vmatmul.bf16.gmra.mxu0 %v1446
        %v1817 = vpop.f32.mrf.mxu0
        %v1818 = vadd.f32 0.0, %v1817
        %v1819 = vpop.f32.mrf.mxu0
        %v1820 = vadd.f32 0.0, %v1819
        %1821 = vmatmul.bf16.gmra.mxu0 %v1450
        %v1822 = vpop.f32.mrf.mxu0
        %v1823 = vadd.f32 0.0, %v1822
        %v1824 = vpop.f32.mrf.mxu0
        %v1825 = vadd.f32 0.0, %v1824
        %1826 = vmatmul.bf16.gmra.mxu0 %v1454
        %v1827 = vpop.f32.mrf.mxu0
        %v1828 = vadd.f32 0.0, %v1827
        %v1829 = vpop.f32.mrf.mxu0
        %v1830 = vadd.f32 0.0, %v1829
        %1831 = vmatmul.bf16.gmra.mxu0 %v1458
        %v1832 = vpop.f32.mrf.mxu0
        %v1833 = vadd.f32 0.0, %v1832
        %v1834 = vpop.f32.mrf.mxu0
        %v1835 = vadd.f32 0.0, %v1834
        %1836 = vmatmul.bf16.gmra.mxu0 %v1462
        %v1837 = vpop.f32.mrf.mxu0
        %v1838 = vadd.f32 0.0, %v1837
        %v1839 = vpop.f32.mrf.mxu0
        %v1840 = vadd.f32 0.0, %v1839
        %1841 = vmatmul.bf16.gmra.mxu0 %v1466
        %v1842 = vpop.f32.mrf.mxu0
        %v1843 = vadd.f32 0.0, %v1842
        %v1844 = vpop.f32.mrf.mxu0
        %v1845 = vadd.f32 0.0, %v1844
        %1846 = vmatmul.bf16.gmra.mxu0 %v1470
        %v1847 = vpop.f32.mrf.mxu0
        %v1848 = vadd.f32 0.0, %v1847
        %v1849 = vpop.f32.mrf.mxu0
        %v1850 = vadd.f32 0.0, %v1849
        %1851 = vmatmul.bf16.gmra.mxu0 %v1474
        %v1852 = vpop.f32.mrf.mxu0
        %v1853 = vadd.f32 0.0, %v1852
        %v1854 = vpop.f32.mrf.mxu0
        %v1855 = vadd.f32 0.0, %v1854
        %1856 = vmatmul.bf16.gmra.mxu0 %v1478
        %v1857 = vpop.f32.mrf.mxu0
        %v1858 = vadd.f32 0.0, %v1857
        %v1859 = vpop.f32.mrf.mxu0
        %v1860 = vadd.f32 0.0, %v1859
        %1861 = vmatmul.bf16.gmra.mxu0 %v1482
        %v1862 = vpop.f32.mrf.mxu0
        %v1863 = vadd.f32 0.0, %v1862
        %v1864 = vpop.f32.mrf.mxu0
        %v1865 = vadd.f32 0.0, %v1864
        %1866 = vmatmul.bf16.gmra.mxu0 %v1486
        %v1867 = vpop.f32.mrf.mxu0
        %v1868 = vadd.f32 0.0, %v1867
        %v1869 = vpop.f32.mrf.mxu0
        %v1870 = vadd.f32 0.0, %v1869
        %1871 = vmatmul.bf16.gmra.mxu0 %v1490
        %v1872 = vpop.f32.mrf.mxu0
        %v1873 = vadd.f32 0.0, %v1872
        %v1874 = vpop.f32.mrf.mxu0
        %v1875 = vadd.f32 0.0, %v1874
        %1876 = vmatmul.bf16.gmra.mxu0 %v1494
        %v1877 = vpop.f32.mrf.mxu0
        %v1878 = vadd.f32 0.0, %v1877
        %v1879 = vpop.f32.mrf.mxu0
        %v1880 = vadd.f32 0.0, %v1879
        %1881 = vmatmul.bf16.gmra.mxu0 %v1498
        %v1882 = vpop.f32.mrf.mxu0
        %v1883 = vadd.f32 0.0, %v1882
        %v1884 = vpop.f32.mrf.mxu0
        %v1885 = vadd.f32 0.0, %v1884
        %1886 = vmatmul.bf16.gmra.mxu0 %v1502
        %v1887 = vpop.f32.mrf.mxu0
        %v1888 = vadd.f32 0.0, %v1887
        %v1889 = vpop.f32.mrf.mxu0
        %v1890 = vadd.f32 0.0, %v1889
        %1891 = vmatmul.bf16.gmra.mxu0 %v1506
        %v1892 = vpop.f32.mrf.mxu0
        %v1893 = vadd.f32 0.0, %v1892
        %v1894 = vpop.f32.mrf.mxu0
        %v1895 = vadd.f32 0.0, %v1894
        %1896 = vmatmul.bf16.gmra.mxu0 %v1510
        %v1897 = vpop.f32.mrf.mxu0
        %v1898 = vadd.f32 0.0, %v1897
        %v1899 = vpop.f32.mrf.mxu0
        %v1900 = vadd.f32 0.0, %v1899
        %1901 = vmatmul.bf16.gmra.mxu0 %v1514
        %v1902 = vpop.f32.mrf.mxu0
        %v1903 = vadd.f32 0.0, %v1902
        %v1904 = vpop.f32.mrf.mxu0
        %v1905 = vadd.f32 0.0, %v1904
        %1906 = vmatmul.bf16.gmra.mxu0 %v1518
        %v1907 = vpop.f32.mrf.mxu0
        %v1908 = vadd.f32 0.0, %v1907
        %v1909 = vpop.f32.mrf.mxu0
        %1910 = vdwg.mxu0
        %1911 = vmatpush.bf16.msra.mxu0 %v1729
        %1912 = vmatpush.bf16.msra.mxu0 %v1728
        %1913 = vmatpush.bf16.msra.mxu0 %v1727
        %1914 = vmatpush.bf16.msra.mxu0 %v1726
        %1915 = vmatpush.bf16.msra.mxu0 %v1725
        %1916 = vmatpush.bf16.msra.mxu0 %v1724
        %1917 = vmatpush.bf16.msra.mxu0 %v1723
        %1918 = vmatpush.bf16.msra.mxu0 %v1722
        %1919 = vmatmul.bf16.gmra.mxu0 %v1423
        %v1920 = vpop.f32.mrf.mxu0
        %v1921 = vadd.f32 %v1788, %v1920
        %v1922 = vpop.f32.mrf.mxu0
        %v1923 = vadd.f32 %v1790, %v1922
        %1924 = vmatmul.bf16.gmra.mxu0 %v1427
        %v1925 = vpop.f32.mrf.mxu0
        %v1926 = vadd.f32 %v1793, %v1925
        %v1927 = vpop.f32.mrf.mxu0
        %v1928 = vadd.f32 %v1795, %v1927
        %1929 = vmatmul.bf16.gmra.mxu0 %v1431
        %v1930 = vpop.f32.mrf.mxu0
        %v1931 = vadd.f32 %v1798, %v1930
        %v1932 = vpop.f32.mrf.mxu0
        %v1933 = vadd.f32 %v1800, %v1932
        %1934 = vmatmul.bf16.gmra.mxu0 %v1435
        %v1935 = vpop.f32.mrf.mxu0
        %v1936 = vadd.f32 %v1803, %v1935
        %v1937 = vpop.f32.mrf.mxu0
        %v1938 = vadd.f32 %v1805, %v1937
        %1939 = vmatmul.bf16.gmra.mxu0 %v1439
        %v1940 = vpop.f32.mrf.mxu0
        %v1941 = vadd.f32 %v1808, %v1940
        %v1942 = vpop.f32.mrf.mxu0
        %v1943 = vadd.f32 %v1810, %v1942
        %1944 = vmatmul.bf16.gmra.mxu0 %v1443
        %v1945 = vpop.f32.mrf.mxu0
        %v1946 = vadd.f32 %v1813, %v1945
        %v1947 = vpop.f32.mrf.mxu0
        %v1948 = vadd.f32 %v1815, %v1947
        %1949 = vmatmul.bf16.gmra.mxu0 %v1447
        %v1950 = vpop.f32.mrf.mxu0
        %v1951 = vadd.f32 %v1818, %v1950
        %v1952 = vpop.f32.mrf.mxu0
        %v1953 = vadd.f32 %v1820, %v1952
        %1954 = vmatmul.bf16.gmra.mxu0 %v1451
        %v1955 = vpop.f32.mrf.mxu0
        %v1956 = vadd.f32 %v1823, %v1955
        %v1957 = vpop.f32.mrf.mxu0
        %v1958 = vadd.f32 %v1825, %v1957
        %1959 = vmatmul.bf16.gmra.mxu0 %v1455
        %v1960 = vpop.f32.mrf.mxu0
        %v1961 = vadd.f32 %v1828, %v1960
        %v1962 = vpop.f32.mrf.mxu0
        %v1963 = vadd.f32 %v1830, %v1962
        %1964 = vmatmul.bf16.gmra.mxu0 %v1459
        %v1965 = vpop.f32.mrf.mxu0
        %v1966 = vadd.f32 %v1833, %v1965
        %v1967 = vpop.f32.mrf.mxu0
        %v1968 = vadd.f32 %v1835, %v1967
        %1969 = vmatmul.bf16.gmra.mxu0 %v1463
        %v1970 = vpop.f32.mrf.mxu0
        %v1971 = vadd.f32 %v1838, %v1970
        %v1972 = vpop.f32.mrf.mxu0
        %v1973 = vadd.f32 %v1840, %v1972
        %1974 = vmatmul.bf16.gmra.mxu0 %v1467
        %v1975 = vpop.f32.mrf.mxu0
        %v1976 = vadd.f32 %v1843, %v1975
        %v1977 = vpop.f32.mrf.mxu0
        %v1978 = vadd.f32 %v1845, %v1977
        %1979 = vmatmul.bf16.gmra.mxu0 %v1471
        %v1980 = vpop.f32.mrf.mxu0
        %v1981 = vadd.f32 %v1848, %v1980
        %v1982 = vpop.f32.mrf.mxu0
        %v1983 = vadd.f32 %v1850, %v1982
        %1984 = vmatmul.bf16.gmra.mxu0 %v1475
        %v1985 = vpop.f32.mrf.mxu0
        %v1986 = vadd.f32 %v1853, %v1985
        %v1987 = vpop.f32.mrf.mxu0
        %v1988 = vadd.f32 %v1855, %v1987
        %1989 = vmatmul.bf16.gmra.mxu0 %v1479
        %v1990 = vpop.f32.mrf.mxu0
        %v1991 = vadd.f32 %v1858, %v1990
        %v1992 = vpop.f32.mrf.mxu0
        %v1993 = vadd.f32 %v1860, %v1992
        %1994 = vmatmul.bf16.gmra.mxu0 %v1483
        %v1995 = vpop.f32.mrf.mxu0
        %v1996 = vadd.f32 %v1863, %v1995
        %v1997 = vpop.f32.mrf.mxu0
        %v1998 = vadd.f32 %v1865, %v1997
        %1999 = vmatmul.bf16.gmra.mxu0 %v1487
        %v2000 = vpop.f32.mrf.mxu0
        %v2001 = vadd.f32 %v1868, %v2000
        %v2002 = vpop.f32.mrf.mxu0
        %v2003 = vadd.f32 %v1870, %v2002
        %2004 = vmatmul.bf16.gmra.mxu0 %v1491
        %v2005 = vpop.f32.mrf.mxu0
        %v2006 = vadd.f32 %v1873, %v2005
        %v2007 = vpop.f32.mrf.mxu0
        %v2008 = vadd.f32 %v1875, %v2007
        %2009 = vmatmul.bf16.gmra.mxu0 %v1495
        %v2010 = vpop.f32.mrf.mxu0
        %v2011 = vadd.f32 %v1878, %v2010
        %v2012 = vpop.f32.mrf.mxu0
        %v2013 = vadd.f32 %v1880, %v2012
        %2014 = vmatmul.bf16.gmra.mxu0 %v1499
        %v2015 = vpop.f32.mrf.mxu0
        %v2016 = vadd.f32 %v1883, %v2015
        %v2017 = vpop.f32.mrf.mxu0
        %v2018 = vadd.f32 %v1885, %v2017
        %2019 = vmatmul.bf16.gmra.mxu0 %v1503
        %v2020 = vpop.f32.mrf.mxu0
        %v2021 = vadd.f32 %v1888, %v2020
        %v2022 = vpop.f32.mrf.mxu0
        %v2023 = vadd.f32 %v1890, %v2022
        %2024 = vmatmul.bf16.gmra.mxu0 %v1507
        %v2025 = vpop.f32.mrf.mxu0
        %v2026 = vadd.f32 %v1893, %v2025
        %v2027 = vpop.f32.mrf.mxu0
        %v2028 = vadd.f32 %v1895, %v2027
        %2029 = vmatmul.bf16.gmra.mxu0 %v1511
        %v2030 = vpop.f32.mrf.mxu0
        %v2031 = vadd.f32 %v1898, %v2030
        %v2032 = vpop.f32.mrf.mxu0
        %v2033 = vadd.f32 %v1900, %v2032
        %2034 = vmatmul.bf16.gmra.mxu0 %v1515
        %v2035 = vpop.f32.mrf.mxu0
        %v2036 = vadd.f32 %v1903, %v2035
        %v2037 = vpop.f32.mrf.mxu0
        %v2038 = vadd.f32 %v1905, %v2037
        %2039 = vmatmul.bf16.gmra.mxu0 %v1519
        %v2040 = vpop.f32.mrf.mxu0
        %v2041 = vadd.f32 %v1908, %v2040
        %v2042 = vpop.f32.mrf.mxu0
        %2043 = vdwg.mxu0
        %2044 = vmatpush.bf16.msra.mxu0 %v1737
        %2045 = vmatpush.bf16.msra.mxu0 %v1736
        %2046 = vmatpush.bf16.msra.mxu0 %v1735
        %2047 = vmatpush.bf16.msra.mxu0 %v1734
        %2048 = vmatpush.bf16.msra.mxu0 %v1733
        %2049 = vmatpush.bf16.msra.mxu0 %v1732
        %2050 = vmatpush.bf16.msra.mxu0 %v1731
        %2051 = vmatpush.bf16.msra.mxu0 %v1730
        %2052 = vmatmul.bf16.gmra.mxu0 %v1424
        %v2053 = vpop.f32.mrf.mxu0
        %v2054 = vadd.f32 %v1921, %v2053
        %v2055 = vpop.f32.mrf.mxu0
        %v2056 = vadd.f32 %v1923, %v2055
        %2057 = vmatmul.bf16.gmra.mxu0 %v1428
        %v2058 = vpop.f32.mrf.mxu0
        %v2059 = vadd.f32 %v1926, %v2058
        %v2060 = vpop.f32.mrf.mxu0
        %v2061 = vadd.f32 %v1928, %v2060
        %2062 = vmatmul.bf16.gmra.mxu0 %v1432
        %v2063 = vpop.f32.mrf.mxu0
        %v2064 = vadd.f32 %v1931, %v2063
        %v2065 = vpop.f32.mrf.mxu0
        %v2066 = vadd.f32 %v1933, %v2065
        %2067 = vmatmul.bf16.gmra.mxu0 %v1436
        %v2068 = vpop.f32.mrf.mxu0
        %v2069 = vadd.f32 %v1936, %v2068
        %v2070 = vpop.f32.mrf.mxu0
        %v2071 = vadd.f32 %v1938, %v2070
        %2072 = vmatmul.bf16.gmra.mxu0 %v1440
        %v2073 = vpop.f32.mrf.mxu0
        %v2074 = vadd.f32 %v1941, %v2073
        %v2075 = vpop.f32.mrf.mxu0
        %v2076 = vadd.f32 %v1943, %v2075
        %2077 = vmatmul.bf16.gmra.mxu0 %v1444
        %v2078 = vpop.f32.mrf.mxu0
        %v2079 = vadd.f32 %v1946, %v2078
        %v2080 = vpop.f32.mrf.mxu0
        %v2081 = vadd.f32 %v1948, %v2080
        %2082 = vmatmul.bf16.gmra.mxu0 %v1448
        %v2083 = vpop.f32.mrf.mxu0
        %v2084 = vadd.f32 %v1951, %v2083
        %v2085 = vpop.f32.mrf.mxu0
        %v2086 = vadd.f32 %v1953, %v2085
        %2087 = vmatmul.bf16.gmra.mxu0 %v1452
        %v2088 = vpop.f32.mrf.mxu0
        %v2089 = vadd.f32 %v1956, %v2088
        %v2090 = vpop.f32.mrf.mxu0
        %v2091 = vadd.f32 %v1958, %v2090
        %2092 = vmatmul.bf16.gmra.mxu0 %v1456
        %v2093 = vpop.f32.mrf.mxu0
        %v2094 = vadd.f32 %v1961, %v2093
        %v2095 = vpop.f32.mrf.mxu0
        %v2096 = vadd.f32 %v1963, %v2095
        %2097 = vmatmul.bf16.gmra.mxu0 %v1460
        %v2098 = vpop.f32.mrf.mxu0
        %v2099 = vadd.f32 %v1966, %v2098
        %v2100 = vpop.f32.mrf.mxu0
        %v2101 = vadd.f32 %v1968, %v2100
        %2102 = vmatmul.bf16.gmra.mxu0 %v1464
        %v2103 = vpop.f32.mrf.mxu0
        %v2104 = vadd.f32 %v1971, %v2103
        %v2105 = vpop.f32.mrf.mxu0
        %v2106 = vadd.f32 %v1973, %v2105
        %2107 = vmatmul.bf16.gmra.mxu0 %v1468
        %v2108 = vpop.f32.mrf.mxu0
        %v2109 = vadd.f32 %v1976, %v2108
        %v2110 = vpop.f32.mrf.mxu0
        %v2111 = vadd.f32 %v1978, %v2110
        %2112 = vmatmul.bf16.gmra.mxu0 %v1472
        %v2113 = vpop.f32.mrf.mxu0
        %v2114 = vadd.f32 %v1981, %v2113
        %v2115 = vpop.f32.mrf.mxu0
        %v2116 = vadd.f32 %v1983, %v2115
        %2117 = vmatmul.bf16.gmra.mxu0 %v1476
        %v2118 = vpop.f32.mrf.mxu0
        %v2119 = vadd.f32 %v1986, %v2118
        %v2120 = vpop.f32.mrf.mxu0
        %v2121 = vadd.f32 %v1988, %v2120
        %2122 = vmatmul.bf16.gmra.mxu0 %v1480
        %v2123 = vpop.f32.mrf.mxu0
        %v2124 = vadd.f32 %v1991, %v2123
        %v2125 = vpop.f32.mrf.mxu0
        %v2126 = vadd.f32 %v1993, %v2125
        %2127 = vmatmul.bf16.gmra.mxu0 %v1484
        %v2128 = vpop.f32.mrf.mxu0
        %v2129 = vadd.f32 %v1996, %v2128
        %v2130 = vpop.f32.mrf.mxu0
        %v2131 = vadd.f32 %v1998, %v2130
        %2132 = vmatmul.bf16.gmra.mxu0 %v1488
        %v2133 = vpop.f32.mrf.mxu0
        %v2134 = vadd.f32 %v2001, %v2133
        %v2135 = vpop.f32.mrf.mxu0
        %v2136 = vadd.f32 %v2003, %v2135
        %2137 = vmatmul.bf16.gmra.mxu0 %v1492
        %v2138 = vpop.f32.mrf.mxu0
        %v2139 = vadd.f32 %v2006, %v2138
        %v2140 = vpop.f32.mrf.mxu0
        %v2141 = vadd.f32 %v2008, %v2140
        %2142 = vmatmul.bf16.gmra.mxu0 %v1496
        %v2143 = vpop.f32.mrf.mxu0
        %v2144 = vadd.f32 %v2011, %v2143
        %v2145 = vpop.f32.mrf.mxu0
        %v2146 = vadd.f32 %v2013, %v2145
        %2147 = vmatmul.bf16.gmra.mxu0 %v1500
        %v2148 = vpop.f32.mrf.mxu0
        %v2149 = vadd.f32 %v2016, %v2148
        %v2150 = vpop.f32.mrf.mxu0
        %v2151 = vadd.f32 %v2018, %v2150
        %2152 = vmatmul.bf16.gmra.mxu0 %v1504
        %v2153 = vpop.f32.mrf.mxu0
        %v2154 = vadd.f32 %v2021, %v2153
        %v2155 = vpop.f32.mrf.mxu0
        %v2156 = vadd.f32 %v2023, %v2155
        %2157 = vmatmul.bf16.gmra.mxu0 %v1508
        %v2158 = vpop.f32.mrf.mxu0
        %v2159 = vadd.f32 %v2026, %v2158
        %v2160 = vpop.f32.mrf.mxu0
        %v2161 = vadd.f32 %v2028, %v2160
        %2162 = vmatmul.bf16.gmra.mxu0 %v1512
        %v2163 = vpop.f32.mrf.mxu0
        %v2164 = vadd.f32 %v2031, %v2163
        %v2165 = vpop.f32.mrf.mxu0
        %v2166 = vadd.f32 %v2033, %v2165
        %2167 = vmatmul.bf16.gmra.mxu0 %v1516
        %v2168 = vpop.f32.mrf.mxu0
        %v2169 = vadd.f32 %v2036, %v2168
        %v2170 = vpop.f32.mrf.mxu0
        %v2171 = vadd.f32 %v2038, %v2170
        %2172 = vmatmul.bf16.gmra.mxu0 %v1520
        %v2173 = vpop.f32.mrf.mxu0
        %v2174 = vadd.f32 %v2041, %v2173
        %v2175 = vpop.f32.mrf.mxu0
        %2176 = vdwg.mxu0
        %2177 = vmatpush.bf16.msra.mxu0 %v1745
        %2178 = vmatpush.bf16.msra.mxu0 %v1744
        %2179 = vmatpush.bf16.msra.mxu0 %v1743
        %2180 = vmatpush.bf16.msra.mxu0 %v1742
        %2181 = vmatpush.bf16.msra.mxu0 %v1741
        %2182 = vmatpush.bf16.msra.mxu0 %v1740
        %2183 = vmatpush.bf16.msra.mxu0 %v1739
        %2184 = vmatpush.bf16.msra.mxu0 %v1738
        %2185 = vmatmul.bf16.gmra.mxu0 %v1425
        %v2186 = vpop.f32.mrf.mxu0
        %v2187 = vadd.f32 %v2054, %v2186
        %v2188 = vpop.f32.mrf.mxu0
        %v2189 = vadd.f32 %v2056, %v2188
        %2190 = vmatmul.bf16.gmra.mxu0 %v1429
        %v2191 = vpop.f32.mrf.mxu0
        %v2192 = vadd.f32 %v2059, %v2191
        %v2193 = vpop.f32.mrf.mxu0
        %v2194 = vadd.f32 %v2061, %v2193
        %2195 = vmatmul.bf16.gmra.mxu0 %v1433
        %v2196 = vpop.f32.mrf.mxu0
        %v2197 = vadd.f32 %v2064, %v2196
        %v2198 = vpop.f32.mrf.mxu0
        %v2199 = vadd.f32 %v2066, %v2198
        %2200 = vmatmul.bf16.gmra.mxu0 %v1437
        %v2201 = vpop.f32.mrf.mxu0
        %v2202 = vadd.f32 %v2069, %v2201
        %v2203 = vpop.f32.mrf.mxu0
        %v2204 = vadd.f32 %v2071, %v2203
        %2205 = vmatmul.bf16.gmra.mxu0 %v1441
        %v2206 = vpop.f32.mrf.mxu0
        %v2207 = vadd.f32 %v2074, %v2206
        %v2208 = vpop.f32.mrf.mxu0
        %v2209 = vadd.f32 %v2076, %v2208
        %2210 = vmatmul.bf16.gmra.mxu0 %v1445
        %v2211 = vpop.f32.mrf.mxu0
        %v2212 = vadd.f32 %v2079, %v2211
        %v2213 = vpop.f32.mrf.mxu0
        %v2214 = vadd.f32 %v2081, %v2213
        %2215 = vmatmul.bf16.gmra.mxu0 %v1449
        %v2216 = vpop.f32.mrf.mxu0
        %v2217 = vadd.f32 %v2084, %v2216
        %v2218 = vpop.f32.mrf.mxu0
        %v2219 = vadd.f32 %v2086, %v2218
        %2220 = vmatmul.bf16.gmra.mxu0 %v1453
        %v2221 = vpop.f32.mrf.mxu0
        %v2222 = vadd.f32 %v2089, %v2221
        %v2223 = vpop.f32.mrf.mxu0
        %v2224 = vadd.f32 %v2091, %v2223
        %2225 = vmatmul.bf16.gmra.mxu0 %v1457
        %v2226 = vpop.f32.mrf.mxu0
        %v2227 = vadd.f32 %v2094, %v2226
        %v2228 = vpop.f32.mrf.mxu0
        %v2229 = vadd.f32 %v2096, %v2228
        %2230 = vmatmul.bf16.gmra.mxu0 %v1461
        %v2231 = vpop.f32.mrf.mxu0
        %v2232 = vadd.f32 %v2099, %v2231
        %v2233 = vpop.f32.mrf.mxu0
        %v2234 = vadd.f32 %v2101, %v2233
        %2235 = vmatmul.bf16.gmra.mxu0 %v1465
        %v2236 = vpop.f32.mrf.mxu0
        %v2237 = vadd.f32 %v2104, %v2236
        %v2238 = vpop.f32.mrf.mxu0
        %v2239 = vadd.f32 %v2106, %v2238
        %2240 = vmatmul.bf16.gmra.mxu0 %v1469
        %v2241 = vpop.f32.mrf.mxu0
        %v2242 = vadd.f32 %v2109, %v2241
        %v2243 = vpop.f32.mrf.mxu0
        %v2244 = vadd.f32 %v2111, %v2243
        %2245 = vmatmul.bf16.gmra.mxu0 %v1473
        %v2246 = vpop.f32.mrf.mxu0
        %v2247 = vadd.f32 %v2114, %v2246
        %v2248 = vpop.f32.mrf.mxu0
        %v2249 = vadd.f32 %v2116, %v2248
        %2250 = vmatmul.bf16.gmra.mxu0 %v1477
        %v2251 = vpop.f32.mrf.mxu0
        %v2252 = vadd.f32 %v2119, %v2251
        %v2253 = vpop.f32.mrf.mxu0
        %v2254 = vadd.f32 %v2121, %v2253
        %2255 = vmatmul.bf16.gmra.mxu0 %v1481
        %v2256 = vpop.f32.mrf.mxu0
        %v2257 = vadd.f32 %v2124, %v2256
        %v2258 = vpop.f32.mrf.mxu0
        %v2259 = vadd.f32 %v2126, %v2258
        %2260 = vmatmul.bf16.gmra.mxu0 %v1485
        %v2261 = vpop.f32.mrf.mxu0
        %v2262 = vadd.f32 %v2129, %v2261
        %v2263 = vpop.f32.mrf.mxu0
        %v2264 = vadd.f32 %v2131, %v2263
        %2265 = vmatmul.bf16.gmra.mxu0 %v1489
        %v2266 = vpop.f32.mrf.mxu0
        %v2267 = vadd.f32 %v2134, %v2266
        %v2268 = vpop.f32.mrf.mxu0
        %v2269 = vadd.f32 %v2136, %v2268
        %2270 = vmatmul.bf16.gmra.mxu0 %v1493
        %v2271 = vpop.f32.mrf.mxu0
        %v2272 = vadd.f32 %v2139, %v2271
        %v2273 = vpop.f32.mrf.mxu0
        %v2274 = vadd.f32 %v2141, %v2273
        %2275 = vmatmul.bf16.gmra.mxu0 %v1497
        %v2276 = vpop.f32.mrf.mxu0
        %v2277 = vadd.f32 %v2144, %v2276
        %v2278 = vpop.f32.mrf.mxu0
        %v2279 = vadd.f32 %v2146, %v2278
        %2280 = vmatmul.bf16.gmra.mxu0 %v1501
        %v2281 = vpop.f32.mrf.mxu0
        %v2282 = vadd.f32 %v2149, %v2281
        %v2283 = vpop.f32.mrf.mxu0
        %v2284 = vadd.f32 %v2151, %v2283
        %2285 = vmatmul.bf16.gmra.mxu0 %v1505
        %v2286 = vpop.f32.mrf.mxu0
        %v2287 = vadd.f32 %v2154, %v2286
        %v2288 = vpop.f32.mrf.mxu0
        %v2289 = vadd.f32 %v2156, %v2288
        %2290 = vmatmul.bf16.gmra.mxu0 %v1509
        %v2291 = vpop.f32.mrf.mxu0
        %v2292 = vadd.f32 %v2159, %v2291
        %v2293 = vpop.f32.mrf.mxu0
        %v2294 = vadd.f32 %v2161, %v2293
        %2295 = vmatmul.bf16.gmra.mxu0 %v1513
        %v2296 = vpop.f32.mrf.mxu0
        %v2297 = vadd.f32 %v2164, %v2296
        %v2298 = vpop.f32.mrf.mxu0
        %v2299 = vadd.f32 %v2166, %v2298
        %2300 = vmatmul.bf16.gmra.mxu0 %v1517
        %v2301 = vpop.f32.mrf.mxu0
        %v2302 = vadd.f32 %v2169, %v2301
        %v2303 = vpop.f32.mrf.mxu0
        %v2304 = vadd.f32 %v2171, %v2303
        %2305 = vmatmul.bf16.gmra.mxu0 %v1521
        %v2306 = vpop.f32.mrf.mxu0
        %v2307 = vadd.f32 %v2174, %v2306
        %v2308 = vpop.f32.mrf.mxu0
        %2309 = vdwg.mxu0
        %v2310 = vunpack.c.l.bf16 %v295
        %v2311 = vunpack.c.l.bf16 %v296
        %v2312 = vunpack.c.l.bf16 %v297
        %v2313 = vunpack.c.l.bf16 %v298
        %v2314 = vunpack.c.l.bf16 %v299
        %v2315 = vunpack.c.l.bf16 %v300
        %v2316 = vunpack.c.l.bf16 %v301
        %v2317 = vunpack.c.l.bf16 %v302
        %v2318 = vunpack.c.l.bf16 %v303
        %v2319 = vunpack.c.l.bf16 %v304
        %v2320 = vunpack.c.l.bf16 %v305
        %v2321 = vunpack.c.l.bf16 %v306
        %v2322 = vunpack.c.l.bf16 %v307
        %v2323 = vunpack.c.l.bf16 %v308
        %v2324 = vunpack.c.l.bf16 %v309
        %v2325 = vunpack.c.l.bf16 %v310
        %v2326 = vunpack.c.l.bf16 %v311
        %v2327 = vunpack.c.l.bf16 %v312
        %v2328 = vunpack.c.l.bf16 %v313
        %v2329 = vunpack.c.l.bf16 %v314
        %v2330 = vunpack.c.l.bf16 %v315
        %v2331 = vunpack.c.l.bf16 %v316
        %v2332 = vunpack.c.l.bf16 %v317
        %v2333 = vunpack.c.l.bf16 %v318
        %v2334 = vunpack.c.l.bf16 %v319
        %v2335 = vunpack.c.l.bf16 %v320
        %v2336 = vunpack.c.l.bf16 %v321
        %v2337 = vunpack.c.l.bf16 %v322
        %v2338 = vunpack.c.l.bf16 %v323
        %v2339 = vunpack.c.l.bf16 %v324
        %v2340 = vunpack.c.l.bf16 %v325
        %v2341 = vunpack.c.l.bf16 %v326
        %v2342 = vunpack.c.l.bf16 %v327
        %v2343 = vunpack.c.l.bf16 %v328
        %v2344 = vunpack.c.l.bf16 %v329
        %v2345 = vunpack.c.l.bf16 %v330
        %v2346 = vunpack.c.l.bf16 %v331
        %v2347 = vunpack.c.l.bf16 %v332
        %v2348 = vunpack.c.l.bf16 %v333
        %v2349 = vunpack.c.l.bf16 %v334
        %v2350 = vunpack.c.l.bf16 %v335
        %v2351 = vunpack.c.l.bf16 %v336
        %v2352 = vunpack.c.l.bf16 %v337
        %v2353 = vunpack.c.l.bf16 %v338
        %v2354 = vunpack.c.l.bf16 %v339
        %v2355 = vunpack.c.l.bf16 %v340
        %v2356 = vunpack.c.l.bf16 %v341
        %v2357 = vunpack.c.l.bf16 %v342
        %v2358 = vunpack.c.l.bf16 %v343
        %v2359 = vadd.f32 %v2310, %v2187
        %v2360 = vadd.f32 %v2311, %v2189
        %v2361 = vadd.f32 %v2312, %v2192
        %v2362 = vadd.f32 %v2313, %v2194
        %v2363 = vadd.f32 %v2314, %v2197
        %v2364 = vadd.f32 %v2315, %v2199
        %v2365 = vadd.f32 %v2316, %v2202
        %v2366 = vadd.f32 %v2317, %v2204
        %v2367 = vadd.f32 %v2318, %v2207
        %v2368 = vadd.f32 %v2319, %v2209
        %v2369 = vadd.f32 %v2320, %v2212
        %v2370 = vadd.f32 %v2321, %v2214
        %v2371 = vadd.f32 %v2322, %v2217
        %v2372 = vadd.f32 %v2323, %v2219
        %v2373 = vadd.f32 %v2324, %v2222
        %v2374 = vadd.f32 %v2325, %v2224
        %v2375 = vadd.f32 %v2326, %v2227
        %v2376 = vadd.f32 %v2327, %v2229
        %v2377 = vadd.f32 %v2328, %v2232
        %v2378 = vadd.f32 %v2329, %v2234
        %v2379 = vadd.f32 %v2330, %v2237
        %v2380 = vadd.f32 %v2331, %v2239
        %v2381 = vadd.f32 %v2332, %v2242
        %v2382 = vadd.f32 %v2333, %v2244
        %v2383 = vadd.f32 %v2334, %v2247
        %v2384 = vadd.f32 %v2335, %v2249
        %v2385 = vadd.f32 %v2336, %v2252
        %v2386 = vadd.f32 %v2337, %v2254
        %v2387 = vadd.f32 %v2338, %v2257
        %v2388 = vadd.f32 %v2339, %v2259
        %v2389 = vadd.f32 %v2340, %v2262
        %v2390 = vadd.f32 %v2341, %v2264
        %v2391 = vadd.f32 %v2342, %v2267
        %v2392 = vadd.f32 %v2343, %v2269
        %v2393 = vadd.f32 %v2344, %v2272
        %v2394 = vadd.f32 %v2345, %v2274
        %v2395 = vadd.f32 %v2346, %v2277
        %v2396 = vadd.f32 %v2347, %v2279
        %v2397 = vadd.f32 %v2348, %v2282
        %v2398 = vadd.f32 %v2349, %v2284
        %v2399 = vadd.f32 %v2350, %v2287
        %v2400 = vadd.f32 %v2351, %v2289
        %v2401 = vadd.f32 %v2352, %v2292
        %v2402 = vadd.f32 %v2353, %v2294
        %v2403 = vadd.f32 %v2354, %v2297
        %v2404 = vadd.f32 %v2355, %v2299
        %v2405 = vadd.f32 %v2356, %v2302
        %v2406 = vadd.f32 %v2357, %v2304
        %v2407 = vadd.f32 %v2358, %v2307
        %v2408 = vld [vmem:[%s4] sm:$0x1]
        %v2410 = vperm.slane %v2408, 0
        %v2412 = vadd.f32 %v2359, %v2410
        %v2413 = vadd.f32 %v2360, %v2410
        %v2414 = vadd.f32 %v2361, %v2410
        %v2415 = vadd.f32 %v2362, %v2410
        %v2416 = vadd.f32 %v2363, %v2410
        %v2417 = vadd.f32 %v2364, %v2410
        %v2418 = vadd.f32 %v2365, %v2410
        %v2419 = vadd.f32 %v2366, %v2410
        %v2420 = vadd.f32 %v2367, %v2410
        %v2421 = vadd.f32 %v2368, %v2410
        %v2422 = vadd.f32 %v2369, %v2410
        %v2423 = vadd.f32 %v2370, %v2410
        %v2424 = vadd.f32 %v2371, %v2410
        %v2425 = vadd.f32 %v2372, %v2410
        %v2426 = vadd.f32 %v2373, %v2410
        %v2427 = vadd.f32 %v2374, %v2410
        %v2428 = vadd.f32 %v2375, %v2410
        %v2429 = vadd.f32 %v2376, %v2410
        %v2430 = vadd.f32 %v2377, %v2410
        %v2431 = vadd.f32 %v2378, %v2410
        %v2432 = vadd.f32 %v2379, %v2410
        %v2433 = vadd.f32 %v2380, %v2410
        %v2434 = vadd.f32 %v2381, %v2410
        %v2435 = vadd.f32 %v2382, %v2410
        %v2436 = vadd.f32 %v2383, %v2410
        %v2437 = vadd.f32 %v2384, %v2410
        %v2438 = vadd.f32 %v2385, %v2410
        %v2439 = vadd.f32 %v2386, %v2410
        %v2440 = vadd.f32 %v2387, %v2410
        %v2441 = vadd.f32 %v2388, %v2410
        %v2442 = vadd.f32 %v2389, %v2410
        %v2443 = vadd.f32 %v2390, %v2410
        %v2444 = vadd.f32 %v2391, %v2410
        %v2445 = vadd.f32 %v2392, %v2410
        %v2446 = vadd.f32 %v2393, %v2410
        %v2447 = vadd.f32 %v2394, %v2410
        %v2448 = vadd.f32 %v2395, %v2410
        %v2449 = vadd.f32 %v2396, %v2410
        %v2450 = vadd.f32 %v2397, %v2410
        %v2451 = vadd.f32 %v2398, %v2410
        %v2452 = vadd.f32 %v2399, %v2410
        %v2453 = vadd.f32 %v2400, %v2410
        %v2454 = vadd.f32 %v2401, %v2410
        %v2455 = vadd.f32 %v2402, %v2410
        %v2456 = vadd.f32 %v2403, %v2410
        %v2457 = vadd.f32 %v2404, %v2410
        %v2458 = vadd.f32 %v2405, %v2410
        %v2459 = vadd.f32 %v2406, %v2410
        %v2460 = vadd.f32 %v2407, %v2410
        %2461 = vst [vmem:[%s292] sm:$0xff] %v2412
        %2462 = vst [vmem:[%s292 + $0x8] sm:$0xff] %v2413
        %2463 = vst [vmem:[%s292 + $0x10] sm:$0xff] %v2414
        %2464 = vst [vmem:[%s292 + $0x18] sm:$0xff] %v2415
        %2465 = vst [vmem:[%s292 + $0x20] sm:$0xff] %v2416
        %2466 = vst [vmem:[%s292 + $0x28] sm:$0xff] %v2417
        %2467 = vst [vmem:[%s292 + $0x30] sm:$0xff] %v2418
        %2468 = vst [vmem:[%s292 + $0x38] sm:$0xff] %v2419
        %2469 = vst [vmem:[%s292 + $0x40] sm:$0xff] %v2420
        %2470 = vst [vmem:[%s292 + $0x48] sm:$0xff] %v2421
        %2471 = vst [vmem:[%s292 + $0x50] sm:$0xff] %v2422
        %2472 = vst [vmem:[%s292 + $0x58] sm:$0xff] %v2423
        %2473 = vst [vmem:[%s292 + $0x60] sm:$0xff] %v2424
        %2474 = vst [vmem:[%s292 + $0x68] sm:$0xff] %v2425
        %2475 = vst [vmem:[%s292 + $0x70] sm:$0xff] %v2426
        %2476 = vst [vmem:[%s292 + $0x78] sm:$0xff] %v2427
        %2477 = vst [vmem:[%s292 + $0x80] sm:$0xff] %v2428
        %2478 = vst [vmem:[%s292 + $0x88] sm:$0xff] %v2429
        %2479 = vst [vmem:[%s292 + $0x90] sm:$0xff] %v2430
        %2480 = vst [vmem:[%s292 + $0x98] sm:$0xff] %v2431
        %2481 = vst [vmem:[%s292 + $0xa0] sm:$0xff] %v2432
        %2482 = vst [vmem:[%s292 + $0xa8] sm:$0xff] %v2433
        %2483 = vst [vmem:[%s292 + $0xb0] sm:$0xff] %v2434
        %2484 = vst [vmem:[%s292 + $0xb8] sm:$0xff] %v2435
        %2485 = vst [vmem:[%s292 + $0xc0] sm:$0xff] %v2436
        %2486 = vst [vmem:[%s292 + $0xc8] sm:$0xff] %v2437
        %2487 = vst [vmem:[%s292 + $0xd0] sm:$0xff] %v2438
        %2488 = vst [vmem:[%s292 + $0xd8] sm:$0xff] %v2439
        %2489 = vst [vmem:[%s292 + $0xe0] sm:$0xff] %v2440
        %2490 = vst [vmem:[%s292 + $0xe8] sm:$0xff] %v2441
        %2491 = vst [vmem:[%s292 + $0xf0] sm:$0xff] %v2442
        %2492 = vst [vmem:[%s292 + $0xf8] sm:$0xff] %v2443
        %2493 = vst [vmem:[%s292 + $0x100] sm:$0xff] %v2444
        %2494 = vst [vmem:[%s292 + $0x108] sm:$0xff] %v2445
        %2495 = vst [vmem:[%s292 + $0x110] sm:$0xff] %v2446
        %2496 = vst [vmem:[%s292 + $0x118] sm:$0xff] %v2447
        %2497 = vst [vmem:[%s292 + $0x120] sm:$0xff] %v2448
        %2498 = vst [vmem:[%s292 + $0x128] sm:$0xff] %v2449
        %2499 = vst [vmem:[%s292 + $0x130] sm:$0xff] %v2450
        %2500 = vst [vmem:[%s292 + $0x138] sm:$0xff] %v2451
        %2501 = vst [vmem:[%s292 + $0x140] sm:$0xff] %v2452
        %2502 = vst [vmem:[%s292 + $0x148] sm:$0xff] %v2453
        %2503 = vst [vmem:[%s292 + $0x150] sm:$0xff] %v2454
        %2504 = vst [vmem:[%s292 + $0x158] sm:$0xff] %v2455
        %2505 = vst [vmem:[%s292 + $0x160] sm:$0xff] %v2456
        %2506 = vst [vmem:[%s292 + $0x168] sm:$0xff] %v2457
        %2507 = vst [vmem:[%s292 + $0x170] sm:$0xff] %v2458
        %2508 = vst [vmem:[%s292 + $0x178] sm:$0xff] %v2459
        %2509 = vst [vmem:[%s292 + $0x180] sm:$0xff] %v2460
        %s2510 = sand.u32 %s142, 1
        %s2511 = scalar_lea.sflag [#allocation4], %s2510
        %s2512 = sand.u32 %s142, 1
        %s2513 = smul.addr %s2512, 392
        %s2514 = scalar_lea.vmem [#allocation10], %s2513
        // Predicated region
        $region57: #{tpu_custom_call.1} parent=39 // pred_check
          %p2515 = pneg %p152
        $region58: #{tpu_custom_call.1} parent=39 // pred_check_branch
          %2517 = sbr.rel (%p2515) target = $region60
        $region59: #{tpu_custom_call.1} parent=39 // pred_region
          %s2518 = smul.u32 49, %s24
          %2520 = vsyncadd %s2511, 0
          %s2521 = smul.addr %s2518, 8
          %s2522 = scalar_lea.hbm %s5, %s2521
          %s2523 = sshll.u32 %s2514, 4
          %s2524 = int_to_ptr.vmem [resolvable:$true] %s2523
          %s2525 = sshll.u32 %s2522, 4
          %s2526 = int_to_ptr.hbm [resolvable:$true] %s2525
          %2531 = dma.vmem_to_hbm [thread:$0]  %s2524, 6272, %s2526, %s2511, 128, 128, 8
        $region60: #{tpu_custom_call.1} parent=39 // pred_fallthru
          _
      $region40: #{tpu_custom_call.1} parent=5 // pred_fallthru
        _
      %p2532 = scmp.le.s32.totalorder 2, %s19
      // Predicated region
      $region61: #{tpu_custom_call.1} parent=5 // pred_check
        %p2533 = pneg %p2532
      $region62: #{tpu_custom_call.1} parent=5 // pred_check_branch
        %2535 = sbr.rel (%p2533) target = $region64
      $region63: #{tpu_custom_call.1} parent=5 // pred_region
        %s2536 = ssub.s32 %s19, 2
        // Predicated region
        $region65: #{tpu_custom_call.1} parent=63 // pred_check
          %p2537 = pneg %p158
        $region66: #{tpu_custom_call.1} parent=63 // pred_check_branch
          %2539 = sbr.rel (%p2537) target = $region68
        $region67: #{tpu_custom_call.1} parent=63 // pred_region
          %s2540 = sand.u32 %s143, 1
          %s2541 = scalar_lea.sflag [#allocation4], %s2540
          %s2542 = sand.u32 %s143, 1
          %s2543 = smul.addr %s2542, 392
          %s2544 = scalar_lea.vmem [#allocation10], %s2543
          %2546 = dma.done %s2541, 6272
        $region68: #{tpu_custom_call.1} parent=63 // pred_fallthru
          _
      $region64: #{tpu_custom_call.1} parent=5 // pred_fallthru
        _
    $region6: #{tpu_custom_call.1} parent=1 // loop_footer
      %s23 = sadd.s32 1, %s19
    $region7: #{tpu_custom_call.1} parent=1 // loop_footer_branch
      %18 = sbr.rel target = $region3
    $region8: #{tpu_custom_call.1} parent=1 // loop_exit
      _
    %2547 = vsyncpa [#allocation3], 1
    %s2548 = scalar_lea.sflag [#allocation3], 1
    %2549 = vsyncpa %s2548, 1
    %2550 = vsyncpa [#allocation6], 1
    %2551 = vsyncpa [#allocation9], 1
    %2552 = vsyncpa [#allocation4], 1
    %s2553 = scalar_lea.sflag [#allocation4], 1
    %2554 = vsyncpa %s2553, 1

</llo_original>
